<compile_context>
chip_gen: v6e
topology: v6e:2x2x1
jax: 0.10.0
libtpu: 0.0.40
codegen_flags: <defaults>
</compile_context>

<pallas_src>
import jax
import jax.numpy as jnp
from jax.experimental import pallas as pl
from jax.experimental.pallas import tpu as pltpu

F_REAL = 780      # embedding_size (768 + 12)
F_PAD = 896       # 7 * 128: lane-aligned per-head feature width
NEG_SLOPE = 0.2   # GATConv LeakyReLU default
BN_EPS = 1e-5
VMEM_LIMIT = 32 * 1024 * 1024   # explicit scoped-VMEM cap (v5e default is 16 MiB)


# ----------------------------------------------------------------------------
# Shared per-head epilogue: attention softmax + aggregation + bias + tanh + BN
# ----------------------------------------------------------------------------
def _gat_epilogue(xh, prm, adj):
    # xh : [N, F_PAD] f32  (= x @ W_head, f32-accumulated)
    # prm: [8, F_PAD] f32, rows 0=att_dst, 1=att_src, 2=bias, 3=gamma, 4=beta
    # adj: [N, N] f32 with adj[dst, src] = 1 (+ self loops)
    att = prm[0:2, :]                                  # lane-dense [2, F_PAD]
    bias, gamma, beta = prm[2:3, :], prm[3:4, :], prm[4:5, :]
    # a[:, 0] = att_dst . xh_i ; a[:, 1] = att_src . xh_j   (contract lane dims)
    a = jax.lax.dot_general(xh, att, (((1,), (1,)), ((), ())),
                            preferred_element_type=jnp.float32)      # [N, 2]
    logits = a[:, 0:1] + a[:, 1:2].T                                 # dst_i + src_j
    logits = jnp.where(logits >= 0, logits, NEG_SLOPE * logits)      # LeakyReLU(0.2)
    logits = jnp.where(adj > 0.0, logits, jnp.float32(-1e30))
    logits = logits - jnp.max(logits, axis=1, keepdims=True)
    p = jnp.exp(logits)                  # masked entries underflow to exactly 0
    att_c = p / jnp.sum(p, axis=1, keepdims=True)                    # denom >= 1
    out = jnp.dot(att_c, xh, preferred_element_type=jnp.float32) + bias
    out = jnp.tanh(out)
    # BatchNorm1d, training-mode statistics over the node axis (biased var).
    mean = jnp.mean(out, axis=0, keepdims=True)
    var = jnp.mean(jnp.square(out - mean), axis=0, keepdims=True)
    return (out - mean) * jax.lax.rsqrt(var + BN_EPS) * gamma + beta


# ----------------------------------------------------------------------------
# Kernel 1: GATConv + tanh + BatchNorm, one head per grid step
# ----------------------------------------------------------------------------
def gat_layer_kernel(x_ref, w_ref, prm_ref, adj_ref, o_ref):
    # bf16 x / bf16 W on the MXU, f32 accumulation.
    xh = jnp.dot(x_ref[...], w_ref[...], preferred_element_type=jnp.float32)
    o_ref[...] = _gat_epilogue(xh, prm_ref[...], adj_ref[...]).astype(o_ref.dtype)


def gat_layer(x, w, prm, adj, *, heads):
    n, fin_pad = x.shape
    assert w.shape == (heads, fin_pad, F_PAD)
    return pl.pallas_call(
        gat_layer_kernel,
        out_shape=jax.ShapeDtypeStruct((n, heads * F_PAD), jnp.bfloat16),
        grid=(heads,),
        in_specs=[
            pl.BlockSpec((n, fin_pad), lambda h: (0, 0)),              # x (bf16)
            pl.BlockSpec((None, fin_pad, F_PAD), lambda h: (h, 0, 0)), # W, head-major contiguous (bf16)
            pl.BlockSpec((None, 8, F_PAD), lambda h: (h, 0, 0)),       # packed att/bias/gamma/beta
            pl.BlockSpec((n, n), lambda h: (0, 0)),                    # adjacency
        ],
        out_specs=pl.BlockSpec((n, F_PAD), lambda h: (0, h)),
        compiler_params=pltpu.CompilerParams(
            dimension_semantics=("parallel",),
            vmem_limit_bytes=VMEM_LIMIT),
    )(x, w, prm, adj)


# ----------------------------------------------------------------------------
# Kernel 2: last GATConv layer fused with global_mean_pool + ReLU + MLP
# ----------------------------------------------------------------------------
def gat_final_kernel(x_ref, w_ref, prm_ref, adj_ref, pool_ref,
                     w1_ref, b1_ref, w2_ref, b2_ref, o_ref):
    xh = jnp.dot(x_ref[...], w_ref[...], preferred_element_type=jnp.float32)
    feat = _gat_epilogue(xh, prm_ref[...], adj_ref[...])
    pooled = jnp.maximum(
        jnp.dot(pool_ref[...], feat, preferred_element_type=jnp.float32), 0.0)
    hid = jnp.tanh(jnp.dot(pooled, w1_ref[...],
                           preferred_element_type=jnp.float32) + b1_ref[...])
    o_ref[...] = jnp.dot(hid, w2_ref[...],
                         preferred_element_type=jnp.float32) + b2_ref[...]


def gat_final(x, w, prm, adj, pool_mat, w1, b1, w2, b2):
    n, fin_pad = x.shape
    assert w.shape == (1, fin_pad, F_PAD)
    g = pool_mat.shape[0]
    c = w2.shape[1]
    return pl.pallas_call(
        gat_final_kernel,
        out_shape=jax.ShapeDtypeStruct((g, c), jnp.float32),
        grid=(1,),
        in_specs=[
            pl.BlockSpec((n, fin_pad), lambda h: (0, 0)),
            pl.BlockSpec((None, fin_pad, F_PAD), lambda h: (0, 0, 0)),
            pl.BlockSpec((None, 8, F_PAD), lambda h: (0, 0, 0)),
            pl.BlockSpec((n, n), lambda h: (0, 0)),
            pl.BlockSpec((g, n), lambda h: (0, 0)),            # pooling matrix
            pl.BlockSpec((F_PAD, 128), lambda h: (0, 0)),      # mlp W1 (rows padded)
            pl.BlockSpec((1, 128), lambda h: (0, 0)),
            pl.BlockSpec((128, c), lambda h: (0, 0)),
            pl.BlockSpec((1, c), lambda h: (0, 0)),
        ],
        out_specs=pl.BlockSpec((g, c), lambda h: (0, 0)),
        compiler_params=pltpu.CompilerParams(
            dimension_semantics=("arbitrary",),
            vmem_limit_bytes=VMEM_LIMIT),
    )(x, w, prm, adj, pool_mat, w1, b1, w2, b2)


# ----------------------------------------------------------------------------
# Host-side glue: padding to the lane-aligned layout, parameter construction
# ----------------------------------------------------------------------------
def pad_groups(a, axis, groups, size, size_pad):
    """Zero-pad `axis` (length groups*size) to groups*size_pad, per group."""
    shp = list(a.shape)
    assert shp[axis] == groups * size
    grouped = shp[:axis] + [groups, size] + shp[axis + 1:]
    a = a.reshape(grouped)
    pad = [(0, 0)] * len(grouped)
    pad[axis + 1] = (0, size_pad - size)
    a = jnp.pad(a, pad)
    return a.reshape(shp[:axis] + [groups * size_pad] + shp[axis + 1:])


def make_gat_params(key, fin_real, in_groups, heads):
    """Random GATConv + BatchNorm params, pre-padded to the aligned layout.

    Returns:
      w   : (heads, in_groups*F_PAD, F_PAD) bf16 -- per-head contiguous.
      prm : (heads, 8, F_PAD) f32 -- rows [att_dst, att_src, bias, gamma, beta, 0, 0, 0].
    """
    kw, ks, kd = jax.random.split(key, 3)
    w = jax.random.normal(kw, (fin_real, heads * F_REAL), jnp.float32) * 0.02
    att_src = jax.random.normal(ks, (heads, F_REAL), jnp.float32) * 0.1
    att_dst = jax.random.normal(kd, (heads, F_REAL), jnp.float32) * 0.1
    bias = jnp.zeros((heads, F_REAL), jnp.float32)
    gamma = jnp.ones((heads, F_REAL), jnp.float32)
    beta = jnp.zeros((heads, F_REAL), jnp.float32)

    fin_pad = in_groups * F_PAD
    w_p = pad_groups(w, 0, in_groups, F_REAL, F_PAD)             # pad fin rows per group
    w_p = w_p.reshape(fin_pad, heads, F_REAL)
    w_p = jnp.pad(w_p, ((0, 0), (0, 0), (0, F_PAD - F_REAL)))    # pad per-head cols
    w_p = jnp.transpose(w_p, (1, 0, 2)).astype(jnp.bfloat16)     # head-major, bf16 stream

    def padf(v):
        return jnp.pad(v, ((0, 0), (0, F_PAD - F_REAL)))
    zeros = jnp.zeros((heads, F_PAD), jnp.float32)
    prm = jnp.stack([padf(att_dst), padf(att_src), padf(bias),
                     padf(gamma), padf(beta), zeros, zeros, zeros], axis=1)
    return w_p, prm


if __name__ == "__main__":
    key = jax.random.PRNGKey(0)
    keys = jax.random.split(key, 10)

    # Small graph: 16 nodes, 40 directed edges, 2 graphs in the batch.
    N, E, G = 16, 40, 2
    D_in = 772                      # raw features; forward uses x[:, 768:772]
    num_classes = 64

    x_raw = jax.random.normal(keys[0], (N, D_in), jnp.float32)
    src = jax.random.randint(keys[1], (E,), 0, N)
    dst = jax.random.randint(keys[2], (E,), 0, N)
    batch = jnp.concatenate([jnp.zeros(N // 2, jnp.int32),
                             jnp.ones(N - N // 2, jnp.int32)])

    # Dense adjacency adj[dst, src] + self loops (GATConv add_self_loops=True).
    adj = jnp.zeros((N, N), jnp.float32).at[dst, src].set(1.0)
    adj = jnp.maximum(adj, jnp.eye(N, dtype=jnp.float32))

    # time_linear: Linear(4, 12) on x[:, 768:772]  (tiny -> plain JAX glue).
    wt = jax.random.normal(keys[3], (4, 12), jnp.float32) * 0.1
    bt = jnp.zeros((12,), jnp.float32)
    time_expand = x_raw[:, 768:772] @ wt + bt
    x = jnp.concatenate([x_raw[:, :768], time_expand, x_raw[:, 772:]], axis=-1)
    x = jnp.pad(x, ((0, 0), (0, F_PAD - F_REAL))).astype(jnp.bfloat16)   # [N, 896]

    # GAT layers (num_layers=3): (in_groups, heads) = (1,3), (3,3), (3,1)
    w0, p0 = make_gat_params(keys[4], F_REAL, 1, 3)
    w1g, p1 = make_gat_params(keys[5], 3 * F_REAL, 3, 3)
    w2g, p2 = make_gat_params(keys[6], 3 * F_REAL, 3, 1)

    x = gat_layer(x, w0, p0, adj, heads=3)                       # [N, 3*896] bf16
    x = gat_layer(x, w1g, p1, adj, heads=3)                      # [N, 3*896] bf16

    # global_mean_pool as a dense [G, N] averaging matrix.
    onehot = (batch[None, :] == jnp.arange(G)[:, None]).astype(jnp.float32)
    pool_mat = onehot / jnp.sum(onehot, axis=1, keepdims=True)

    # MLP: Linear(780,128) -> Tanh -> Linear(128,64); W1 rows padded to 896.
    w1 = jax.random.normal(keys[7], (F_REAL, 128), jnp.float32) * 0.05
    w1 = jnp.pad(w1, ((0, F_PAD - F_REAL), (0, 0)))
    b1 = jnp.zeros((1, 128), jnp.float32)
    w2 = jax.random.normal(keys[8], (128, num_classes), jnp.float32) * 0.05
    b2 = jnp.zeros((1, num_classes), jnp.float32)

    out = gat_final(x, w2g, p2, adj, pool_mat, w1, b1, w2, b2)   # [G, 64]
    out = jax.block_until_ready(out)
    assert out.shape == (G, num_classes) and out.dtype == jnp.float32
    assert bool(jnp.all(jnp.isfinite(out)))
    print("KERNEL_OK")
</pallas_src>

<mosaic_0001>
module attributes {stable_mosaic.version = 11 : i64} {
  func.func @gat_layer_kernel(%arg0: i32, %arg1: memref<16x896xbf16, #tpu.memory_space<vmem>>, %arg2: memref<1x896x896xbf16, #tpu.memory_space<vmem>>, %arg3: memref<1x8x896xf32, #tpu.memory_space<vmem>>, %arg4: memref<16x16xf32, #tpu.memory_space<vmem>>, %arg5: memref<16x896xbf16, #tpu.memory_space<vmem>>) attributes {dimension_semantics = [#tpu.dimension_semantics<parallel>], iteration_bounds = array<i64: 3>, scalar_prefetch = 0 : i64, scratch_operands = 0 : i64, tpu.core_type = #tpu.core_type<tc>, window_params = [{pipeline_mode = #tpu.pipeline_mode<synchronous>, transform_indices = @transform_0, window_bounds = array<i64: 16, 896>}, {transform_indices = @transform_1, window_bounds = array<i64: 1, 896, 896>}, {transform_indices = @transform_2, window_bounds = array<i64: 1, 8, 896>}, {pipeline_mode = #tpu.pipeline_mode<synchronous>, transform_indices = @transform_3, window_bounds = array<i64: 16, 16>}, {transform_indices = @transform_4, window_bounds = array<i64: 16, 896>}]} {
    %c0 = arith.constant 0 : index
    %c0_0 = arith.constant 0 : index
    %0 = vector.load %arg1[%c0, %c0_0] : memref<16x896xbf16, #tpu.memory_space<vmem>>, vector<16x896xbf16>
    %c0_1 = arith.constant 0 : index
    %c0_2 = arith.constant 0 : index
    %c0_3 = arith.constant 0 : index
    %1 = vector.load %arg2[%c0_1, %c0_2, %c0_3] : memref<1x896x896xbf16, #tpu.memory_space<vmem>>, vector<1x896x896xbf16>
    %2 = vector.shape_cast %1 : vector<1x896x896xbf16> to vector<896x896xbf16>
    %cst = arith.constant dense<0.000000e+00> : vector<16x896xf32>
    %3 = tpu.matmul %0, %2, %cst {dimension_numbers = #tpu.dot_dimension_numbers<[1], [0], [0], [1], [0, 0, 1, 1], [], []>} : vector<16x896xbf16>, vector<896x896xbf16>, vector<16x896xf32> -> vector<16x896xf32>
    %c0_4 = arith.constant 0 : index
    %c0_5 = arith.constant 0 : index
    %c0_6 = arith.constant 0 : index
    %4 = vector.load %arg3[%c0_4, %c0_5, %c0_6] : memref<1x8x896xf32, #tpu.memory_space<vmem>>, vector<1x8x896xf32>
    %5 = vector.shape_cast %4 : vector<1x8x896xf32> to vector<8x896xf32>
    %c0_7 = arith.constant 0 : index
    %c0_8 = arith.constant 0 : index
    %6 = vector.load %arg4[%c0_7, %c0_8] : memref<16x16xf32, #tpu.memory_space<vmem>>, vector<16x16xf32>
    %7 = vector.extract_strided_slice %5 {offsets = [0, 0], sizes = [2, 896], strides = [1, 1]} : vector<8x896xf32> to vector<2x896xf32>
    %8 = vector.extract_strided_slice %5 {offsets = [2, 0], sizes = [1, 896], strides = [1, 1]} : vector<8x896xf32> to vector<1x896xf32>
    %9 = vector.extract_strided_slice %5 {offsets = [3, 0], sizes = [1, 896], strides = [1, 1]} : vector<8x896xf32> to vector<1x896xf32>
    %10 = vector.extract_strided_slice %5 {offsets = [4, 0], sizes = [1, 896], strides = [1, 1]} : vector<8x896xf32> to vector<1x896xf32>
    %cst_9 = arith.constant dense<0.000000e+00> : vector<16x2xf32>
    %11 = tpu.matmul %3, %7, %cst_9 {dimension_numbers = #tpu.dot_dimension_numbers<[1], [1], [0], [0], [0, 0, 1, 0], [], []>} : vector<16x896xf32>, vector<2x896xf32>, vector<16x2xf32> -> vector<16x2xf32>
    %12 = vector.extract_strided_slice %11 {offsets = [0, 0], sizes = [16, 1], strides = [1, 1]} : vector<16x2xf32> to vector<16x1xf32>
    %13 = vector.extract_strided_slice %11 {offsets = [0, 1], sizes = [16, 1], strides = [1, 1]} : vector<16x2xf32> to vector<16x1xf32>
    %14 = tpu.transpose %13, [1, 0] : vector<16x1xf32> -> vector<1x16xf32>
    %15 = vector.broadcast %12 : vector<16x1xf32> to vector<16x16xf32>
    %16 = vector.broadcast %14 : vector<1x16xf32> to vector<16x16xf32>
    %17 = arith.addf %15, %16 : vector<16x16xf32>
    %cst_10 = arith.constant 0.000000e+00 : f32
    %18 = vector.broadcast %cst_10 : f32 to vector<16x16xf32>
    %19 = arith.cmpf oge, %17, %18 : vector<16x16xf32>
    %cst_11 = arith.constant 2.000000e-01 : f32
    %20 = vector.broadcast %cst_11 : f32 to vector<16x16xf32>
    %21 = arith.mulf %20, %17 : vector<16x16xf32>
    %22 = arith.select %19, %17, %21 : vector<16x16xi1>, vector<16x16xf32>
    %cst_12 = arith.constant 0.000000e+00 : f32
    %23 = vector.broadcast %cst_12 : f32 to vector<16x16xf32>
    %24 = arith.cmpf ogt, %6, %23 : vector<16x16xf32>
    %cst_13 = arith.constant -1.000000e+30 : f32
    %25 = vector.broadcast %cst_13 : f32 to vector<16x16xf32>
    %26 = arith.select %24, %22, %25 : vector<16x16xi1>, vector<16x16xf32>
    %cst_14 = arith.constant dense<0xFF800000> : vector<16xf32>
    %27 = vector.multi_reduction <maximumf>, %26, %cst_14 [1] : vector<16x16xf32> to vector<16xf32>
    %28 = vector.shape_cast %27 : vector<16xf32> to vector<16x1xf32>
    %29 = vector.broadcast %28 : vector<16x1xf32> to vector<16x16xf32>
    %30 = arith.subf %26, %29 : vector<16x16xf32>
    %31 = math.exp %30 : vector<16x16xf32>
    %cst_15 = arith.constant dense<0.000000e+00> : vector<16xf32>
    %32 = vector.multi_reduction <add>, %31, %cst_15 [1] : vector<16x16xf32> to vector<16xf32>
    %33 = vector.shape_cast %32 : vector<16xf32> to vector<16x1xf32>
    %34 = vector.broadcast %33 : vector<16x1xf32> to vector<16x16xf32>
    %35 = arith.divf %31, %34 : vector<16x16xf32>
    %cst_16 = arith.constant dense<0.000000e+00> : vector<16x896xf32>
    %36 = tpu.matmul %35, %3, %cst_16 {dimension_numbers = #tpu.dot_dimension_numbers<[1], [0], [0], [1], [0, 0, 1, 1], [], []>} : vector<16x16xf32>, vector<16x896xf32>, vector<16x896xf32> -> vector<16x896xf32>
    %37 = vector.broadcast %8 : vector<1x896xf32> to vector<16x896xf32>
    %38 = arith.addf %36, %37 : vector<16x896xf32>
    %39 = math.tanh %38 : vector<16x896xf32>
    %cst_17 = arith.constant dense<0.000000e+00> : vector<896xf32>
    %40 = vector.multi_reduction <add>, %39, %cst_17 [0] : vector<16x896xf32> to vector<896xf32>
    %41 = vector.shape_cast %40 : vector<896xf32> to vector<1x896xf32>
    %cst_18 = arith.constant 1.600000e+01 : f32
    %42 = vector.broadcast %cst_18 : f32 to vector<1x896xf32>
    %43 = arith.divf %41, %42 : vector<1x896xf32>
    %44 = vector.broadcast %43 : vector<1x896xf32> to vector<16x896xf32>
    %45 = arith.subf %39, %44 : vector<16x896xf32>
    %46 = arith.mulf %45, %45 : vector<16x896xf32>
    %cst_19 = arith.constant dense<0.000000e+00> : vector<896xf32>
    %47 = vector.multi_reduction <add>, %46, %cst_19 [0] : vector<16x896xf32> to vector<896xf32>
    %48 = vector.shape_cast %47 : vector<896xf32> to vector<1x896xf32>
    %cst_20 = arith.constant 1.600000e+01 : f32
    %49 = vector.broadcast %cst_20 : f32 to vector<1x896xf32>
    %50 = arith.divf %48, %49 : vector<1x896xf32>
    %51 = vector.broadcast %43 : vector<1x896xf32> to vector<16x896xf32>
    %52 = arith.subf %39, %51 : vector<16x896xf32>
    %cst_21 = arith.constant 9.99999974E-6 : f32
    %53 = vector.broadcast %cst_21 : f32 to vector<1x896xf32>
    %54 = arith.addf %50, %53 : vector<1x896xf32>
    %55 = math.rsqrt %54 : vector<1x896xf32>
    %56 = vector.broadcast %55 : vector<1x896xf32> to vector<16x896xf32>
    %57 = arith.mulf %52, %56 : vector<16x896xf32>
    %58 = vector.broadcast %9 : vector<1x896xf32> to vector<16x896xf32>
    %59 = arith.mulf %57, %58 : vector<16x896xf32>
    %60 = vector.broadcast %10 : vector<1x896xf32> to vector<16x896xf32>
    %61 = arith.addf %59, %60 : vector<16x896xf32>
    %62 = arith.truncf %61 : vector<16x896xf32> to vector<16x896xbf16>
    %c0_22 = arith.constant 0 : index
    %c0_23 = arith.constant 0 : index
    %63 = vector.load %arg5[%c0_22, %c0_23] : memref<16x896xbf16, #tpu.memory_space<vmem>>, vector<16x896xbf16>
    tpu.vector_store %arg5[%c0_22, %c0_23], %62 {strides = array<i32>} : memref<16x896xbf16, #tpu.memory_space<vmem>>, vector<16x896xbf16>,
    return
  }
  func.func @transform_0(%arg0: i32) -> (i32, i32) {
    %c0_i32 = arith.constant 0 : i32
    %c0_i32_0 = arith.constant 0 : i32
    %c0_i32_1 = arith.constant 0 : i32
    return %c0_i32, %c0_i32_0 : i32, i32
  }
  func.func @transform_1(%arg0: i32) -> (i32, i32, i32) {
    %c0_i32 = arith.constant 0 : i32
    %c0_i32_0 = arith.constant 0 : i32
    %c0_i32_1 = arith.constant 0 : i32
    return %arg0, %c0_i32, %c0_i32_0 : i32, i32, i32
  }
  func.func @transform_2(%arg0: i32) -> (i32, i32, i32) {
    %c0_i32 = arith.constant 0 : i32
    %c0_i32_0 = arith.constant 0 : i32
    %c0_i32_1 = arith.constant 0 : i32
    return %arg0, %c0_i32, %c0_i32_0 : i32, i32, i32
  }
  func.func @transform_3(%arg0: i32) -> (i32, i32) {
    %c0_i32 = arith.constant 0 : i32
    %c0_i32_0 = arith.constant 0 : i32
    %c0_i32_1 = arith.constant 0 : i32
    return %c0_i32, %c0_i32_0 : i32, i32
  }
  func.func @transform_4(%arg0: i32) -> (i32, i32) {
    %c0_i32 = arith.constant 0 : i32
    %c0_i32_0 = arith.constant 0 : i32
    return %c0_i32, %arg0 : i32, i32
  }
}

</mosaic_0001>

<llo_original>
// kernel: tpu_custom_call.1
$region0: #{tpu_custom_call.1}
  #allocation0 [shape = 'u32[]', space=smem, size = 0x4, offset = 0x4, fixed_abs, tag = 'smem constant byte address 0x4 - core index']
  #allocation1 [shape = 'u32[144,128]{1,0:T(1,128)}', space=vmem, size = 0x12000, scoped, tag = 'internal scratch']
  %s0 = inlined_call_operand.hbm [shape: bf16[16,896], index: 0, kind: input, shape index: {}]
  %s1 = inlined_call_operand.hbm [shape: bf16[3,896,896], index: 1, kind: input, shape index: {}]
  %s2 = inlined_call_operand.hbm [shape: f32[3,8,896], index: 2, kind: input, shape index: {}]
  %s3 = inlined_call_operand.hbm [shape: f32[16,16], index: 3, kind: input, shape index: {}]
  %s4 = inlined_call_operand.hbm [shape: bf16[16,2688], index: 4, kind: output, shape index: {}]
  %s5 = sld [smem:[#allocation0]]
  $region65: #{tpu_custom_call.1} parent=0
    _
  %s7 = ssub.s32 1, %s5
  %s8 = scalar_select 0, %s7, %s5
  $region1: #{tpu_custom_call.1} parent=0
    #allocation2 [shape = 'u8[28672]{0}', space=vmem, size = 0x7000, scoped, tag = 'input window, operand 0, single buffered']
    #allocation3 [shape = 's32[2]{0}', space=sflag, size = 0x8, scoped, tag = 'scoped memory for tpu_custom_call.1']
    #allocation4 [shape = 's32[2]{0}', space=sflag, size = 0x8, scoped, tag = 'scoped memory for tpu_custom_call.1']
    #allocation5 [shape = 'u8[3211264]{0}', space=vmem, size = 0x310000, scoped, tag = 'input window, operand 1']
    #allocation6 [shape = 's32[2]{0}', space=sflag, size = 0x8, scoped, tag = 'scoped memory for tpu_custom_call.1']
    #allocation7 [shape = 'u8[57344]{0}', space=vmem, size = 0xe000, scoped, tag = 'input window, operand 2']
    #allocation8 [shape = 'u8[8192]{0}', space=vmem, size = 0x2000, scoped, tag = 'input window, operand 3, single buffered']
    #allocation9 [shape = 's32[1]{0}', space=sflag, size = 0x4, scoped, tag = 'scoped memory for tpu_custom_call.1']
    #allocation10 [shape = 'u8[57344]{0}', space=vmem, size = 0xe000, scoped, tag = 'output window, operand 0']
    %9 = vsyncpa [#allocation3], 0
    %10 = vsyncpa [#allocation6], 0
    %s11 = scalar_lea.sflag [#allocation6], 1
    %12 = vsyncpa %s11, 0
    %13 = vsyncpa [#allocation9], 0
    %14 = vsyncpa [#allocation4], 0
    %s15 = scalar_lea.sflag [#allocation4], 1
    %16 = vsyncpa %s15, 0
    loop: start=0, step=1, limit=5
    $region2: #{tpu_custom_call.1} parent=1 // loop_pre_header
      _
    $region3: #{tpu_custom_call.1} parent=1 // loop_header
      %s18 = sphi 0, %s22
      %p19 = scmp.ge.s32.totalorder %s18, 5
      %s26 = sphi 0, %s26
      %s28 = sphi 0, %s26
      %s29 = sphi 0, %s28
      %s43 = sphi 0, %s29
      %s49 = sphi 0, %s51
      %s52 = sphi 0, %s49
      %s53 = sphi 0, %s52
      %s69 = sphi 0, %s53
      %s75 = sphi 0, %s77
      %s78 = sphi 0, %s75
      %s79 = sphi 0, %s78
      %s95 = sphi 0, %s79
      %s99 = sphi 0, %s99
      %s101 = sphi 0, %s99
      %s102 = sphi 0, %s101
      %s116 = sphi 0, %s102
      %s122 = sphi 0, %s124
      %s125 = sphi 0, %s122
      %s126 = sphi 0, %s125
      %s142 = sphi 0, %s126
    $region4: #{tpu_custom_call.1} parent=1 // loop_header_branch
      %21 = sbr.rel (%p19) target = $region8
    $region5: #{tpu_custom_call.1} parent=1 // loop_body
      %s23 = ssub.s32 %s18, 1
      %s24 = ssub.s32 %s18, 2
      %s25 = sadd.s32 %s18, 1
      %s27 = sadd.s32 %s26, 1
      %p30 = scmp.eq.s32.totalorder %s18, 2
      %p31 = scmp.ne.s32.totalorder %s26, %s28
      %p32 = scmp.eq.s32.totalorder %s18, 0
      %p33 = por %p31, %p32
      %p34 = scmp.ne.s32.totalorder %s26, %s28
      %p35 = scmp.eq.s32.totalorder %s23, 2
      %p36 = por %p34, %p35
      %p37 = scmp.ne.s32.totalorder %s28, %s29
      %p38 = scmp.eq.s32.totalorder %s23, 0
      %p39 = por %p37, %p38
      %p40 = scmp.ne.s32.totalorder %s28, %s29
      %p41 = scmp.eq.s32.totalorder %s24, 2
      %p42 = por %p40, %p41
      %p44 = scmp.ne.s32.totalorder %s29, %s43
      %p45 = scmp.eq.s32.totalorder %s24, 0
      %p46 = por %p44, %p45
      %s47 = ssub.s32 %s18, %s25
      %p48 = scmp.eq.s32.totalorder %s47, 0
      %s50 = sadd.s32 %s49, 1
      %s51 = scalar_select %p48, %s49, %s50
      %p54 = pneg %p48
      %p55 = scmp.eq.s32.totalorder %s18, 2
      %p56 = por %p54, %p55
      %p57 = scmp.ne.s32.totalorder %s49, %s52
      %p58 = scmp.eq.s32.totalorder %s18, 0
      %p59 = por %p57, %p58
      %p60 = scmp.ne.s32.totalorder %s49, %s52
      %p61 = scmp.eq.s32.totalorder %s23, 2
      %p62 = por %p60, %p61
      %p63 = scmp.ne.s32.totalorder %s52, %s53
      %p64 = scmp.eq.s32.totalorder %s23, 0
      %p65 = por %p63, %p64
      %p66 = scmp.ne.s32.totalorder %s52, %s53
      %p67 = scmp.eq.s32.totalorder %s24, 2
      %p68 = por %p66, %p67
      %p70 = scmp.ne.s32.totalorder %s53, %s69
      %p71 = scmp.eq.s32.totalorder %s24, 0
      %p72 = por %p70, %p71
      %s73 = ssub.s32 %s18, %s25
      %p74 = scmp.eq.s32.totalorder %s73, 0
      %s76 = sadd.s32 %s75, 1
      %s77 = scalar_select %p74, %s75, %s76
      %p80 = pneg %p74
      %p81 = scmp.eq.s32.totalorder %s18, 2
      %p82 = por %p80, %p81
      %p83 = scmp.ne.s32.totalorder %s75, %s78
      %p84 = scmp.eq.s32.totalorder %s18, 0
      %p85 = por %p83, %p84
      %p86 = scmp.ne.s32.totalorder %s75, %s78
      %p87 = scmp.eq.s32.totalorder %s23, 2
      %p88 = por %p86, %p87
      %p89 = scmp.ne.s32.totalorder %s78, %s79
      %p90 = scmp.eq.s32.totalorder %s23, 0
      %p91 = por %p89, %p90
      %p92 = scmp.ne.s32.totalorder %s78, %s79
      %p93 = scmp.eq.s32.totalorder %s24, 2
      %p94 = por %p92, %p93
      %p96 = scmp.ne.s32.totalorder %s79, %s95
      %p97 = scmp.eq.s32.totalorder %s24, 0
      %p98 = por %p96, %p97
      %s100 = sadd.s32 %s99, 1
      %p103 = scmp.eq.s32.totalorder %s18, 2
      %p104 = scmp.ne.s32.totalorder %s99, %s101
      %p105 = scmp.eq.s32.totalorder %s18, 0
      %p106 = por %p104, %p105
      %p107 = scmp.ne.s32.totalorder %s99, %s101
      %p108 = scmp.eq.s32.totalorder %s23, 2
      %p109 = por %p107, %p108
      %p110 = scmp.ne.s32.totalorder %s101, %s102
      %p111 = scmp.eq.s32.totalorder %s23, 0
      %p112 = por %p110, %p111
      %p113 = scmp.ne.s32.totalorder %s101, %s102
      %p114 = scmp.eq.s32.totalorder %s24, 2
      %p115 = por %p113, %p114
      %p117 = scmp.ne.s32.totalorder %s102, %s116
      %p118 = scmp.eq.s32.totalorder %s24, 0
      %p119 = por %p117, %p118
      %s120 = ssub.s32 %s18, %s25
      %p121 = scmp.eq.s32.totalorder %s120, 0
      %s123 = sadd.s32 %s122, 1
      %s124 = scalar_select %p121, %s122, %s123
      %p127 = pneg %p121
      %p128 = scmp.eq.s32.totalorder %s18, 2
      %p129 = por %p127, %p128
      %p130 = scmp.ne.s32.totalorder %s122, %s125
      %p131 = scmp.eq.s32.totalorder %s18, 0
      %p132 = por %p130, %p131
      %p133 = scmp.ne.s32.totalorder %s122, %s125
      %p134 = scmp.eq.s32.totalorder %s23, 2
      %p135 = por %p133, %p134
      %p136 = scmp.ne.s32.totalorder %s125, %s126
      %p137 = scmp.eq.s32.totalorder %s23, 0
      %p138 = por %p136, %p137
      %p139 = scmp.ne.s32.totalorder %s125, %s126
      %p140 = scmp.eq.s32.totalorder %s24, 2
      %p141 = por %p139, %p140
      %p143 = scmp.ne.s32.totalorder %s126, %s142
      %p144 = scmp.eq.s32.totalorder %s24, 0
      %p145 = por %p143, %p144
      %p146 = scmp.le.s32.totalorder 1, %s18
      %p147 = scmp.lt.s32.totalorder %s18, 4
      %p148 = pnand %p146, %p147
      %p149 = pneg %p148
      // Predicated region
      $region9: #{tpu_custom_call.1} parent=5 // pred_check
        _
      $region10: #{tpu_custom_call.1} parent=5 // pred_check_branch
        %151 = sbr.rel (%p148) target = $region12
      $region11: #{tpu_custom_call.1} parent=5 // pred_region
        %s152 = ssub.s32 %s18, 1
        // Predicated region
        $region13: #{tpu_custom_call.1} parent=11 // pred_check
          %p153 = pneg %p39
        $region14: #{tpu_custom_call.1} parent=11 // pred_check_branch
          %155 = sbr.rel (%p153) target = $region16
        $region15: #{tpu_custom_call.1} parent=11 // pred_region
          %s157 = ssub.s32 896, 896
          %158 = vsyncadd [#allocation3], %s157
          %s159 = sshll.u32 [#allocation2], 4
          %s160 = int_to_ptr.vmem [resolvable:$true] %s159
          %165 = dma.hbm_to_vmem [thread:$0]  %s0, 896, %s160, [#allocation3], 448, 448, 28
        $region16: #{tpu_custom_call.1} parent=11 // pred_fallthru
          _
        // Predicated region
        $region17: #{tpu_custom_call.1} parent=11 // pred_check
          %p166 = pneg %p112
        $region18: #{tpu_custom_call.1} parent=11 // pred_check_branch
          %168 = sbr.rel (%p166) target = $region20
        $region19: #{tpu_custom_call.1} parent=11 // pred_region
          %s170 = ssub.s32 256, 256
          %171 = vsyncadd [#allocation9], %s170
          %s172 = sshll.u32 [#allocation8], 4
          %s173 = int_to_ptr.vmem [resolvable:$true] %s172
          %178 = dma.hbm_to_vmem [thread:$0]  %s3, 256, %s173, [#allocation9], 128, 128, 8
        $region20: #{tpu_custom_call.1} parent=11 // pred_fallthru
          _
      $region12: #{tpu_custom_call.1} parent=5 // pred_fallthru
        _
      %p179 = scmp.lt.s32.totalorder %s18, 3
      // Predicated region
      $region21: #{tpu_custom_call.1} parent=5 // pred_check
        %p180 = pneg %p179
      $region22: #{tpu_custom_call.1} parent=5 // pred_check_branch
        %182 = sbr.rel (%p180) target = $region24
      $region23: #{tpu_custom_call.1} parent=5 // pred_region
        // Predicated region
        $region25: #{tpu_custom_call.1} parent=23 // pred_check
          %p183 = pneg %p59
        $region26: #{tpu_custom_call.1} parent=23 // pred_check_branch
          %185 = sbr.rel (%p183) target = $region28
        $region27: #{tpu_custom_call.1} parent=23 // pred_region
          %s186 = sand.u32 %s18, 1
          %s187 = scalar_lea.sflag [#allocation6], %s186
          %s188 = sand.u32 %s49, 1
          %s189 = smul.addr %s188, 3136
          %s190 = scalar_lea.vmem [#allocation5], %s189
          %s192 = ssub.s32 50176, 50176
          %193 = vsyncadd %s187, %s192
          %s194 = smul.addr %s18, 784
          %s195 = smul.addr %s194, 64
          %s196 = scalar_lea.hbm %s1, %s195
          %s197 = sshll.u32 %s190, 4
          %s198 = int_to_ptr.vmem [resolvable:$true] %s197
          %203 = dma.hbm_to_vmem [thread:$0]  %s196, 50176, %s198, %s187, 448, 448, 28
        $region28: #{tpu_custom_call.1} parent=23 // pred_fallthru
          _
        // Predicated region
        $region29: #{tpu_custom_call.1} parent=23 // pred_check
          %p204 = pneg %p85
        $region30: #{tpu_custom_call.1} parent=23 // pred_check_branch
          %206 = sbr.rel (%p204) target = $region32
        $region31: #{tpu_custom_call.1} parent=23 // pred_region
          %s207 = sand.u32 %s18, 1
          %s208 = scalar_lea.sflag [#allocation6], %s207
          %s209 = sand.u32 %s75, 1
          %s210 = smul.addr %s209, 56
          %s211 = scalar_lea.vmem [#allocation7], %s210
          %s213 = ssub.s32 896, 896
          %214 = vsyncadd %s208, %s213
          %s215 = smul.addr %s18, 7
          %s216 = smul.addr %s215, 128
          %s217 = scalar_lea.hbm %s2, %s216
          %s219 = sshll.u32 %s211, 4
          %s220 = int_to_ptr.vmem [resolvable:$true] %s219
          %222 = dma.hbm_to_vmem [thread:$0]  %s217, 896, %s220, %s208
        $region32: #{tpu_custom_call.1} parent=23 // pred_fallthru
          _
      $region24: #{tpu_custom_call.1} parent=5 // pred_fallthru
        _
      %p223 = scmp.le.s32.totalorder 1, %s18
      %p224 = scmp.lt.s32.totalorder %s18, 4
      %p225 = pnand %p223, %p224
      %p226 = pneg %p225
      // Predicated region
      $region33: #{tpu_custom_call.1} parent=5 // pred_check
        _
      $region34: #{tpu_custom_call.1} parent=5 // pred_check_branch
        %228 = sbr.rel (%p225) target = $region36
      $region35: #{tpu_custom_call.1} parent=5 // pred_region
        %s229 = ssub.s32 %s18, 1
        // Predicated region
        $region37: #{tpu_custom_call.1} parent=35 // pred_check
          %p230 = pneg %p39
        $region38: #{tpu_custom_call.1} parent=35 // pred_check_branch
          %232 = sbr.rel (%p230) target = $region40
        $region39: #{tpu_custom_call.1} parent=35 // pred_region
          %233 = dma.done [#allocation3], 896
        $region40: #{tpu_custom_call.1} parent=35 // pred_fallthru
          _
        %s234 = sand.u32 %s23, 1
        %s235 = scalar_lea.sflag [#allocation6], %s234
        %s236 = sand.u32 %s52, 1
        %s237 = smul.addr %s236, 3136
        %s238 = scalar_lea.vmem [#allocation5], %s237
        // Predicated region
        $region41: #{tpu_custom_call.1} parent=35 // pred_check
          %p239 = pneg %p65
        $region42: #{tpu_custom_call.1} parent=35 // pred_check_branch
          %241 = sbr.rel (%p239) target = $region44
        $region43: #{tpu_custom_call.1} parent=35 // pred_region
          %242 = dma.done %s235, 50176
        $region44: #{tpu_custom_call.1} parent=35 // pred_fallthru
          _
        %s243 = sand.u32 %s23, 1
        %s244 = scalar_lea.sflag [#allocation6], %s243
        %s245 = sand.u32 %s78, 1
        %s246 = smul.addr %s245, 56
        %s247 = scalar_lea.vmem [#allocation7], %s246
        // Predicated region
        $region45: #{tpu_custom_call.1} parent=35 // pred_check
          %p248 = pneg %p91
        $region46: #{tpu_custom_call.1} parent=35 // pred_check_branch
          %250 = sbr.rel (%p248) target = $region48
        $region47: #{tpu_custom_call.1} parent=35 // pred_region
          %251 = dma.done %s244, 896
        $region48: #{tpu_custom_call.1} parent=35 // pred_fallthru
          _
        // Predicated region
        $region49: #{tpu_custom_call.1} parent=35 // pred_check
          %p252 = pneg %p112
        $region50: #{tpu_custom_call.1} parent=35 // pred_check_branch
          %254 = sbr.rel (%p252) target = $region52
        $region51: #{tpu_custom_call.1} parent=35 // pred_region
          %255 = dma.done [#allocation9], 256
        $region52: #{tpu_custom_call.1} parent=35 // pred_fallthru
          _
        %p256 = pneg %p39
        %p257 = pneg %p36
        %s258 = sand.u32 %s23, 1
        %s259 = scalar_lea.sflag [#allocation6], %s258
        %s260 = sand.u32 %s52, 1
        %s261 = smul.addr %s260, 3136
        %s262 = scalar_lea.vmem [#allocation5], %s261
        %p263 = pneg %p65
        %p264 = pneg %p62
        %s265 = sand.u32 %s23, 1
        %s266 = scalar_lea.sflag [#allocation6], %s265
        %s267 = sand.u32 %s78, 1
        %s268 = smul.addr %s267, 56
        %s269 = scalar_lea.vmem [#allocation7], %s268
        %p270 = pneg %p91
        %p271 = pneg %p88
        %p272 = pneg %p112
        %p273 = pneg %p109
        %p274 = pneg %p138
        %p275 = pneg %p135
        %s276 = sand.u32 %s125, 1
        %s277 = scalar_lea.sflag [#allocation4], %s276
        %s278 = sand.u32 %s125, 1
        %s279 = smul.addr %s278, 56
        %s280 = scalar_lea.vmem [#allocation10], %s279
        %s281 = smul.u32 7, %s23
        %v283 = vld [vmem:[#allocation2] sm:$0xff]
        %v284 = vld [vmem:[#allocation2 + $0x8] sm:$0xff]
        %v285 = vld [vmem:[#allocation2 + $0x10] sm:$0xff]
        %v286 = vld [vmem:[#allocation2 + $0x18] sm:$0xf]
        %v287 = vld [vmem:[#allocation2 + $0x1c] sm:$0xff]
        %v288 = vld [vmem:[#allocation2 + $0x24] sm:$0xff]
        %v289 = vld [vmem:[#allocation2 + $0x2c] sm:$0xff]
        %v290 = vld [vmem:[#allocation2 + $0x34] sm:$0xf]
        %v291 = vld [vmem:[%s238] sm:$0xff]
        %v292 = vld [vmem:[%s238 + $0x8] sm:$0xff]
        %v293 = vld [vmem:[%s238 + $0x10] sm:$0xff]
        %v294 = vld [vmem:[%s238 + $0x18] sm:$0xf]
        %v295 = vld [vmem:[%s238 + $0x1c] sm:$0xff]
        %v296 = vld [vmem:[%s238 + $0x24] sm:$0xff]
        %v297 = vld [vmem:[%s238 + $0x2c] sm:$0xff]
        %v298 = vld [vmem:[%s238 + $0x34] sm:$0xf]
        %v299 = vld [vmem:[%s238 + $0x38] sm:$0xff]
        %v300 = vld [vmem:[%s238 + $0x40] sm:$0xff]
        %v301 = vld [vmem:[%s238 + $0x48] sm:$0xff]
        %v302 = vld [vmem:[%s238 + $0x50] sm:$0xf]
        %v303 = vld [vmem:[%s238 + $0x54] sm:$0xff]
        %v304 = vld [vmem:[%s238 + $0x5c] sm:$0xff]
        %v305 = vld [vmem:[%s238 + $0x64] sm:$0xff]
        %v306 = vld [vmem:[%s238 + $0x6c] sm:$0xf]
        %v307 = vld [vmem:[%s238 + $0x70] sm:$0xff]
        %v308 = vld [vmem:[%s238 + $0x78] sm:$0xff]
        %v309 = vld [vmem:[%s238 + $0x80] sm:$0xff]
        %v310 = vld [vmem:[%s238 + $0x88] sm:$0xf]
        %v311 = vld [vmem:[%s238 + $0x8c] sm:$0xff]
        %v312 = vld [vmem:[%s238 + $0x94] sm:$0xff]
        %v313 = vld [vmem:[%s238 + $0x9c] sm:$0xff]
        %v314 = vld [vmem:[%s238 + $0xa4] sm:$0xf]
        %v315 = vld [vmem:[%s238 + $0xa8] sm:$0xff]
        %v316 = vld [vmem:[%s238 + $0xb0] sm:$0xff]
        %v317 = vld [vmem:[%s238 + $0xb8] sm:$0xff]
        %v318 = vld [vmem:[%s238 + $0xc0] sm:$0xf]
        %v319 = vld [vmem:[%s238 + $0xc4] sm:$0xff]
        %v320 = vld [vmem:[%s238 + $0xcc] sm:$0xff]
        %v321 = vld [vmem:[%s238 + $0xd4] sm:$0xff]
        %v322 = vld [vmem:[%s238 + $0xdc] sm:$0xf]
        %v323 = vld [vmem:[%s238 + $0xe0] sm:$0xff]
        %v324 = vld [vmem:[%s238 + $0xe8] sm:$0xff]
        %v325 = vld [vmem:[%s238 + $0xf0] sm:$0xff]
        %v326 = vld [vmem:[%s238 + $0xf8] sm:$0xf]
        %v327 = vld [vmem:[%s238 + $0xfc] sm:$0xff]
        %v328 = vld [vmem:[%s238 + $0x104] sm:$0xff]
        %v329 = vld [vmem:[%s238 + $0x10c] sm:$0xff]
        %v330 = vld [vmem:[%s238 + $0x114] sm:$0xf]
        %v331 = vld [vmem:[%s238 + $0x118] sm:$0xff]
        %v332 = vld [vmem:[%s238 + $0x120] sm:$0xff]
        %v333 = vld [vmem:[%s238 + $0x128] sm:$0xff]
        %v334 = vld [vmem:[%s238 + $0x130] sm:$0xf]
        %v335 = vld [vmem:[%s238 + $0x134] sm:$0xff]
        %v336 = vld [vmem:[%s238 + $0x13c] sm:$0xff]
        %v337 = vld [vmem:[%s238 + $0x144] sm:$0xff]
        %v338 = vld [vmem:[%s238 + $0x14c] sm:$0xf]
        %v339 = vld [vmem:[%s238 + $0x150] sm:$0xff]
        %v340 = vld [vmem:[%s238 + $0x158] sm:$0xff]
        %v341 = vld [vmem:[%s238 + $0x160] sm:$0xff]
        %v342 = vld [vmem:[%s238 + $0x168] sm:$0xf]
        %v343 = vld [vmem:[%s238 + $0x16c] sm:$0xff]
        %v344 = vld [vmem:[%s238 + $0x174] sm:$0xff]
        %v345 = vld [vmem:[%s238 + $0x17c] sm:$0xff]
        %v346 = vld [vmem:[%s238 + $0x184] sm:$0xf]
        %v347 = vld [vmem:[%s238 + $0x188] sm:$0xff]
        %v348 = vld [vmem:[%s238 + $0x190] sm:$0xff]
        %v349 = vld [vmem:[%s238 + $0x198] sm:$0xff]
        %v350 = vld [vmem:[%s238 + $0x1a0] sm:$0xf]
        %v351 = vld [vmem:[%s238 + $0x1a4] sm:$0xff]
        %v352 = vld [vmem:[%s238 + $0x1ac] sm:$0xff]
        %v353 = vld [vmem:[%s238 + $0x1b4] sm:$0xff]
        %v354 = vld [vmem:[%s238 + $0x1bc] sm:$0xf]
        %v355 = vld [vmem:[%s238 + $0x1c0] sm:$0xff]
        %v356 = vld [vmem:[%s238 + $0x1c8] sm:$0xff]
        %v357 = vld [vmem:[%s238 + $0x1d0] sm:$0xff]
        %v358 = vld [vmem:[%s238 + $0x1d8] sm:$0xf]
        %v359 = vld [vmem:[%s238 + $0x1dc] sm:$0xff]
        %v360 = vld [vmem:[%s238 + $0x1e4] sm:$0xff]
        %v361 = vld [vmem:[%s238 + $0x1ec] sm:$0xff]
        %v362 = vld [vmem:[%s238 + $0x1f4] sm:$0xf]
        %v363 = vld [vmem:[%s238 + $0x1f8] sm:$0xff]
        %v364 = vld [vmem:[%s238 + $0x200] sm:$0xff]
        %v365 = vld [vmem:[%s238 + $0x208] sm:$0xff]
        %v366 = vld [vmem:[%s238 + $0x210] sm:$0xf]
        %v367 = vld [vmem:[%s238 + $0x214] sm:$0xff]
        %v368 = vld [vmem:[%s238 + $0x21c] sm:$0xff]
        %v369 = vld [vmem:[%s238 + $0x224] sm:$0xff]
        %v370 = vld [vmem:[%s238 + $0x22c] sm:$0xf]
        %v371 = vld [vmem:[%s238 + $0x230] sm:$0xff]
        %v372 = vld [vmem:[%s238 + $0x238] sm:$0xff]
        %v373 = vld [vmem:[%s238 + $0x240] sm:$0xff]
        %v374 = vld [vmem:[%s238 + $0x248] sm:$0xf]
        %v375 = vld [vmem:[%s238 + $0x24c] sm:$0xff]
        %v376 = vld [vmem:[%s238 + $0x254] sm:$0xff]
        %v377 = vld [vmem:[%s238 + $0x25c] sm:$0xff]
        %v378 = vld [vmem:[%s238 + $0x264] sm:$0xf]
        %v379 = vld [vmem:[%s238 + $0x268] sm:$0xff]
        %v380 = vld [vmem:[%s238 + $0x270] sm:$0xff]
        %v381 = vld [vmem:[%s238 + $0x278] sm:$0xff]
        %v382 = vld [vmem:[%s238 + $0x280] sm:$0xf]
        %v383 = vld [vmem:[%s238 + $0x284] sm:$0xff]
        %v384 = vld [vmem:[%s238 + $0x28c] sm:$0xff]
        %v385 = vld [vmem:[%s238 + $0x294] sm:$0xff]
        %v386 = vld [vmem:[%s238 + $0x29c] sm:$0xf]
        %v387 = vld [vmem:[%s238 + $0x2a0] sm:$0xff]
        %v388 = vld [vmem:[%s238 + $0x2a8] sm:$0xff]
        %v389 = vld [vmem:[%s238 + $0x2b0] sm:$0xff]
        %v390 = vld [vmem:[%s238 + $0x2b8] sm:$0xf]
        %v391 = vld [vmem:[%s238 + $0x2bc] sm:$0xff]
        %v392 = vld [vmem:[%s238 + $0x2c4] sm:$0xff]
        %v393 = vld [vmem:[%s238 + $0x2cc] sm:$0xff]
        %v394 = vld [vmem:[%s238 + $0x2d4] sm:$0xf]
        %v395 = vld [vmem:[%s238 + $0x2d8] sm:$0xff]
        %v396 = vld [vmem:[%s238 + $0x2e0] sm:$0xff]
        %v397 = vld [vmem:[%s238 + $0x2e8] sm:$0xff]
        %v398 = vld [vmem:[%s238 + $0x2f0] sm:$0xf]
        %v399 = vld [vmem:[%s238 + $0x2f4] sm:$0xff]
        %v400 = vld [vmem:[%s238 + $0x2fc] sm:$0xff]
        %v401 = vld [vmem:[%s238 + $0x304] sm:$0xff]
        %v402 = vld [vmem:[%s238 + $0x30c] sm:$0xf]
        %v403 = vld [vmem:[%s238 + $0x310] sm:$0xff]
        %v404 = vld [vmem:[%s238 + $0x318] sm:$0xff]
        %v405 = vld [vmem:[%s238 + $0x320] sm:$0xff]
        %v406 = vld [vmem:[%s238 + $0x328] sm:$0xf]
        %v407 = vld [vmem:[%s238 + $0x32c] sm:$0xff]
        %v408 = vld [vmem:[%s238 + $0x334] sm:$0xff]
        %v409 = vld [vmem:[%s238 + $0x33c] sm:$0xff]
        %v410 = vld [vmem:[%s238 + $0x344] sm:$0xf]
        %v411 = vld [vmem:[%s238 + $0x348] sm:$0xff]
        %v412 = vld [vmem:[%s238 + $0x350] sm:$0xff]
        %v413 = vld [vmem:[%s238 + $0x358] sm:$0xff]
        %v414 = vld [vmem:[%s238 + $0x360] sm:$0xf]
        %v415 = vld [vmem:[%s238 + $0x364] sm:$0xff]
        %v416 = vld [vmem:[%s238 + $0x36c] sm:$0xff]
        %v417 = vld [vmem:[%s238 + $0x374] sm:$0xff]
        %v418 = vld [vmem:[%s238 + $0x37c] sm:$0xf]
        %v419 = vld [vmem:[%s238 + $0x380] sm:$0xff]
        %v420 = vld [vmem:[%s238 + $0x388] sm:$0xff]
        %v421 = vld [vmem:[%s238 + $0x390] sm:$0xff]
        %v422 = vld [vmem:[%s238 + $0x398] sm:$0xf]
        %v423 = vld [vmem:[%s238 + $0x39c] sm:$0xff]
        %v424 = vld [vmem:[%s238 + $0x3a4] sm:$0xff]
        %v425 = vld [vmem:[%s238 + $0x3ac] sm:$0xff]
        %v426 = vld [vmem:[%s238 + $0x3b4] sm:$0xf]
        %v427 = vld [vmem:[%s238 + $0x3b8] sm:$0xff]
        %v428 = vld [vmem:[%s238 + $0x3c0] sm:$0xff]
        %v429 = vld [vmem:[%s238 + $0x3c8] sm:$0xff]
        %v430 = vld [vmem:[%s238 + $0x3d0] sm:$0xf]
        %v431 = vld [vmem:[%s238 + $0x3d4] sm:$0xff]
        %v432 = vld [vmem:[%s238 + $0x3dc] sm:$0xff]
        %v433 = vld [vmem:[%s238 + $0x3e4] sm:$0xff]
        %v434 = vld [vmem:[%s238 + $0x3ec] sm:$0xf]
        %v435 = vld [vmem:[%s238 + $0x3f0] sm:$0xff]
        %v436 = vld [vmem:[%s238 + $0x3f8] sm:$0xff]
        %v437 = vld [vmem:[%s238 + $0x400] sm:$0xff]
        %v438 = vld [vmem:[%s238 + $0x408] sm:$0xf]
        %v439 = vld [vmem:[%s238 + $0x40c] sm:$0xff]
        %v440 = vld [vmem:[%s238 + $0x414] sm:$0xff]
        %v441 = vld [vmem:[%s238 + $0x41c] sm:$0xff]
        %v442 = vld [vmem:[%s238 + $0x424] sm:$0xf]
        %v443 = vld [vmem:[%s238 + $0x428] sm:$0xff]
        %v444 = vld [vmem:[%s238 + $0x430] sm:$0xff]
        %v445 = vld [vmem:[%s238 + $0x438] sm:$0xff]
        %v446 = vld [vmem:[%s238 + $0x440] sm:$0xf]
        %v447 = vld [vmem:[%s238 + $0x444] sm:$0xff]
        %v448 = vld [vmem:[%s238 + $0x44c] sm:$0xff]
        %v449 = vld [vmem:[%s238 + $0x454] sm:$0xff]
        %v450 = vld [vmem:[%s238 + $0x45c] sm:$0xf]
        %v451 = vld [vmem:[%s238 + $0x460] sm:$0xff]
        %v452 = vld [vmem:[%s238 + $0x468] sm:$0xff]
        %v453 = vld [vmem:[%s238 + $0x470] sm:$0xff]
        %v454 = vld [vmem:[%s238 + $0x478] sm:$0xf]
        %v455 = vld [vmem:[%s238 + $0x47c] sm:$0xff]
        %v456 = vld [vmem:[%s238 + $0x484] sm:$0xff]
        %v457 = vld [vmem:[%s238 + $0x48c] sm:$0xff]
        %v458 = vld [vmem:[%s238 + $0x494] sm:$0xf]
        %v459 = vld [vmem:[%s238 + $0x498] sm:$0xff]
        %v460 = vld [vmem:[%s238 + $0x4a0] sm:$0xff]
        %v461 = vld [vmem:[%s238 + $0x4a8] sm:$0xff]
        %v462 = vld [vmem:[%s238 + $0x4b0] sm:$0xf]
        %v463 = vld [vmem:[%s238 + $0x4b4] sm:$0xff]
        %v464 = vld [vmem:[%s238 + $0x4bc] sm:$0xff]
        %v465 = vld [vmem:[%s238 + $0x4c4] sm:$0xff]
        %v466 = vld [vmem:[%s238 + $0x4cc] sm:$0xf]
        %v467 = vld [vmem:[%s238 + $0x4d0] sm:$0xff]
        %v468 = vld [vmem:[%s238 + $0x4d8] sm:$0xff]
        %v469 = vld [vmem:[%s238 + $0x4e0] sm:$0xff]
        %v470 = vld [vmem:[%s238 + $0x4e8] sm:$0xf]
        %v471 = vld [vmem:[%s238 + $0x4ec] sm:$0xff]
        %v472 = vld [vmem:[%s238 + $0x4f4] sm:$0xff]
        %v473 = vld [vmem:[%s238 + $0x4fc] sm:$0xff]
        %v474 = vld [vmem:[%s238 + $0x504] sm:$0xf]
        %v475 = vld [vmem:[%s238 + $0x508] sm:$0xff]
        %v476 = vld [vmem:[%s238 + $0x510] sm:$0xff]
        %v477 = vld [vmem:[%s238 + $0x518] sm:$0xff]
        %v478 = vld [vmem:[%s238 + $0x520] sm:$0xf]
        %v479 = vld [vmem:[%s238 + $0x524] sm:$0xff]
        %v480 = vld [vmem:[%s238 + $0x52c] sm:$0xff]
        %v481 = vld [vmem:[%s238 + $0x534] sm:$0xff]
        %v482 = vld [vmem:[%s238 + $0x53c] sm:$0xf]
        %v483 = vld [vmem:[%s238 + $0x540] sm:$0xff]
        %v484 = vld [vmem:[%s238 + $0x548] sm:$0xff]
        %v485 = vld [vmem:[%s238 + $0x550] sm:$0xff]
        %v486 = vld [vmem:[%s238 + $0x558] sm:$0xf]
        %v487 = vld [vmem:[%s238 + $0x55c] sm:$0xff]
        %v488 = vld [vmem:[%s238 + $0x564] sm:$0xff]
        %v489 = vld [vmem:[%s238 + $0x56c] sm:$0xff]
        %v490 = vld [vmem:[%s238 + $0x574] sm:$0xf]
        %v491 = vld [vmem:[%s238 + $0x578] sm:$0xff]
        %v492 = vld [vmem:[%s238 + $0x580] sm:$0xff]
        %v493 = vld [vmem:[%s238 + $0x588] sm:$0xff]
        %v494 = vld [vmem:[%s238 + $0x590] sm:$0xf]
        %v495 = vld [vmem:[%s238 + $0x594] sm:$0xff]
        %v496 = vld [vmem:[%s238 + $0x59c] sm:$0xff]
        %v497 = vld [vmem:[%s238 + $0x5a4] sm:$0xff]
        %v498 = vld [vmem:[%s238 + $0x5ac] sm:$0xf]
        %v499 = vld [vmem:[%s238 + $0x5b0] sm:$0xff]
        %v500 = vld [vmem:[%s238 + $0x5b8] sm:$0xff]
        %v501 = vld [vmem:[%s238 + $0x5c0] sm:$0xff]
        %v502 = vld [vmem:[%s238 + $0x5c8] sm:$0xf]
        %v503 = vld [vmem:[%s238 + $0x5cc] sm:$0xff]
        %v504 = vld [vmem:[%s238 + $0x5d4] sm:$0xff]
        %v505 = vld [vmem:[%s238 + $0x5dc] sm:$0xff]
        %v506 = vld [vmem:[%s238 + $0x5e4] sm:$0xf]
        %v507 = vld [vmem:[%s238 + $0x5e8] sm:$0xff]
        %v508 = vld [vmem:[%s238 + $0x5f0] sm:$0xff]
        %v509 = vld [vmem:[%s238 + $0x5f8] sm:$0xff]
        %v510 = vld [vmem:[%s238 + $0x600] sm:$0xf]
        %v511 = vld [vmem:[%s238 + $0x604] sm:$0xff]
        %v512 = vld [vmem:[%s238 + $0x60c] sm:$0xff]
        %v513 = vld [vmem:[%s238 + $0x614] sm:$0xff]
        %v514 = vld [vmem:[%s238 + $0x61c] sm:$0xf]
        %v515 = vld [vmem:[%s238 + $0x620] sm:$0xff]
        %v516 = vld [vmem:[%s238 + $0x628] sm:$0xff]
        %v517 = vld [vmem:[%s238 + $0x630] sm:$0xff]
        %v518 = vld [vmem:[%s238 + $0x638] sm:$0xf]
        %v519 = vld [vmem:[%s238 + $0x63c] sm:$0xff]
        %v520 = vld [vmem:[%s238 + $0x644] sm:$0xff]
        %v521 = vld [vmem:[%s238 + $0x64c] sm:$0xff]
        %v522 = vld [vmem:[%s238 + $0x654] sm:$0xf]
        %v523 = vld [vmem:[%s238 + $0x658] sm:$0xff]
        %v524 = vld [vmem:[%s238 + $0x660] sm:$0xff]
        %v525 = vld [vmem:[%s238 + $0x668] sm:$0xff]
        %v526 = vld [vmem:[%s238 + $0x670] sm:$0xf]
        %v527 = vld [vmem:[%s238 + $0x674] sm:$0xff]
        %v528 = vld [vmem:[%s238 + $0x67c] sm:$0xff]
        %v529 = vld [vmem:[%s238 + $0x684] sm:$0xff]
        %v530 = vld [vmem:[%s238 + $0x68c] sm:$0xf]
        %v531 = vld [vmem:[%s238 + $0x690] sm:$0xff]
        %v532 = vld [vmem:[%s238 + $0x698] sm:$0xff]
        %v533 = vld [vmem:[%s238 + $0x6a0] sm:$0xff]
        %v534 = vld [vmem:[%s238 + $0x6a8] sm:$0xf]
        %v535 = vld [vmem:[%s238 + $0x6ac] sm:$0xff]
        %v536 = vld [vmem:[%s238 + $0x6b4] sm:$0xff]
        %v537 = vld [vmem:[%s238 + $0x6bc] sm:$0xff]
        %v538 = vld [vmem:[%s238 + $0x6c4] sm:$0xf]
        %v539 = vld [vmem:[%s238 + $0x6c8] sm:$0xff]
        %v540 = vld [vmem:[%s238 + $0x6d0] sm:$0xff]
        %v541 = vld [vmem:[%s238 + $0x6d8] sm:$0xff]
        %v542 = vld [vmem:[%s238 + $0x6e0] sm:$0xf]
        %v543 = vld [vmem:[%s238 + $0x6e4] sm:$0xff]
        %v544 = vld [vmem:[%s238 + $0x6ec] sm:$0xff]
        %v545 = vld [vmem:[%s238 + $0x6f4] sm:$0xff]
        %v546 = vld [vmem:[%s238 + $0x6fc] sm:$0xf]
        %v547 = vld [vmem:[%s238 + $0x700] sm:$0xff]
        %v548 = vld [vmem:[%s238 + $0x708] sm:$0xff]
        %v549 = vld [vmem:[%s238 + $0x710] sm:$0xff]
        %v550 = vld [vmem:[%s238 + $0x718] sm:$0xf]
        %v551 = vld [vmem:[%s238 + $0x71c] sm:$0xff]
        %v552 = vld [vmem:[%s238 + $0x724] sm:$0xff]
        %v553 = vld [vmem:[%s238 + $0x72c] sm:$0xff]
        %v554 = vld [vmem:[%s238 + $0x734] sm:$0xf]
        %v555 = vld [vmem:[%s238 + $0x738] sm:$0xff]
        %v556 = vld [vmem:[%s238 + $0x740] sm:$0xff]
        %v557 = vld [vmem:[%s238 + $0x748] sm:$0xff]
        %v558 = vld [vmem:[%s238 + $0x750] sm:$0xf]
        %v559 = vld [vmem:[%s238 + $0x754] sm:$0xff]
        %v560 = vld [vmem:[%s238 + $0x75c] sm:$0xff]
        %v561 = vld [vmem:[%s238 + $0x764] sm:$0xff]
        %v562 = vld [vmem:[%s238 + $0x76c] sm:$0xf]
        %v563 = vld [vmem:[%s238 + $0x770] sm:$0xff]
        %v564 = vld [vmem:[%s238 + $0x778] sm:$0xff]
        %v565 = vld [vmem:[%s238 + $0x780] sm:$0xff]
        %v566 = vld [vmem:[%s238 + $0x788] sm:$0xf]
        %v567 = vld [vmem:[%s238 + $0x78c] sm:$0xff]
        %v568 = vld [vmem:[%s238 + $0x794] sm:$0xff]
        %v569 = vld [vmem:[%s238 + $0x79c] sm:$0xff]
        %v570 = vld [vmem:[%s238 + $0x7a4] sm:$0xf]
        %v571 = vld [vmem:[%s238 + $0x7a8] sm:$0xff]
        %v572 = vld [vmem:[%s238 + $0x7b0] sm:$0xff]
        %v573 = vld [vmem:[%s238 + $0x7b8] sm:$0xff]
        %v574 = vld [vmem:[%s238 + $0x7c0] sm:$0xf]
        %v575 = vld [vmem:[%s238 + $0x7c4] sm:$0xff]
        %v576 = vld [vmem:[%s238 + $0x7cc] sm:$0xff]
        %v577 = vld [vmem:[%s238 + $0x7d4] sm:$0xff]
        %v578 = vld [vmem:[%s238 + $0x7dc] sm:$0xf]
        %v579 = vld [vmem:[%s238 + $0x7e0] sm:$0xff]
        %v580 = vld [vmem:[%s238 + $0x7e8] sm:$0xff]
        %v581 = vld [vmem:[%s238 + $0x7f0] sm:$0xff]
        %v582 = vld [vmem:[%s238 + $0x7f8] sm:$0xf]
        %v583 = vld [vmem:[%s238 + $0x7fc] sm:$0xff]
        %v584 = vld [vmem:[%s238 + $0x804] sm:$0xff]
        %v585 = vld [vmem:[%s238 + $0x80c] sm:$0xff]
        %v586 = vld [vmem:[%s238 + $0x814] sm:$0xf]
        %v587 = vld [vmem:[%s238 + $0x818] sm:$0xff]
        %v588 = vld [vmem:[%s238 + $0x820] sm:$0xff]
        %v589 = vld [vmem:[%s238 + $0x828] sm:$0xff]
        %v590 = vld [vmem:[%s238 + $0x830] sm:$0xf]
        %v591 = vld [vmem:[%s238 + $0x834] sm:$0xff]
        %v592 = vld [vmem:[%s238 + $0x83c] sm:$0xff]
        %v593 = vld [vmem:[%s238 + $0x844] sm:$0xff]
        %v594 = vld [vmem:[%s238 + $0x84c] sm:$0xf]
        %v595 = vld [vmem:[%s238 + $0x850] sm:$0xff]
        %v596 = vld [vmem:[%s238 + $0x858] sm:$0xff]
        %v597 = vld [vmem:[%s238 + $0x860] sm:$0xff]
        %v598 = vld [vmem:[%s238 + $0x868] sm:$0xf]
        %v599 = vld [vmem:[%s238 + $0x86c] sm:$0xff]
        %v600 = vld [vmem:[%s238 + $0x874] sm:$0xff]
        %v601 = vld [vmem:[%s238 + $0x87c] sm:$0xff]
        %v602 = vld [vmem:[%s238 + $0x884] sm:$0xf]
        %v603 = vld [vmem:[%s238 + $0x888] sm:$0xff]
        %v604 = vld [vmem:[%s238 + $0x890] sm:$0xff]
        %v605 = vld [vmem:[%s238 + $0x898] sm:$0xff]
        %v606 = vld [vmem:[%s238 + $0x8a0] sm:$0xf]
        %v607 = vld [vmem:[%s238 + $0x8a4] sm:$0xff]
        %v608 = vld [vmem:[%s238 + $0x8ac] sm:$0xff]
        %v609 = vld [vmem:[%s238 + $0x8b4] sm:$0xff]
        %v610 = vld [vmem:[%s238 + $0x8bc] sm:$0xf]
        %v611 = vld [vmem:[%s238 + $0x8c0] sm:$0xff]
        %v612 = vld [vmem:[%s238 + $0x8c8] sm:$0xff]
        %v613 = vld [vmem:[%s238 + $0x8d0] sm:$0xff]
        %v614 = vld [vmem:[%s238 + $0x8d8] sm:$0xf]
        %v615 = vld [vmem:[%s238 + $0x8dc] sm:$0xff]
        %v616 = vld [vmem:[%s238 + $0x8e4] sm:$0xff]
        %v617 = vld [vmem:[%s238 + $0x8ec] sm:$0xff]
        %v618 = vld [vmem:[%s238 + $0x8f4] sm:$0xf]
        %v619 = vld [vmem:[%s238 + $0x8f8] sm:$0xff]
        %v620 = vld [vmem:[%s238 + $0x900] sm:$0xff]
        %v621 = vld [vmem:[%s238 + $0x908] sm:$0xff]
        %v622 = vld [vmem:[%s238 + $0x910] sm:$0xf]
        %v623 = vld [vmem:[%s238 + $0x914] sm:$0xff]
        %v624 = vld [vmem:[%s238 + $0x91c] sm:$0xff]
        %v625 = vld [vmem:[%s238 + $0x924] sm:$0xff]
        %v626 = vld [vmem:[%s238 + $0x92c] sm:$0xf]
        %v627 = vld [vmem:[%s238 + $0x930] sm:$0xff]
        %v628 = vld [vmem:[%s238 + $0x938] sm:$0xff]
        %v629 = vld [vmem:[%s238 + $0x940] sm:$0xff]
        %v630 = vld [vmem:[%s238 + $0x948] sm:$0xf]
        %v631 = vld [vmem:[%s238 + $0x94c] sm:$0xff]
        %v632 = vld [vmem:[%s238 + $0x954] sm:$0xff]
        %v633 = vld [vmem:[%s238 + $0x95c] sm:$0xff]
        %v634 = vld [vmem:[%s238 + $0x964] sm:$0xf]
        %v635 = vld [vmem:[%s238 + $0x968] sm:$0xff]
        %v636 = vld [vmem:[%s238 + $0x970] sm:$0xff]
        %v637 = vld [vmem:[%s238 + $0x978] sm:$0xff]
        %v638 = vld [vmem:[%s238 + $0x980] sm:$0xf]
        %v639 = vld [vmem:[%s238 + $0x984] sm:$0xff]
        %v640 = vld [vmem:[%s238 + $0x98c] sm:$0xff]
        %v641 = vld [vmem:[%s238 + $0x994] sm:$0xff]
        %v642 = vld [vmem:[%s238 + $0x99c] sm:$0xf]
        %v643 = vld [vmem:[%s238 + $0x9a0] sm:$0xff]
        %v644 = vld [vmem:[%s238 + $0x9a8] sm:$0xff]
        %v645 = vld [vmem:[%s238 + $0x9b0] sm:$0xff]
        %v646 = vld [vmem:[%s238 + $0x9b8] sm:$0xf]
        %v647 = vld [vmem:[%s238 + $0x9bc] sm:$0xff]
        %v648 = vld [vmem:[%s238 + $0x9c4] sm:$0xff]
        %v649 = vld [vmem:[%s238 + $0x9cc] sm:$0xff]
        %v650 = vld [vmem:[%s238 + $0x9d4] sm:$0xf]
        %v651 = vld [vmem:[%s238 + $0x9d8] sm:$0xff]
        %v652 = vld [vmem:[%s238 + $0x9e0] sm:$0xff]
        %v653 = vld [vmem:[%s238 + $0x9e8] sm:$0xff]
        %v654 = vld [vmem:[%s238 + $0x9f0] sm:$0xf]
        %v655 = vld [vmem:[%s238 + $0x9f4] sm:$0xff]
        %v656 = vld [vmem:[%s238 + $0x9fc] sm:$0xff]
        %v657 = vld [vmem:[%s238 + $0xa04] sm:$0xff]
        %v658 = vld [vmem:[%s238 + $0xa0c] sm:$0xf]
        %v659 = vld [vmem:[%s238 + $0xa10] sm:$0xff]
        %v660 = vld [vmem:[%s238 + $0xa18] sm:$0xff]
        %v661 = vld [vmem:[%s238 + $0xa20] sm:$0xff]
        %v662 = vld [vmem:[%s238 + $0xa28] sm:$0xf]
        %v663 = vld [vmem:[%s238 + $0xa2c] sm:$0xff]
        %v664 = vld [vmem:[%s238 + $0xa34] sm:$0xff]
        %v665 = vld [vmem:[%s238 + $0xa3c] sm:$0xff]
        %v666 = vld [vmem:[%s238 + $0xa44] sm:$0xf]
        %v667 = vld [vmem:[%s238 + $0xa48] sm:$0xff]
        %v668 = vld [vmem:[%s238 + $0xa50] sm:$0xff]
        %v669 = vld [vmem:[%s238 + $0xa58] sm:$0xff]
        %v670 = vld [vmem:[%s238 + $0xa60] sm:$0xf]
        %v671 = vld [vmem:[%s238 + $0xa64] sm:$0xff]
        %v672 = vld [vmem:[%s238 + $0xa6c] sm:$0xff]
        %v673 = vld [vmem:[%s238 + $0xa74] sm:$0xff]
        %v674 = vld [vmem:[%s238 + $0xa7c] sm:$0xf]
        %v675 = vld [vmem:[%s238 + $0xa80] sm:$0xff]
        %v676 = vld [vmem:[%s238 + $0xa88] sm:$0xff]
        %v677 = vld [vmem:[%s238 + $0xa90] sm:$0xff]
        %v678 = vld [vmem:[%s238 + $0xa98] sm:$0xf]
        %v679 = vld [vmem:[%s238 + $0xa9c] sm:$0xff]
        %v680 = vld [vmem:[%s238 + $0xaa4] sm:$0xff]
        %v681 = vld [vmem:[%s238 + $0xaac] sm:$0xff]
        %v682 = vld [vmem:[%s238 + $0xab4] sm:$0xf]
        %v683 = vld [vmem:[%s238 + $0xab8] sm:$0xff]
        %v684 = vld [vmem:[%s238 + $0xac0] sm:$0xff]
        %v685 = vld [vmem:[%s238 + $0xac8] sm:$0xff]
        %v686 = vld [vmem:[%s238 + $0xad0] sm:$0xf]
        %v687 = vld [vmem:[%s238 + $0xad4] sm:$0xff]
        %v688 = vld [vmem:[%s238 + $0xadc] sm:$0xff]
        %v689 = vld [vmem:[%s238 + $0xae4] sm:$0xff]
        %v690 = vld [vmem:[%s238 + $0xaec] sm:$0xf]
        %v691 = vld [vmem:[%s238 + $0xaf0] sm:$0xff]
        %v692 = vld [vmem:[%s238 + $0xaf8] sm:$0xff]
        %v693 = vld [vmem:[%s238 + $0xb00] sm:$0xff]
        %v694 = vld [vmem:[%s238 + $0xb08] sm:$0xf]
        %v695 = vld [vmem:[%s238 + $0xb0c] sm:$0xff]
        %v696 = vld [vmem:[%s238 + $0xb14] sm:$0xff]
        %v697 = vld [vmem:[%s238 + $0xb1c] sm:$0xff]
        %v698 = vld [vmem:[%s238 + $0xb24] sm:$0xf]
        %v699 = vld [vmem:[%s238 + $0xb28] sm:$0xff]
        %v700 = vld [vmem:[%s238 + $0xb30] sm:$0xff]
        %v701 = vld [vmem:[%s238 + $0xb38] sm:$0xff]
        %v702 = vld [vmem:[%s238 + $0xb40] sm:$0xf]
        %v703 = vld [vmem:[%s238 + $0xb44] sm:$0xff]
        %v704 = vld [vmem:[%s238 + $0xb4c] sm:$0xff]
        %v705 = vld [vmem:[%s238 + $0xb54] sm:$0xff]
        %v706 = vld [vmem:[%s238 + $0xb5c] sm:$0xf]
        %v707 = vld [vmem:[%s238 + $0xb60] sm:$0xff]
        %v708 = vld [vmem:[%s238 + $0xb68] sm:$0xff]
        %v709 = vld [vmem:[%s238 + $0xb70] sm:$0xff]
        %v710 = vld [vmem:[%s238 + $0xb78] sm:$0xf]
        %v711 = vld [vmem:[%s238 + $0xb7c] sm:$0xff]
        %v712 = vld [vmem:[%s238 + $0xb84] sm:$0xff]
        %v713 = vld [vmem:[%s238 + $0xb8c] sm:$0xff]
        %v714 = vld [vmem:[%s238 + $0xb94] sm:$0xf]
        %v715 = vld [vmem:[%s238 + $0xb98] sm:$0xff]
        %v716 = vld [vmem:[%s238 + $0xba0] sm:$0xff]
        %v717 = vld [vmem:[%s238 + $0xba8] sm:$0xff]
        %v718 = vld [vmem:[%s238 + $0xbb0] sm:$0xf]
        %v719 = vld [vmem:[%s238 + $0xbb4] sm:$0xff]
        %v720 = vld [vmem:[%s238 + $0xbbc] sm:$0xff]
        %v721 = vld [vmem:[%s238 + $0xbc4] sm:$0xff]
        %v722 = vld [vmem:[%s238 + $0xbcc] sm:$0xf]
        %v723 = vld [vmem:[%s238 + $0xbd0] sm:$0xff]
        %v724 = vld [vmem:[%s238 + $0xbd8] sm:$0xff]
        %v725 = vld [vmem:[%s238 + $0xbe0] sm:$0xff]
        %v726 = vld [vmem:[%s238 + $0xbe8] sm:$0xf]
        %v727 = vld [vmem:[%s238 + $0xbec] sm:$0xff]
        %v728 = vld [vmem:[%s238 + $0xbf4] sm:$0xff]
        %v729 = vld [vmem:[%s238 + $0xbfc] sm:$0xff]
        %v730 = vld [vmem:[%s238 + $0xc04] sm:$0xf]
        %v731 = vld [vmem:[%s238 + $0xc08] sm:$0xff]
        %v732 = vld [vmem:[%s238 + $0xc10] sm:$0xff]
        %v733 = vld [vmem:[%s238 + $0xc18] sm:$0xff]
        %v734 = vld [vmem:[%s238 + $0xc20] sm:$0xf]
        %v735 = vld [vmem:[%s238 + $0xc24] sm:$0xff]
        %v736 = vld [vmem:[%s238 + $0xc2c] sm:$0xff]
        %v737 = vld [vmem:[%s238 + $0xc34] sm:$0xff]
        %v738 = vld [vmem:[%s238 + $0xc3c] sm:$0xf]
        %v747 = vunpack.c.l.b16 %v283
        %v748 = vunpack.c.h.b16 %v283
        %v749 = vunpack.c.l.b16 %v284
        %v750 = vunpack.c.h.b16 %v284
        %v751 = vunpack.c.l.b16 %v285
        %v752 = vunpack.c.h.b16 %v285
        %v753 = vunpack.c.l.b16 %v286
        %v754 = vunpack.c.l.b16 %v287
        %v755 = vunpack.c.h.b16 %v287
        %v756 = vunpack.c.l.b16 %v288
        %v757 = vunpack.c.h.b16 %v288
        %v758 = vunpack.c.l.b16 %v289
        %v759 = vunpack.c.h.b16 %v289
        %v760 = vunpack.c.l.b16 %v290
        %v761 = vpack.c.b16 %v754, %v747
        %v762 = vpack.c.b16 %v755, %v748
        %v763 = vpack.c.b16 %v756, %v749
        %v764 = vpack.c.b16 %v757, %v750
        %v765 = vpack.c.b16 %v758, %v751
        %v766 = vpack.c.b16 %v759, %v752
        %v767 = vpack.c.b16 %v760, %v753
        %v1223 = vunpack.c.l.b16 %v291
        %v1224 = vunpack.c.h.b16 %v291
        %v1225 = vunpack.c.l.b16 %v292
        %v1226 = vunpack.c.h.b16 %v292
        %v1227 = vunpack.c.l.b16 %v293
        %v1228 = vunpack.c.h.b16 %v293
        %v1229 = vunpack.c.l.b16 %v294
        %v1230 = vunpack.c.l.b16 %v295
        %v1231 = vunpack.c.h.b16 %v295
        %v1232 = vunpack.c.l.b16 %v296
        %v1233 = vunpack.c.h.b16 %v296
        %v1234 = vunpack.c.l.b16 %v297
        %v1235 = vunpack.c.h.b16 %v297
        %v1236 = vunpack.c.l.b16 %v298
        %v1237 = vunpack.c.l.b16 %v299
        %v1238 = vunpack.c.h.b16 %v299
        %v1239 = vunpack.c.l.b16 %v300
        %v1240 = vunpack.c.h.b16 %v300
        %v1241 = vunpack.c.l.b16 %v301
        %v1242 = vunpack.c.h.b16 %v301
        %v1243 = vunpack.c.l.b16 %v302
        %v1244 = vunpack.c.l.b16 %v303
        %v1245 = vunpack.c.h.b16 %v303
        %v1246 = vunpack.c.l.b16 %v304
        %v1247 = vunpack.c.h.b16 %v304
        %v1248 = vunpack.c.l.b16 %v305
        %v1249 = vunpack.c.h.b16 %v305
        %v1250 = vunpack.c.l.b16 %v306
        %v1251 = vunpack.c.l.b16 %v307
        %v1252 = vunpack.c.h.b16 %v307
        %v1253 = vunpack.c.l.b16 %v308
        %v1254 = vunpack.c.h.b16 %v308
        %v1255 = vunpack.c.l.b16 %v309
        %v1256 = vunpack.c.h.b16 %v309
        %v1257 = vunpack.c.l.b16 %v310
        %v1258 = vunpack.c.l.b16 %v311
        %v1259 = vunpack.c.h.b16 %v311
        %v1260 = vunpack.c.l.b16 %v312
        %v1261 = vunpack.c.h.b16 %v312
        %v1262 = vunpack.c.l.b16 %v313
        %v1263 = vunpack.c.h.b16 %v313
        %v1264 = vunpack.c.l.b16 %v314
        %v1265 = vunpack.c.l.b16 %v315
        %v1266 = vunpack.c.h.b16 %v315
        %v1267 = vunpack.c.l.b16 %v316
        %v1268 = vunpack.c.h.b16 %v316
        %v1269 = vunpack.c.l.b16 %v317
        %v1270 = vunpack.c.h.b16 %v317
        %v1271 = vunpack.c.l.b16 %v318
        %v1272 = vunpack.c.l.b16 %v319
        %v1273 = vunpack.c.h.b16 %v319
        %v1274 = vunpack.c.l.b16 %v320
        %v1275 = vunpack.c.h.b16 %v320
        %v1276 = vunpack.c.l.b16 %v321
        %v1277 = vunpack.c.h.b16 %v321
        %v1278 = vunpack.c.l.b16 %v322
        %v1279 = vunpack.c.l.b16 %v323
        %v1280 = vunpack.c.h.b16 %v323
        %v1281 = vunpack.c.l.b16 %v324
        %v1282 = vunpack.c.h.b16 %v324
        %v1283 = vunpack.c.l.b16 %v325
        %v1284 = vunpack.c.h.b16 %v325
        %v1285 = vunpack.c.l.b16 %v326
        %v1286 = vunpack.c.l.b16 %v327
        %v1287 = vunpack.c.h.b16 %v327
        %v1288 = vunpack.c.l.b16 %v328
        %v1289 = vunpack.c.h.b16 %v328
        %v1290 = vunpack.c.l.b16 %v329
        %v1291 = vunpack.c.h.b16 %v329
        %v1292 = vunpack.c.l.b16 %v330
        %v1293 = vunpack.c.l.b16 %v331
        %v1294 = vunpack.c.h.b16 %v331
        %v1295 = vunpack.c.l.b16 %v332
        %v1296 = vunpack.c.h.b16 %v332
        %v1297 = vunpack.c.l.b16 %v333
        %v1298 = vunpack.c.h.b16 %v333
        %v1299 = vunpack.c.l.b16 %v334
        %v1300 = vunpack.c.l.b16 %v335
        %v1301 = vunpack.c.h.b16 %v335
        %v1302 = vunpack.c.l.b16 %v336
        %v1303 = vunpack.c.h.b16 %v336
        %v1304 = vunpack.c.l.b16 %v337
        %v1305 = vunpack.c.h.b16 %v337
        %v1306 = vunpack.c.l.b16 %v338
        %v1307 = vunpack.c.l.b16 %v339
        %v1308 = vunpack.c.h.b16 %v339
        %v1309 = vunpack.c.l.b16 %v340
        %v1310 = vunpack.c.h.b16 %v340
        %v1311 = vunpack.c.l.b16 %v341
        %v1312 = vunpack.c.h.b16 %v341
        %v1313 = vunpack.c.l.b16 %v342
        %v1314 = vunpack.c.l.b16 %v343
        %v1315 = vunpack.c.h.b16 %v343
        %v1316 = vunpack.c.l.b16 %v344
        %v1317 = vunpack.c.h.b16 %v344
        %v1318 = vunpack.c.l.b16 %v345
        %v1319 = vunpack.c.h.b16 %v345
        %v1320 = vunpack.c.l.b16 %v346
        %v1321 = vunpack.c.l.b16 %v347
        %v1322 = vunpack.c.h.b16 %v347
        %v1323 = vunpack.c.l.b16 %v348
        %v1324 = vunpack.c.h.b16 %v348
        %v1325 = vunpack.c.l.b16 %v349
        %v1326 = vunpack.c.h.b16 %v349
        %v1327 = vunpack.c.l.b16 %v350
        %v1328 = vunpack.c.l.b16 %v351
        %v1329 = vunpack.c.h.b16 %v351
        %v1330 = vunpack.c.l.b16 %v352
        %v1331 = vunpack.c.h.b16 %v352
        %v1332 = vunpack.c.l.b16 %v353
        %v1333 = vunpack.c.h.b16 %v353
        %v1334 = vunpack.c.l.b16 %v354
        %v1335 = vunpack.c.l.b16 %v355
        %v1336 = vunpack.c.h.b16 %v355
        %v1337 = vunpack.c.l.b16 %v356
        %v1338 = vunpack.c.h.b16 %v356
        %v1339 = vunpack.c.l.b16 %v357
        %v1340 = vunpack.c.h.b16 %v357
        %v1341 = vunpack.c.l.b16 %v358
        %v1342 = vunpack.c.l.b16 %v359
        %v1343 = vunpack.c.h.b16 %v359
        %v1344 = vunpack.c.l.b16 %v360
        %v1345 = vunpack.c.h.b16 %v360
        %v1346 = vunpack.c.l.b16 %v361
        %v1347 = vunpack.c.h.b16 %v361
        %v1348 = vunpack.c.l.b16 %v362
        %v1349 = vunpack.c.l.b16 %v363
        %v1350 = vunpack.c.h.b16 %v363
        %v1351 = vunpack.c.l.b16 %v364
        %v1352 = vunpack.c.h.b16 %v364
        %v1353 = vunpack.c.l.b16 %v365
        %v1354 = vunpack.c.h.b16 %v365
        %v1355 = vunpack.c.l.b16 %v366
        %v1356 = vunpack.c.l.b16 %v367
        %v1357 = vunpack.c.h.b16 %v367
        %v1358 = vunpack.c.l.b16 %v368
        %v1359 = vunpack.c.h.b16 %v368
        %v1360 = vunpack.c.l.b16 %v369
        %v1361 = vunpack.c.h.b16 %v369
        %v1362 = vunpack.c.l.b16 %v370
        %v1363 = vunpack.c.l.b16 %v371
        %v1364 = vunpack.c.h.b16 %v371
        %v1365 = vunpack.c.l.b16 %v372
        %v1366 = vunpack.c.h.b16 %v372
        %v1367 = vunpack.c.l.b16 %v373
        %v1368 = vunpack.c.h.b16 %v373
        %v1369 = vunpack.c.l.b16 %v374
        %v1370 = vunpack.c.l.b16 %v375
        %v1371 = vunpack.c.h.b16 %v375
        %v1372 = vunpack.c.l.b16 %v376
        %v1373 = vunpack.c.h.b16 %v376
        %v1374 = vunpack.c.l.b16 %v377
        %v1375 = vunpack.c.h.b16 %v377
        %v1376 = vunpack.c.l.b16 %v378
        %v1377 = vunpack.c.l.b16 %v379
        %v1378 = vunpack.c.h.b16 %v379
        %v1379 = vunpack.c.l.b16 %v380
        %v1380 = vunpack.c.h.b16 %v380
        %v1381 = vunpack.c.l.b16 %v381
        %v1382 = vunpack.c.h.b16 %v381
        %v1383 = vunpack.c.l.b16 %v382
        %v1384 = vunpack.c.l.b16 %v383
        %v1385 = vunpack.c.h.b16 %v383
        %v1386 = vunpack.c.l.b16 %v384
        %v1387 = vunpack.c.h.b16 %v384
        %v1388 = vunpack.c.l.b16 %v385
        %v1389 = vunpack.c.h.b16 %v385
        %v1390 = vunpack.c.l.b16 %v386
        %v1391 = vunpack.c.l.b16 %v387
        %v1392 = vunpack.c.h.b16 %v387
        %v1393 = vunpack.c.l.b16 %v388
        %v1394 = vunpack.c.h.b16 %v388
        %v1395 = vunpack.c.l.b16 %v389
        %v1396 = vunpack.c.h.b16 %v389
        %v1397 = vunpack.c.l.b16 %v390
        %v1398 = vunpack.c.l.b16 %v391
        %v1399 = vunpack.c.h.b16 %v391
        %v1400 = vunpack.c.l.b16 %v392
        %v1401 = vunpack.c.h.b16 %v392
        %v1402 = vunpack.c.l.b16 %v393
        %v1403 = vunpack.c.h.b16 %v393
        %v1404 = vunpack.c.l.b16 %v394
        %v1405 = vunpack.c.l.b16 %v395
        %v1406 = vunpack.c.h.b16 %v395
        %v1407 = vunpack.c.l.b16 %v396
        %v1408 = vunpack.c.h.b16 %v396
        %v1409 = vunpack.c.l.b16 %v397
        %v1410 = vunpack.c.h.b16 %v397
        %v1411 = vunpack.c.l.b16 %v398
        %v1412 = vunpack.c.l.b16 %v399
        %v1413 = vunpack.c.h.b16 %v399
        %v1414 = vunpack.c.l.b16 %v400
        %v1415 = vunpack.c.h.b16 %v400
        %v1416 = vunpack.c.l.b16 %v401
        %v1417 = vunpack.c.h.b16 %v401
        %v1418 = vunpack.c.l.b16 %v402
        %v1419 = vunpack.c.l.b16 %v403
        %v1420 = vunpack.c.h.b16 %v403
        %v1421 = vunpack.c.l.b16 %v404
        %v1422 = vunpack.c.h.b16 %v404
        %v1423 = vunpack.c.l.b16 %v405
        %v1424 = vunpack.c.h.b16 %v405
        %v1425 = vunpack.c.l.b16 %v406
        %v1426 = vunpack.c.l.b16 %v407
        %v1427 = vunpack.c.h.b16 %v407
        %v1428 = vunpack.c.l.b16 %v408
        %v1429 = vunpack.c.h.b16 %v408
        %v1430 = vunpack.c.l.b16 %v409
        %v1431 = vunpack.c.h.b16 %v409
        %v1432 = vunpack.c.l.b16 %v410
        %v1433 = vunpack.c.l.b16 %v411
        %v1434 = vunpack.c.h.b16 %v411
        %v1435 = vunpack.c.l.b16 %v412
        %v1436 = vunpack.c.h.b16 %v412
        %v1437 = vunpack.c.l.b16 %v413
        %v1438 = vunpack.c.h.b16 %v413
        %v1439 = vunpack.c.l.b16 %v414
        %v1440 = vunpack.c.l.b16 %v415
        %v1441 = vunpack.c.h.b16 %v415
        %v1442 = vunpack.c.l.b16 %v416
        %v1443 = vunpack.c.h.b16 %v416
        %v1444 = vunpack.c.l.b16 %v417
        %v1445 = vunpack.c.h.b16 %v417
        %v1446 = vunpack.c.l.b16 %v418
        %v1447 = vunpack.c.l.b16 %v419
        %v1448 = vunpack.c.h.b16 %v419
        %v1449 = vunpack.c.l.b16 %v420
        %v1450 = vunpack.c.h.b16 %v420
        %v1451 = vunpack.c.l.b16 %v421
        %v1452 = vunpack.c.h.b16 %v421
        %v1453 = vunpack.c.l.b16 %v422
        %v1454 = vunpack.c.l.b16 %v423
        %v1455 = vunpack.c.h.b16 %v423
        %v1456 = vunpack.c.l.b16 %v424
        %v1457 = vunpack.c.h.b16 %v424
        %v1458 = vunpack.c.l.b16 %v425
        %v1459 = vunpack.c.h.b16 %v425
        %v1460 = vunpack.c.l.b16 %v426
        %v1461 = vunpack.c.l.b16 %v427
        %v1462 = vunpack.c.h.b16 %v427
        %v1463 = vunpack.c.l.b16 %v428
        %v1464 = vunpack.c.h.b16 %v428
        %v1465 = vunpack.c.l.b16 %v429
        %v1466 = vunpack.c.h.b16 %v429
        %v1467 = vunpack.c.l.b16 %v430
        %v1468 = vunpack.c.l.b16 %v431
        %v1469 = vunpack.c.h.b16 %v431
        %v1470 = vunpack.c.l.b16 %v432
        %v1471 = vunpack.c.h.b16 %v432
        %v1472 = vunpack.c.l.b16 %v433
        %v1473 = vunpack.c.h.b16 %v433
        %v1474 = vunpack.c.l.b16 %v434
        %v1475 = vunpack.c.l.b16 %v435
        %v1476 = vunpack.c.h.b16 %v435
        %v1477 = vunpack.c.l.b16 %v436
        %v1478 = vunpack.c.h.b16 %v436
        %v1479 = vunpack.c.l.b16 %v437
        %v1480 = vunpack.c.h.b16 %v437
        %v1481 = vunpack.c.l.b16 %v438
        %v1482 = vunpack.c.l.b16 %v439
        %v1483 = vunpack.c.h.b16 %v439
        %v1484 = vunpack.c.l.b16 %v440
        %v1485 = vunpack.c.h.b16 %v440
        %v1486 = vunpack.c.l.b16 %v441
        %v1487 = vunpack.c.h.b16 %v441
        %v1488 = vunpack.c.l.b16 %v442
        %v1489 = vunpack.c.l.b16 %v443
        %v1490 = vunpack.c.h.b16 %v443
        %v1491 = vunpack.c.l.b16 %v444
        %v1492 = vunpack.c.h.b16 %v444
        %v1493 = vunpack.c.l.b16 %v445
        %v1494 = vunpack.c.h.b16 %v445
        %v1495 = vunpack.c.l.b16 %v446
        %v1496 = vunpack.c.l.b16 %v447
        %v1497 = vunpack.c.h.b16 %v447
        %v1498 = vunpack.c.l.b16 %v448
        %v1499 = vunpack.c.h.b16 %v448
        %v1500 = vunpack.c.l.b16 %v449
        %v1501 = vunpack.c.h.b16 %v449
        %v1502 = vunpack.c.l.b16 %v450
        %v1503 = vunpack.c.l.b16 %v451
        %v1504 = vunpack.c.h.b16 %v451
        %v1505 = vunpack.c.l.b16 %v452
        %v1506 = vunpack.c.h.b16 %v452
        %v1507 = vunpack.c.l.b16 %v453
        %v1508 = vunpack.c.h.b16 %v453
        %v1509 = vunpack.c.l.b16 %v454
        %v1510 = vunpack.c.l.b16 %v455
        %v1511 = vunpack.c.h.b16 %v455
        %v1512 = vunpack.c.l.b16 %v456
        %v1513 = vunpack.c.h.b16 %v456
        %v1514 = vunpack.c.l.b16 %v457
        %v1515 = vunpack.c.h.b16 %v457
        %v1516 = vunpack.c.l.b16 %v458
        %v1517 = vunpack.c.l.b16 %v459
        %v1518 = vunpack.c.h.b16 %v459
        %v1519 = vunpack.c.l.b16 %v460
        %v1520 = vunpack.c.h.b16 %v460
        %v1521 = vunpack.c.l.b16 %v461
        %v1522 = vunpack.c.h.b16 %v461
        %v1523 = vunpack.c.l.b16 %v462
        %v1524 = vunpack.c.l.b16 %v463
        %v1525 = vunpack.c.h.b16 %v463
        %v1526 = vunpack.c.l.b16 %v464
        %v1527 = vunpack.c.h.b16 %v464
        %v1528 = vunpack.c.l.b16 %v465
        %v1529 = vunpack.c.h.b16 %v465
        %v1530 = vunpack.c.l.b16 %v466
        %v1531 = vunpack.c.l.b16 %v467
        %v1532 = vunpack.c.h.b16 %v467
        %v1533 = vunpack.c.l.b16 %v468
        %v1534 = vunpack.c.h.b16 %v468
        %v1535 = vunpack.c.l.b16 %v469
        %v1536 = vunpack.c.h.b16 %v469
        %v1537 = vunpack.c.l.b16 %v470
        %v1538 = vunpack.c.l.b16 %v471
        %v1539 = vunpack.c.h.b16 %v471
        %v1540 = vunpack.c.l.b16 %v472
        %v1541 = vunpack.c.h.b16 %v472
        %v1542 = vunpack.c.l.b16 %v473
        %v1543 = vunpack.c.h.b16 %v473
        %v1544 = vunpack.c.l.b16 %v474
        %v1545 = vunpack.c.l.b16 %v475
        %v1546 = vunpack.c.h.b16 %v475
        %v1547 = vunpack.c.l.b16 %v476
        %v1548 = vunpack.c.h.b16 %v476
        %v1549 = vunpack.c.l.b16 %v477
        %v1550 = vunpack.c.h.b16 %v477
        %v1551 = vunpack.c.l.b16 %v478
        %v1552 = vunpack.c.l.b16 %v479
        %v1553 = vunpack.c.h.b16 %v479
        %v1554 = vunpack.c.l.b16 %v480
        %v1555 = vunpack.c.h.b16 %v480
        %v1556 = vunpack.c.l.b16 %v481
        %v1557 = vunpack.c.h.b16 %v481
        %v1558 = vunpack.c.l.b16 %v482
        %v1559 = vunpack.c.l.b16 %v483
        %v1560 = vunpack.c.h.b16 %v483
        %v1561 = vunpack.c.l.b16 %v484
        %v1562 = vunpack.c.h.b16 %v484
        %v1563 = vunpack.c.l.b16 %v485
        %v1564 = vunpack.c.h.b16 %v485
        %v1565 = vunpack.c.l.b16 %v486
        %v1566 = vunpack.c.l.b16 %v487
        %v1567 = vunpack.c.h.b16 %v487
        %v1568 = vunpack.c.l.b16 %v488
        %v1569 = vunpack.c.h.b16 %v488
        %v1570 = vunpack.c.l.b16 %v489
        %v1571 = vunpack.c.h.b16 %v489
        %v1572 = vunpack.c.l.b16 %v490
        %v1573 = vunpack.c.l.b16 %v491
        %v1574 = vunpack.c.h.b16 %v491
        %v1575 = vunpack.c.l.b16 %v492
        %v1576 = vunpack.c.h.b16 %v492
        %v1577 = vunpack.c.l.b16 %v493
        %v1578 = vunpack.c.h.b16 %v493
        %v1579 = vunpack.c.l.b16 %v494
        %v1580 = vunpack.c.l.b16 %v495
        %v1581 = vunpack.c.h.b16 %v495
        %v1582 = vunpack.c.l.b16 %v496
        %v1583 = vunpack.c.h.b16 %v496
        %v1584 = vunpack.c.l.b16 %v497
        %v1585 = vunpack.c.h.b16 %v497
        %v1586 = vunpack.c.l.b16 %v498
        %v1587 = vunpack.c.l.b16 %v499
        %v1588 = vunpack.c.h.b16 %v499
        %v1589 = vunpack.c.l.b16 %v500
        %v1590 = vunpack.c.h.b16 %v500
        %v1591 = vunpack.c.l.b16 %v501
        %v1592 = vunpack.c.h.b16 %v501
        %v1593 = vunpack.c.l.b16 %v502
        %v1594 = vunpack.c.l.b16 %v503
        %v1595 = vunpack.c.h.b16 %v503
        %v1596 = vunpack.c.l.b16 %v504
        %v1597 = vunpack.c.h.b16 %v504
        %v1598 = vunpack.c.l.b16 %v505
        %v1599 = vunpack.c.h.b16 %v505
        %v1600 = vunpack.c.l.b16 %v506
        %v1601 = vunpack.c.l.b16 %v507
        %v1602 = vunpack.c.h.b16 %v507
        %v1603 = vunpack.c.l.b16 %v508
        %v1604 = vunpack.c.h.b16 %v508
        %v1605 = vunpack.c.l.b16 %v509
        %v1606 = vunpack.c.h.b16 %v509
        %v1607 = vunpack.c.l.b16 %v510
        %v1608 = vunpack.c.l.b16 %v511
        %v1609 = vunpack.c.h.b16 %v511
        %v1610 = vunpack.c.l.b16 %v512
        %v1611 = vunpack.c.h.b16 %v512
        %v1612 = vunpack.c.l.b16 %v513
        %v1613 = vunpack.c.h.b16 %v513
        %v1614 = vunpack.c.l.b16 %v514
        %v1615 = vunpack.c.l.b16 %v515
        %v1616 = vunpack.c.h.b16 %v515
        %v1617 = vunpack.c.l.b16 %v516
        %v1618 = vunpack.c.h.b16 %v516
        %v1619 = vunpack.c.l.b16 %v517
        %v1620 = vunpack.c.h.b16 %v517
        %v1621 = vunpack.c.l.b16 %v518
        %v1622 = vunpack.c.l.b16 %v519
        %v1623 = vunpack.c.h.b16 %v519
        %v1624 = vunpack.c.l.b16 %v520
        %v1625 = vunpack.c.h.b16 %v520
        %v1626 = vunpack.c.l.b16 %v521
        %v1627 = vunpack.c.h.b16 %v521
        %v1628 = vunpack.c.l.b16 %v522
        %v1629 = vunpack.c.l.b16 %v523
        %v1630 = vunpack.c.h.b16 %v523
        %v1631 = vunpack.c.l.b16 %v524
        %v1632 = vunpack.c.h.b16 %v524
        %v1633 = vunpack.c.l.b16 %v525
        %v1634 = vunpack.c.h.b16 %v525
        %v1635 = vunpack.c.l.b16 %v526
        %v1636 = vunpack.c.l.b16 %v527
        %v1637 = vunpack.c.h.b16 %v527
        %v1638 = vunpack.c.l.b16 %v528
        %v1639 = vunpack.c.h.b16 %v528
        %v1640 = vunpack.c.l.b16 %v529
        %v1641 = vunpack.c.h.b16 %v529
        %v1642 = vunpack.c.l.b16 %v530
        %v1643 = vunpack.c.l.b16 %v531
        %v1644 = vunpack.c.h.b16 %v531
        %v1645 = vunpack.c.l.b16 %v532
        %v1646 = vunpack.c.h.b16 %v532
        %v1647 = vunpack.c.l.b16 %v533
        %v1648 = vunpack.c.h.b16 %v533
        %v1649 = vunpack.c.l.b16 %v534
        %v1650 = vunpack.c.l.b16 %v535
        %v1651 = vunpack.c.h.b16 %v535
        %v1652 = vunpack.c.l.b16 %v536
        %v1653 = vunpack.c.h.b16 %v536
        %v1654 = vunpack.c.l.b16 %v537
        %v1655 = vunpack.c.h.b16 %v537
        %v1656 = vunpack.c.l.b16 %v538
        %v1657 = vunpack.c.l.b16 %v539
        %v1658 = vunpack.c.h.b16 %v539
        %v1659 = vunpack.c.l.b16 %v540
        %v1660 = vunpack.c.h.b16 %v540
        %v1661 = vunpack.c.l.b16 %v541
        %v1662 = vunpack.c.h.b16 %v541
        %v1663 = vunpack.c.l.b16 %v542
        %v1664 = vunpack.c.l.b16 %v543
        %v1665 = vunpack.c.h.b16 %v543
        %v1666 = vunpack.c.l.b16 %v544
        %v1667 = vunpack.c.h.b16 %v544
        %v1668 = vunpack.c.l.b16 %v545
        %v1669 = vunpack.c.h.b16 %v545
        %v1670 = vunpack.c.l.b16 %v546
        %v1671 = vunpack.c.l.b16 %v547
        %v1672 = vunpack.c.h.b16 %v547
        %v1673 = vunpack.c.l.b16 %v548
        %v1674 = vunpack.c.h.b16 %v548
        %v1675 = vunpack.c.l.b16 %v549
        %v1676 = vunpack.c.h.b16 %v549
        %v1677 = vunpack.c.l.b16 %v550
        %v1678 = vunpack.c.l.b16 %v551
        %v1679 = vunpack.c.h.b16 %v551
        %v1680 = vunpack.c.l.b16 %v552
        %v1681 = vunpack.c.h.b16 %v552
        %v1682 = vunpack.c.l.b16 %v553
        %v1683 = vunpack.c.h.b16 %v553
        %v1684 = vunpack.c.l.b16 %v554
        %v1685 = vunpack.c.l.b16 %v555
        %v1686 = vunpack.c.h.b16 %v555
        %v1687 = vunpack.c.l.b16 %v556
        %v1688 = vunpack.c.h.b16 %v556
        %v1689 = vunpack.c.l.b16 %v557
        %v1690 = vunpack.c.h.b16 %v557
        %v1691 = vunpack.c.l.b16 %v558
        %v1692 = vunpack.c.l.b16 %v559
        %v1693 = vunpack.c.h.b16 %v559
        %v1694 = vunpack.c.l.b16 %v560
        %v1695 = vunpack.c.h.b16 %v560
        %v1696 = vunpack.c.l.b16 %v561
        %v1697 = vunpack.c.h.b16 %v561
        %v1698 = vunpack.c.l.b16 %v562
        %v1699 = vunpack.c.l.b16 %v563
        %v1700 = vunpack.c.h.b16 %v563
        %v1701 = vunpack.c.l.b16 %v564
        %v1702 = vunpack.c.h.b16 %v564
        %v1703 = vunpack.c.l.b16 %v565
        %v1704 = vunpack.c.h.b16 %v565
        %v1705 = vunpack.c.l.b16 %v566
        %v1706 = vunpack.c.l.b16 %v567
        %v1707 = vunpack.c.h.b16 %v567
        %v1708 = vunpack.c.l.b16 %v568
        %v1709 = vunpack.c.h.b16 %v568
        %v1710 = vunpack.c.l.b16 %v569
        %v1711 = vunpack.c.h.b16 %v569
        %v1712 = vunpack.c.l.b16 %v570
        %v1713 = vunpack.c.l.b16 %v571
        %v1714 = vunpack.c.h.b16 %v571
        %v1715 = vunpack.c.l.b16 %v572
        %v1716 = vunpack.c.h.b16 %v572
        %v1717 = vunpack.c.l.b16 %v573
        %v1718 = vunpack.c.h.b16 %v573
        %v1719 = vunpack.c.l.b16 %v574
        %v1720 = vunpack.c.l.b16 %v575
        %v1721 = vunpack.c.h.b16 %v575
        %v1722 = vunpack.c.l.b16 %v576
        %v1723 = vunpack.c.h.b16 %v576
        %v1724 = vunpack.c.l.b16 %v577
        %v1725 = vunpack.c.h.b16 %v577
        %v1726 = vunpack.c.l.b16 %v578
        %v1727 = vunpack.c.l.b16 %v579
        %v1728 = vunpack.c.h.b16 %v579
        %v1729 = vunpack.c.l.b16 %v580
        %v1730 = vunpack.c.h.b16 %v580
        %v1731 = vunpack.c.l.b16 %v581
        %v1732 = vunpack.c.h.b16 %v581
        %v1733 = vunpack.c.l.b16 %v582
        %v1734 = vunpack.c.l.b16 %v583
        %v1735 = vunpack.c.h.b16 %v583
        %v1736 = vunpack.c.l.b16 %v584
        %v1737 = vunpack.c.h.b16 %v584
        %v1738 = vunpack.c.l.b16 %v585
        %v1739 = vunpack.c.h.b16 %v585
        %v1740 = vunpack.c.l.b16 %v586
        %v1741 = vunpack.c.l.b16 %v587
        %v1742 = vunpack.c.h.b16 %v587
        %v1743 = vunpack.c.l.b16 %v588
        %v1744 = vunpack.c.h.b16 %v588
        %v1745 = vunpack.c.l.b16 %v589
        %v1746 = vunpack.c.h.b16 %v589
        %v1747 = vunpack.c.l.b16 %v590
        %v1748 = vunpack.c.l.b16 %v591
        %v1749 = vunpack.c.h.b16 %v591
        %v1750 = vunpack.c.l.b16 %v592
        %v1751 = vunpack.c.h.b16 %v592
        %v1752 = vunpack.c.l.b16 %v593
        %v1753 = vunpack.c.h.b16 %v593
        %v1754 = vunpack.c.l.b16 %v594
        %v1755 = vunpack.c.l.b16 %v595
        %v1756 = vunpack.c.h.b16 %v595
        %v1757 = vunpack.c.l.b16 %v596
        %v1758 = vunpack.c.h.b16 %v596
        %v1759 = vunpack.c.l.b16 %v597
        %v1760 = vunpack.c.h.b16 %v597
        %v1761 = vunpack.c.l.b16 %v598
        %v1762 = vunpack.c.l.b16 %v599
        %v1763 = vunpack.c.h.b16 %v599
        %v1764 = vunpack.c.l.b16 %v600
        %v1765 = vunpack.c.h.b16 %v600
        %v1766 = vunpack.c.l.b16 %v601
        %v1767 = vunpack.c.h.b16 %v601
        %v1768 = vunpack.c.l.b16 %v602
        %v1769 = vunpack.c.l.b16 %v603
        %v1770 = vunpack.c.h.b16 %v603
        %v1771 = vunpack.c.l.b16 %v604
        %v1772 = vunpack.c.h.b16 %v604
        %v1773 = vunpack.c.l.b16 %v605
        %v1774 = vunpack.c.h.b16 %v605
        %v1775 = vunpack.c.l.b16 %v606
        %v1776 = vunpack.c.l.b16 %v607
        %v1777 = vunpack.c.h.b16 %v607
        %v1778 = vunpack.c.l.b16 %v608
        %v1779 = vunpack.c.h.b16 %v608
        %v1780 = vunpack.c.l.b16 %v609
        %v1781 = vunpack.c.h.b16 %v609
        %v1782 = vunpack.c.l.b16 %v610
        %v1783 = vunpack.c.l.b16 %v611
        %v1784 = vunpack.c.h.b16 %v611
        %v1785 = vunpack.c.l.b16 %v612
        %v1786 = vunpack.c.h.b16 %v612
        %v1787 = vunpack.c.l.b16 %v613
        %v1788 = vunpack.c.h.b16 %v613
        %v1789 = vunpack.c.l.b16 %v614
        %v1790 = vunpack.c.l.b16 %v615
        %v1791 = vunpack.c.h.b16 %v615
        %v1792 = vunpack.c.l.b16 %v616
        %v1793 = vunpack.c.h.b16 %v616
        %v1794 = vunpack.c.l.b16 %v617
        %v1795 = vunpack.c.h.b16 %v617
        %v1796 = vunpack.c.l.b16 %v618
        %v1797 = vunpack.c.l.b16 %v619
        %v1798 = vunpack.c.h.b16 %v619
        %v1799 = vunpack.c.l.b16 %v620
        %v1800 = vunpack.c.h.b16 %v620
        %v1801 = vunpack.c.l.b16 %v621
        %v1802 = vunpack.c.h.b16 %v621
        %v1803 = vunpack.c.l.b16 %v622
        %v1804 = vunpack.c.l.b16 %v623
        %v1805 = vunpack.c.h.b16 %v623
        %v1806 = vunpack.c.l.b16 %v624
        %v1807 = vunpack.c.h.b16 %v624
        %v1808 = vunpack.c.l.b16 %v625
        %v1809 = vunpack.c.h.b16 %v625
        %v1810 = vunpack.c.l.b16 %v626
        %v1811 = vunpack.c.l.b16 %v627
        %v1812 = vunpack.c.h.b16 %v627
        %v1813 = vunpack.c.l.b16 %v628
        %v1814 = vunpack.c.h.b16 %v628
        %v1815 = vunpack.c.l.b16 %v629
        %v1816 = vunpack.c.h.b16 %v629
        %v1817 = vunpack.c.l.b16 %v630
        %v1818 = vunpack.c.l.b16 %v631
        %v1819 = vunpack.c.h.b16 %v631
        %v1820 = vunpack.c.l.b16 %v632
        %v1821 = vunpack.c.h.b16 %v632
        %v1822 = vunpack.c.l.b16 %v633
        %v1823 = vunpack.c.h.b16 %v633
        %v1824 = vunpack.c.l.b16 %v634
        %v1825 = vunpack.c.l.b16 %v635
        %v1826 = vunpack.c.h.b16 %v635
        %v1827 = vunpack.c.l.b16 %v636
        %v1828 = vunpack.c.h.b16 %v636
        %v1829 = vunpack.c.l.b16 %v637
        %v1830 = vunpack.c.h.b16 %v637
        %v1831 = vunpack.c.l.b16 %v638
        %v1832 = vunpack.c.l.b16 %v639
        %v1833 = vunpack.c.h.b16 %v639
        %v1834 = vunpack.c.l.b16 %v640
        %v1835 = vunpack.c.h.b16 %v640
        %v1836 = vunpack.c.l.b16 %v641
        %v1837 = vunpack.c.h.b16 %v641
        %v1838 = vunpack.c.l.b16 %v642
        %v1839 = vunpack.c.l.b16 %v643
        %v1840 = vunpack.c.h.b16 %v643
        %v1841 = vunpack.c.l.b16 %v644
        %v1842 = vunpack.c.h.b16 %v644
        %v1843 = vunpack.c.l.b16 %v645
        %v1844 = vunpack.c.h.b16 %v645
        %v1845 = vunpack.c.l.b16 %v646
        %v1846 = vunpack.c.l.b16 %v647
        %v1847 = vunpack.c.h.b16 %v647
        %v1848 = vunpack.c.l.b16 %v648
        %v1849 = vunpack.c.h.b16 %v648
        %v1850 = vunpack.c.l.b16 %v649
        %v1851 = vunpack.c.h.b16 %v649
        %v1852 = vunpack.c.l.b16 %v650
        %v1853 = vunpack.c.l.b16 %v651
        %v1854 = vunpack.c.h.b16 %v651
        %v1855 = vunpack.c.l.b16 %v652
        %v1856 = vunpack.c.h.b16 %v652
        %v1857 = vunpack.c.l.b16 %v653
        %v1858 = vunpack.c.h.b16 %v653
        %v1859 = vunpack.c.l.b16 %v654
        %v1860 = vunpack.c.l.b16 %v655
        %v1861 = vunpack.c.h.b16 %v655
        %v1862 = vunpack.c.l.b16 %v656
        %v1863 = vunpack.c.h.b16 %v656
        %v1864 = vunpack.c.l.b16 %v657
        %v1865 = vunpack.c.h.b16 %v657
        %v1866 = vunpack.c.l.b16 %v658
        %v1867 = vunpack.c.l.b16 %v659
        %v1868 = vunpack.c.h.b16 %v659
        %v1869 = vunpack.c.l.b16 %v660
        %v1870 = vunpack.c.h.b16 %v660
        %v1871 = vunpack.c.l.b16 %v661
        %v1872 = vunpack.c.h.b16 %v661
        %v1873 = vunpack.c.l.b16 %v662
        %v1874 = vunpack.c.l.b16 %v663
        %v1875 = vunpack.c.h.b16 %v663
        %v1876 = vunpack.c.l.b16 %v664
        %v1877 = vunpack.c.h.b16 %v664
        %v1878 = vunpack.c.l.b16 %v665
        %v1879 = vunpack.c.h.b16 %v665
        %v1880 = vunpack.c.l.b16 %v666
        %v1881 = vunpack.c.l.b16 %v667
        %v1882 = vunpack.c.h.b16 %v667
        %v1883 = vunpack.c.l.b16 %v668
        %v1884 = vunpack.c.h.b16 %v668
        %v1885 = vunpack.c.l.b16 %v669
        %v1886 = vunpack.c.h.b16 %v669
        %v1887 = vunpack.c.l.b16 %v670
        %v1888 = vunpack.c.l.b16 %v671
        %v1889 = vunpack.c.h.b16 %v671
        %v1890 = vunpack.c.l.b16 %v672
        %v1891 = vunpack.c.h.b16 %v672
        %v1892 = vunpack.c.l.b16 %v673
        %v1893 = vunpack.c.h.b16 %v673
        %v1894 = vunpack.c.l.b16 %v674
        %v1895 = vunpack.c.l.b16 %v675
        %v1896 = vunpack.c.h.b16 %v675
        %v1897 = vunpack.c.l.b16 %v676
        %v1898 = vunpack.c.h.b16 %v676
        %v1899 = vunpack.c.l.b16 %v677
        %v1900 = vunpack.c.h.b16 %v677
        %v1901 = vunpack.c.l.b16 %v678
        %v1902 = vunpack.c.l.b16 %v679
        %v1903 = vunpack.c.h.b16 %v679
        %v1904 = vunpack.c.l.b16 %v680
        %v1905 = vunpack.c.h.b16 %v680
        %v1906 = vunpack.c.l.b16 %v681
        %v1907 = vunpack.c.h.b16 %v681
        %v1908 = vunpack.c.l.b16 %v682
        %v1909 = vunpack.c.l.b16 %v683
        %v1910 = vunpack.c.h.b16 %v683
        %v1911 = vunpack.c.l.b16 %v684
        %v1912 = vunpack.c.h.b16 %v684
        %v1913 = vunpack.c.l.b16 %v685
        %v1914 = vunpack.c.h.b16 %v685
        %v1915 = vunpack.c.l.b16 %v686
        %v1916 = vunpack.c.l.b16 %v687
        %v1917 = vunpack.c.h.b16 %v687
        %v1918 = vunpack.c.l.b16 %v688
        %v1919 = vunpack.c.h.b16 %v688
        %v1920 = vunpack.c.l.b16 %v689
        %v1921 = vunpack.c.h.b16 %v689
        %v1922 = vunpack.c.l.b16 %v690
        %v1923 = vunpack.c.l.b16 %v691
        %v1924 = vunpack.c.h.b16 %v691
        %v1925 = vunpack.c.l.b16 %v692
        %v1926 = vunpack.c.h.b16 %v692
        %v1927 = vunpack.c.l.b16 %v693
        %v1928 = vunpack.c.h.b16 %v693
        %v1929 = vunpack.c.l.b16 %v694
        %v1930 = vunpack.c.l.b16 %v695
        %v1931 = vunpack.c.h.b16 %v695
        %v1932 = vunpack.c.l.b16 %v696
        %v1933 = vunpack.c.h.b16 %v696
        %v1934 = vunpack.c.l.b16 %v697
        %v1935 = vunpack.c.h.b16 %v697
        %v1936 = vunpack.c.l.b16 %v698
        %v1937 = vunpack.c.l.b16 %v699
        %v1938 = vunpack.c.h.b16 %v699
        %v1939 = vunpack.c.l.b16 %v700
        %v1940 = vunpack.c.h.b16 %v700
        %v1941 = vunpack.c.l.b16 %v701
        %v1942 = vunpack.c.h.b16 %v701
        %v1943 = vunpack.c.l.b16 %v702
        %v1944 = vunpack.c.l.b16 %v703
        %v1945 = vunpack.c.h.b16 %v703
        %v1946 = vunpack.c.l.b16 %v704
        %v1947 = vunpack.c.h.b16 %v704
        %v1948 = vunpack.c.l.b16 %v705
        %v1949 = vunpack.c.h.b16 %v705
        %v1950 = vunpack.c.l.b16 %v706
        %v1951 = vunpack.c.l.b16 %v707
        %v1952 = vunpack.c.h.b16 %v707
        %v1953 = vunpack.c.l.b16 %v708
        %v1954 = vunpack.c.h.b16 %v708
        %v1955 = vunpack.c.l.b16 %v709
        %v1956 = vunpack.c.h.b16 %v709
        %v1957 = vunpack.c.l.b16 %v710
        %v1958 = vunpack.c.l.b16 %v711
        %v1959 = vunpack.c.h.b16 %v711
        %v1960 = vunpack.c.l.b16 %v712
        %v1961 = vunpack.c.h.b16 %v712
        %v1962 = vunpack.c.l.b16 %v713
        %v1963 = vunpack.c.h.b16 %v713
        %v1964 = vunpack.c.l.b16 %v714
        %v1965 = vunpack.c.l.b16 %v715
        %v1966 = vunpack.c.h.b16 %v715
        %v1967 = vunpack.c.l.b16 %v716
        %v1968 = vunpack.c.h.b16 %v716
        %v1969 = vunpack.c.l.b16 %v717
        %v1970 = vunpack.c.h.b16 %v717
        %v1971 = vunpack.c.l.b16 %v718
        %v1972 = vunpack.c.l.b16 %v719
        %v1973 = vunpack.c.h.b16 %v719
        %v1974 = vunpack.c.l.b16 %v720
        %v1975 = vunpack.c.h.b16 %v720
        %v1976 = vunpack.c.l.b16 %v721
        %v1977 = vunpack.c.h.b16 %v721
        %v1978 = vunpack.c.l.b16 %v722
        %v1979 = vunpack.c.l.b16 %v723
        %v1980 = vunpack.c.h.b16 %v723
        %v1981 = vunpack.c.l.b16 %v724
        %v1982 = vunpack.c.h.b16 %v724
        %v1983 = vunpack.c.l.b16 %v725
        %v1984 = vunpack.c.h.b16 %v725
        %v1985 = vunpack.c.l.b16 %v726
        %v1986 = vunpack.c.l.b16 %v727
        %v1987 = vunpack.c.h.b16 %v727
        %v1988 = vunpack.c.l.b16 %v728
        %v1989 = vunpack.c.h.b16 %v728
        %v1990 = vunpack.c.l.b16 %v729
        %v1991 = vunpack.c.h.b16 %v729
        %v1992 = vunpack.c.l.b16 %v730
        %v1993 = vunpack.c.l.b16 %v731
        %v1994 = vunpack.c.h.b16 %v731
        %v1995 = vunpack.c.l.b16 %v732
        %v1996 = vunpack.c.h.b16 %v732
        %v1997 = vunpack.c.l.b16 %v733
        %v1998 = vunpack.c.h.b16 %v733
        %v1999 = vunpack.c.l.b16 %v734
        %v2000 = vunpack.c.l.b16 %v735
        %v2001 = vunpack.c.h.b16 %v735
        %v2002 = vunpack.c.l.b16 %v736
        %v2003 = vunpack.c.h.b16 %v736
        %v2004 = vunpack.c.l.b16 %v737
        %v2005 = vunpack.c.h.b16 %v737
        %v2006 = vunpack.c.l.b16 %v738
        %v2007 = vpack.c.b16 %v1230, %v1223
        %v2008 = vpack.c.b16 %v1231, %v1224
        %v2009 = vpack.c.b16 %v1232, %v1225
        %v2010 = vpack.c.b16 %v1233, %v1226
        %v2011 = vpack.c.b16 %v1234, %v1227
        %v2012 = vpack.c.b16 %v1235, %v1228
        %v2013 = vpack.c.b16 %v1236, %v1229
        %v2014 = vpack.c.b16 %v1244, %v1237
        %v2015 = vpack.c.b16 %v1245, %v1238
        %v2016 = vpack.c.b16 %v1246, %v1239
        %v2017 = vpack.c.b16 %v1247, %v1240
        %v2018 = vpack.c.b16 %v1248, %v1241
        %v2019 = vpack.c.b16 %v1249, %v1242
        %v2020 = vpack.c.b16 %v1250, %v1243
        %v2021 = vpack.c.b16 %v1258, %v1251
        %v2022 = vpack.c.b16 %v1259, %v1252
        %v2023 = vpack.c.b16 %v1260, %v1253
        %v2024 = vpack.c.b16 %v1261, %v1254
        %v2025 = vpack.c.b16 %v1262, %v1255
        %v2026 = vpack.c.b16 %v1263, %v1256
        %v2027 = vpack.c.b16 %v1264, %v1257
        %v2028 = vpack.c.b16 %v1272, %v1265
        %v2029 = vpack.c.b16 %v1273, %v1266
        %v2030 = vpack.c.b16 %v1274, %v1267
        %v2031 = vpack.c.b16 %v1275, %v1268
        %v2032 = vpack.c.b16 %v1276, %v1269
        %v2033 = vpack.c.b16 %v1277, %v1270
        %v2034 = vpack.c.b16 %v1278, %v1271
        %v2035 = vpack.c.b16 %v1286, %v1279
        %v2036 = vpack.c.b16 %v1287, %v1280
        %v2037 = vpack.c.b16 %v1288, %v1281
        %v2038 = vpack.c.b16 %v1289, %v1282
        %v2039 = vpack.c.b16 %v1290, %v1283
        %v2040 = vpack.c.b16 %v1291, %v1284
        %v2041 = vpack.c.b16 %v1292, %v1285
        %v2042 = vpack.c.b16 %v1300, %v1293
        %v2043 = vpack.c.b16 %v1301, %v1294
        %v2044 = vpack.c.b16 %v1302, %v1295
        %v2045 = vpack.c.b16 %v1303, %v1296
        %v2046 = vpack.c.b16 %v1304, %v1297
        %v2047 = vpack.c.b16 %v1305, %v1298
        %v2048 = vpack.c.b16 %v1306, %v1299
        %v2049 = vpack.c.b16 %v1314, %v1307
        %v2050 = vpack.c.b16 %v1315, %v1308
        %v2051 = vpack.c.b16 %v1316, %v1309
        %v2052 = vpack.c.b16 %v1317, %v1310
        %v2053 = vpack.c.b16 %v1318, %v1311
        %v2054 = vpack.c.b16 %v1319, %v1312
        %v2055 = vpack.c.b16 %v1320, %v1313
        %v2056 = vpack.c.b16 %v1328, %v1321
        %v2057 = vpack.c.b16 %v1329, %v1322
        %v2058 = vpack.c.b16 %v1330, %v1323
        %v2059 = vpack.c.b16 %v1331, %v1324
        %v2060 = vpack.c.b16 %v1332, %v1325
        %v2061 = vpack.c.b16 %v1333, %v1326
        %v2062 = vpack.c.b16 %v1334, %v1327
        %v2063 = vpack.c.b16 %v1342, %v1335
        %v2064 = vpack.c.b16 %v1343, %v1336
        %v2065 = vpack.c.b16 %v1344, %v1337
        %v2066 = vpack.c.b16 %v1345, %v1338
        %v2067 = vpack.c.b16 %v1346, %v1339
        %v2068 = vpack.c.b16 %v1347, %v1340
        %v2069 = vpack.c.b16 %v1348, %v1341
        %v2070 = vpack.c.b16 %v1356, %v1349
        %v2071 = vpack.c.b16 %v1357, %v1350
        %v2072 = vpack.c.b16 %v1358, %v1351
        %v2073 = vpack.c.b16 %v1359, %v1352
        %v2074 = vpack.c.b16 %v1360, %v1353
        %v2075 = vpack.c.b16 %v1361, %v1354
        %v2076 = vpack.c.b16 %v1362, %v1355
        %v2077 = vpack.c.b16 %v1370, %v1363
        %v2078 = vpack.c.b16 %v1371, %v1364
        %v2079 = vpack.c.b16 %v1372, %v1365
        %v2080 = vpack.c.b16 %v1373, %v1366
        %v2081 = vpack.c.b16 %v1374, %v1367
        %v2082 = vpack.c.b16 %v1375, %v1368
        %v2083 = vpack.c.b16 %v1376, %v1369
        %v2084 = vpack.c.b16 %v1384, %v1377
        %v2085 = vpack.c.b16 %v1385, %v1378
        %v2086 = vpack.c.b16 %v1386, %v1379
        %v2087 = vpack.c.b16 %v1387, %v1380
        %v2088 = vpack.c.b16 %v1388, %v1381
        %v2089 = vpack.c.b16 %v1389, %v1382
        %v2090 = vpack.c.b16 %v1390, %v1383
        %v2091 = vpack.c.b16 %v1398, %v1391
        %v2092 = vpack.c.b16 %v1399, %v1392
        %v2093 = vpack.c.b16 %v1400, %v1393
        %v2094 = vpack.c.b16 %v1401, %v1394
        %v2095 = vpack.c.b16 %v1402, %v1395
        %v2096 = vpack.c.b16 %v1403, %v1396
        %v2097 = vpack.c.b16 %v1404, %v1397
        %v2098 = vpack.c.b16 %v1412, %v1405
        %v2099 = vpack.c.b16 %v1413, %v1406
        %v2100 = vpack.c.b16 %v1414, %v1407
        %v2101 = vpack.c.b16 %v1415, %v1408
        %v2102 = vpack.c.b16 %v1416, %v1409
        %v2103 = vpack.c.b16 %v1417, %v1410
        %v2104 = vpack.c.b16 %v1418, %v1411
        %v2105 = vpack.c.b16 %v1426, %v1419
        %v2106 = vpack.c.b16 %v1427, %v1420
        %v2107 = vpack.c.b16 %v1428, %v1421
        %v2108 = vpack.c.b16 %v1429, %v1422
        %v2109 = vpack.c.b16 %v1430, %v1423
        %v2110 = vpack.c.b16 %v1431, %v1424
        %v2111 = vpack.c.b16 %v1432, %v1425
        %v2112 = vpack.c.b16 %v1440, %v1433
        %v2113 = vpack.c.b16 %v1441, %v1434
        %v2114 = vpack.c.b16 %v1442, %v1435
        %v2115 = vpack.c.b16 %v1443, %v1436
        %v2116 = vpack.c.b16 %v1444, %v1437
        %v2117 = vpack.c.b16 %v1445, %v1438
        %v2118 = vpack.c.b16 %v1446, %v1439
        %v2119 = vpack.c.b16 %v1454, %v1447
        %v2120 = vpack.c.b16 %v1455, %v1448
        %v2121 = vpack.c.b16 %v1456, %v1449
        %v2122 = vpack.c.b16 %v1457, %v1450
        %v2123 = vpack.c.b16 %v1458, %v1451
        %v2124 = vpack.c.b16 %v1459, %v1452
        %v2125 = vpack.c.b16 %v1460, %v1453
        %v2126 = vpack.c.b16 %v1468, %v1461
        %v2127 = vpack.c.b16 %v1469, %v1462
        %v2128 = vpack.c.b16 %v1470, %v1463
        %v2129 = vpack.c.b16 %v1471, %v1464
        %v2130 = vpack.c.b16 %v1472, %v1465
        %v2131 = vpack.c.b16 %v1473, %v1466
        %v2132 = vpack.c.b16 %v1474, %v1467
        %v2133 = vpack.c.b16 %v1482, %v1475
        %v2134 = vpack.c.b16 %v1483, %v1476
        %v2135 = vpack.c.b16 %v1484, %v1477
        %v2136 = vpack.c.b16 %v1485, %v1478
        %v2137 = vpack.c.b16 %v1486, %v1479
        %v2138 = vpack.c.b16 %v1487, %v1480
        %v2139 = vpack.c.b16 %v1488, %v1481
        %v2140 = vpack.c.b16 %v1496, %v1489
        %v2141 = vpack.c.b16 %v1497, %v1490
        %v2142 = vpack.c.b16 %v1498, %v1491
        %v2143 = vpack.c.b16 %v1499, %v1492
        %v2144 = vpack.c.b16 %v1500, %v1493
        %v2145 = vpack.c.b16 %v1501, %v1494
        %v2146 = vpack.c.b16 %v1502, %v1495
        %v2147 = vpack.c.b16 %v1510, %v1503
        %v2148 = vpack.c.b16 %v1511, %v1504
        %v2149 = vpack.c.b16 %v1512, %v1505
        %v2150 = vpack.c.b16 %v1513, %v1506
        %v2151 = vpack.c.b16 %v1514, %v1507
        %v2152 = vpack.c.b16 %v1515, %v1508
        %v2153 = vpack.c.b16 %v1516, %v1509
        %v2154 = vpack.c.b16 %v1524, %v1517
        %v2155 = vpack.c.b16 %v1525, %v1518
        %v2156 = vpack.c.b16 %v1526, %v1519
        %v2157 = vpack.c.b16 %v1527, %v1520
        %v2158 = vpack.c.b16 %v1528, %v1521
        %v2159 = vpack.c.b16 %v1529, %v1522
        %v2160 = vpack.c.b16 %v1530, %v1523
        %v2161 = vpack.c.b16 %v1538, %v1531
        %v2162 = vpack.c.b16 %v1539, %v1532
        %v2163 = vpack.c.b16 %v1540, %v1533
        %v2164 = vpack.c.b16 %v1541, %v1534
        %v2165 = vpack.c.b16 %v1542, %v1535
        %v2166 = vpack.c.b16 %v1543, %v1536
        %v2167 = vpack.c.b16 %v1544, %v1537
        %v2168 = vpack.c.b16 %v1552, %v1545
        %v2169 = vpack.c.b16 %v1553, %v1546
        %v2170 = vpack.c.b16 %v1554, %v1547
        %v2171 = vpack.c.b16 %v1555, %v1548
        %v2172 = vpack.c.b16 %v1556, %v1549
        %v2173 = vpack.c.b16 %v1557, %v1550
        %v2174 = vpack.c.b16 %v1558, %v1551
        %v2175 = vpack.c.b16 %v1566, %v1559
        %v2176 = vpack.c.b16 %v1567, %v1560
        %v2177 = vpack.c.b16 %v1568, %v1561
        %v2178 = vpack.c.b16 %v1569, %v1562
        %v2179 = vpack.c.b16 %v1570, %v1563
        %v2180 = vpack.c.b16 %v1571, %v1564
        %v2181 = vpack.c.b16 %v1572, %v1565
        %v2182 = vpack.c.b16 %v1580, %v1573
        %v2183 = vpack.c.b16 %v1581, %v1574
        %v2184 = vpack.c.b16 %v1582, %v1575
        %v2185 = vpack.c.b16 %v1583, %v1576
        %v2186 = vpack.c.b16 %v1584, %v1577
        %v2187 = vpack.c.b16 %v1585, %v1578
        %v2188 = vpack.c.b16 %v1586, %v1579
        %v2189 = vpack.c.b16 %v1594, %v1587
        %v2190 = vpack.c.b16 %v1595, %v1588
        %v2191 = vpack.c.b16 %v1596, %v1589
        %v2192 = vpack.c.b16 %v1597, %v1590
        %v2193 = vpack.c.b16 %v1598, %v1591
        %v2194 = vpack.c.b16 %v1599, %v1592
        %v2195 = vpack.c.b16 %v1600, %v1593
        %v2196 = vpack.c.b16 %v1608, %v1601
        %v2197 = vpack.c.b16 %v1609, %v1602
        %v2198 = vpack.c.b16 %v1610, %v1603
        %v2199 = vpack.c.b16 %v1611, %v1604
        %v2200 = vpack.c.b16 %v1612, %v1605
        %v2201 = vpack.c.b16 %v1613, %v1606
        %v2202 = vpack.c.b16 %v1614, %v1607
        %v2203 = vpack.c.b16 %v1622, %v1615
        %v2204 = vpack.c.b16 %v1623, %v1616
        %v2205 = vpack.c.b16 %v1624, %v1617
        %v2206 = vpack.c.b16 %v1625, %v1618
        %v2207 = vpack.c.b16 %v1626, %v1619
        %v2208 = vpack.c.b16 %v1627, %v1620
        %v2209 = vpack.c.b16 %v1628, %v1621
        %v2210 = vpack.c.b16 %v1636, %v1629
        %v2211 = vpack.c.b16 %v1637, %v1630
        %v2212 = vpack.c.b16 %v1638, %v1631
        %v2213 = vpack.c.b16 %v1639, %v1632
        %v2214 = vpack.c.b16 %v1640, %v1633
        %v2215 = vpack.c.b16 %v1641, %v1634
        %v2216 = vpack.c.b16 %v1642, %v1635
        %v2217 = vpack.c.b16 %v1650, %v1643
        %v2218 = vpack.c.b16 %v1651, %v1644
        %v2219 = vpack.c.b16 %v1652, %v1645
        %v2220 = vpack.c.b16 %v1653, %v1646
        %v2221 = vpack.c.b16 %v1654, %v1647
        %v2222 = vpack.c.b16 %v1655, %v1648
        %v2223 = vpack.c.b16 %v1656, %v1649
        %v2224 = vpack.c.b16 %v1664, %v1657
        %v2225 = vpack.c.b16 %v1665, %v1658
        %v2226 = vpack.c.b16 %v1666, %v1659
        %v2227 = vpack.c.b16 %v1667, %v1660
        %v2228 = vpack.c.b16 %v1668, %v1661
        %v2229 = vpack.c.b16 %v1669, %v1662
        %v2230 = vpack.c.b16 %v1670, %v1663
        %v2231 = vpack.c.b16 %v1678, %v1671
        %v2232 = vpack.c.b16 %v1679, %v1672
        %v2233 = vpack.c.b16 %v1680, %v1673
        %v2234 = vpack.c.b16 %v1681, %v1674
        %v2235 = vpack.c.b16 %v1682, %v1675
        %v2236 = vpack.c.b16 %v1683, %v1676
        %v2237 = vpack.c.b16 %v1684, %v1677
        %v2238 = vpack.c.b16 %v1692, %v1685
        %v2239 = vpack.c.b16 %v1693, %v1686
        %v2240 = vpack.c.b16 %v1694, %v1687
        %v2241 = vpack.c.b16 %v1695, %v1688
        %v2242 = vpack.c.b16 %v1696, %v1689
        %v2243 = vpack.c.b16 %v1697, %v1690
        %v2244 = vpack.c.b16 %v1698, %v1691
        %v2245 = vpack.c.b16 %v1706, %v1699
        %v2246 = vpack.c.b16 %v1707, %v1700
        %v2247 = vpack.c.b16 %v1708, %v1701
        %v2248 = vpack.c.b16 %v1709, %v1702
        %v2249 = vpack.c.b16 %v1710, %v1703
        %v2250 = vpack.c.b16 %v1711, %v1704
        %v2251 = vpack.c.b16 %v1712, %v1705
        %v2252 = vpack.c.b16 %v1720, %v1713
        %v2253 = vpack.c.b16 %v1721, %v1714
        %v2254 = vpack.c.b16 %v1722, %v1715
        %v2255 = vpack.c.b16 %v1723, %v1716
        %v2256 = vpack.c.b16 %v1724, %v1717
        %v2257 = vpack.c.b16 %v1725, %v1718
        %v2258 = vpack.c.b16 %v1726, %v1719
        %v2259 = vpack.c.b16 %v1734, %v1727
        %v2260 = vpack.c.b16 %v1735, %v1728
        %v2261 = vpack.c.b16 %v1736, %v1729
        %v2262 = vpack.c.b16 %v1737, %v1730
        %v2263 = vpack.c.b16 %v1738, %v1731
        %v2264 = vpack.c.b16 %v1739, %v1732
        %v2265 = vpack.c.b16 %v1740, %v1733
        %v2266 = vpack.c.b16 %v1748, %v1741
        %v2267 = vpack.c.b16 %v1749, %v1742
        %v2268 = vpack.c.b16 %v1750, %v1743
        %v2269 = vpack.c.b16 %v1751, %v1744
        %v2270 = vpack.c.b16 %v1752, %v1745
        %v2271 = vpack.c.b16 %v1753, %v1746
        %v2272 = vpack.c.b16 %v1754, %v1747
        %v2273 = vpack.c.b16 %v1762, %v1755
        %v2274 = vpack.c.b16 %v1763, %v1756
        %v2275 = vpack.c.b16 %v1764, %v1757
        %v2276 = vpack.c.b16 %v1765, %v1758
        %v2277 = vpack.c.b16 %v1766, %v1759
        %v2278 = vpack.c.b16 %v1767, %v1760
        %v2279 = vpack.c.b16 %v1768, %v1761
        %v2280 = vpack.c.b16 %v1776, %v1769
        %v2281 = vpack.c.b16 %v1777, %v1770
        %v2282 = vpack.c.b16 %v1778, %v1771
        %v2283 = vpack.c.b16 %v1779, %v1772
        %v2284 = vpack.c.b16 %v1780, %v1773
        %v2285 = vpack.c.b16 %v1781, %v1774
        %v2286 = vpack.c.b16 %v1782, %v1775
        %v2287 = vpack.c.b16 %v1790, %v1783
        %v2288 = vpack.c.b16 %v1791, %v1784
        %v2289 = vpack.c.b16 %v1792, %v1785
        %v2290 = vpack.c.b16 %v1793, %v1786
        %v2291 = vpack.c.b16 %v1794, %v1787
        %v2292 = vpack.c.b16 %v1795, %v1788
        %v2293 = vpack.c.b16 %v1796, %v1789
        %v2294 = vpack.c.b16 %v1804, %v1797
        %v2295 = vpack.c.b16 %v1805, %v1798
        %v2296 = vpack.c.b16 %v1806, %v1799
        %v2297 = vpack.c.b16 %v1807, %v1800
        %v2298 = vpack.c.b16 %v1808, %v1801
        %v2299 = vpack.c.b16 %v1809, %v1802
        %v2300 = vpack.c.b16 %v1810, %v1803
        %v2301 = vpack.c.b16 %v1818, %v1811
        %v2302 = vpack.c.b16 %v1819, %v1812
        %v2303 = vpack.c.b16 %v1820, %v1813
        %v2304 = vpack.c.b16 %v1821, %v1814
        %v2305 = vpack.c.b16 %v1822, %v1815
        %v2306 = vpack.c.b16 %v1823, %v1816
        %v2307 = vpack.c.b16 %v1824, %v1817
        %v2308 = vpack.c.b16 %v1832, %v1825
        %v2309 = vpack.c.b16 %v1833, %v1826
        %v2310 = vpack.c.b16 %v1834, %v1827
        %v2311 = vpack.c.b16 %v1835, %v1828
        %v2312 = vpack.c.b16 %v1836, %v1829
        %v2313 = vpack.c.b16 %v1837, %v1830
        %v2314 = vpack.c.b16 %v1838, %v1831
        %v2315 = vpack.c.b16 %v1846, %v1839
        %v2316 = vpack.c.b16 %v1847, %v1840
        %v2317 = vpack.c.b16 %v1848, %v1841
        %v2318 = vpack.c.b16 %v1849, %v1842
        %v2319 = vpack.c.b16 %v1850, %v1843
        %v2320 = vpack.c.b16 %v1851, %v1844
        %v2321 = vpack.c.b16 %v1852, %v1845
        %v2322 = vpack.c.b16 %v1860, %v1853
        %v2323 = vpack.c.b16 %v1861, %v1854
        %v2324 = vpack.c.b16 %v1862, %v1855
        %v2325 = vpack.c.b16 %v1863, %v1856
        %v2326 = vpack.c.b16 %v1864, %v1857
        %v2327 = vpack.c.b16 %v1865, %v1858
        %v2328 = vpack.c.b16 %v1866, %v1859
        %v2329 = vpack.c.b16 %v1874, %v1867
        %v2330 = vpack.c.b16 %v1875, %v1868
        %v2331 = vpack.c.b16 %v1876, %v1869
        %v2332 = vpack.c.b16 %v1877, %v1870
        %v2333 = vpack.c.b16 %v1878, %v1871
        %v2334 = vpack.c.b16 %v1879, %v1872
        %v2335 = vpack.c.b16 %v1880, %v1873
        %v2336 = vpack.c.b16 %v1888, %v1881
        %v2337 = vpack.c.b16 %v1889, %v1882
        %v2338 = vpack.c.b16 %v1890, %v1883
        %v2339 = vpack.c.b16 %v1891, %v1884
        %v2340 = vpack.c.b16 %v1892, %v1885
        %v2341 = vpack.c.b16 %v1893, %v1886
        %v2342 = vpack.c.b16 %v1894, %v1887
        %v2343 = vpack.c.b16 %v1902, %v1895
        %v2344 = vpack.c.b16 %v1903, %v1896
        %v2345 = vpack.c.b16 %v1904, %v1897
        %v2346 = vpack.c.b16 %v1905, %v1898
        %v2347 = vpack.c.b16 %v1906, %v1899
        %v2348 = vpack.c.b16 %v1907, %v1900
        %v2349 = vpack.c.b16 %v1908, %v1901
        %v2350 = vpack.c.b16 %v1916, %v1909
        %v2351 = vpack.c.b16 %v1917, %v1910
        %v2352 = vpack.c.b16 %v1918, %v1911
        %v2353 = vpack.c.b16 %v1919, %v1912
        %v2354 = vpack.c.b16 %v1920, %v1913
        %v2355 = vpack.c.b16 %v1921, %v1914
        %v2356 = vpack.c.b16 %v1922, %v1915
        %v2357 = vpack.c.b16 %v1930, %v1923
        %v2358 = vpack.c.b16 %v1931, %v1924
        %v2359 = vpack.c.b16 %v1932, %v1925
        %v2360 = vpack.c.b16 %v1933, %v1926
        %v2361 = vpack.c.b16 %v1934, %v1927
        %v2362 = vpack.c.b16 %v1935, %v1928
        %v2363 = vpack.c.b16 %v1936, %v1929
        %v2364 = vpack.c.b16 %v1944, %v1937
        %v2365 = vpack.c.b16 %v1945, %v1938
        %v2366 = vpack.c.b16 %v1946, %v1939
        %v2367 = vpack.c.b16 %v1947, %v1940
        %v2368 = vpack.c.b16 %v1948, %v1941
        %v2369 = vpack.c.b16 %v1949, %v1942
        %v2370 = vpack.c.b16 %v1950, %v1943
        %v2371 = vpack.c.b16 %v1958, %v1951
        %v2372 = vpack.c.b16 %v1959, %v1952
        %v2373 = vpack.c.b16 %v1960, %v1953
        %v2374 = vpack.c.b16 %v1961, %v1954
        %v2375 = vpack.c.b16 %v1962, %v1955
        %v2376 = vpack.c.b16 %v1963, %v1956
        %v2377 = vpack.c.b16 %v1964, %v1957
        %v2378 = vpack.c.b16 %v1972, %v1965
        %v2379 = vpack.c.b16 %v1973, %v1966
        %v2380 = vpack.c.b16 %v1974, %v1967
        %v2381 = vpack.c.b16 %v1975, %v1968
        %v2382 = vpack.c.b16 %v1976, %v1969
        %v2383 = vpack.c.b16 %v1977, %v1970
        %v2384 = vpack.c.b16 %v1978, %v1971
        %v2385 = vpack.c.b16 %v1986, %v1979
        %v2386 = vpack.c.b16 %v1987, %v1980
        %v2387 = vpack.c.b16 %v1988, %v1981
        %v2388 = vpack.c.b16 %v1989, %v1982
        %v2389 = vpack.c.b16 %v1990, %v1983
        %v2390 = vpack.c.b16 %v1991, %v1984
        %v2391 = vpack.c.b16 %v1992, %v1985
        %v2392 = vpack.c.b16 %v2000, %v1993
        %v2393 = vpack.c.b16 %v2001, %v1994
        %v2394 = vpack.c.b16 %v2002, %v1995
        %v2395 = vpack.c.b16 %v2003, %v1996
        %v2396 = vpack.c.b16 %v2004, %v1997
        %v2397 = vpack.c.b16 %v2005, %v1998
        %v2398 = vpack.c.b16 %v2006, %v1999
        %2791 = vmatprep.subr.bf16.mxu0 %v2057
        %2792 = vmatpush1.bf16.msra.mxu0 %v2056
        %2793 = vmatprep.subr.bf16.mxu0 %v2050
        %2794 = vmatpush1.bf16.msra.mxu0 %v2049
        %2795 = vmatprep.subr.bf16.mxu0 %v2043
        %2796 = vmatpush1.bf16.msra.mxu0 %v2042
        %2797 = vmatprep.subr.bf16.mxu0 %v2036
        %2798 = vmatpush1.bf16.msra.mxu0 %v2035
        %2799 = vmatprep.subr.bf16.mxu0 %v2029
        %2800 = vmatpush1.bf16.msra.mxu0 %v2028
        %2801 = vmatprep.subr.bf16.mxu0 %v2022
        %2802 = vmatpush1.bf16.msra.mxu0 %v2021
        %2803 = vmatprep.subr.bf16.mxu0 %v2015
        %2804 = vmatpush1.bf16.msra.mxu0 %v2014
        %2805 = vmatprep.subr.bf16.mxu0 %v2008
        %2806 = vmatpush1.bf16.msra.mxu0 %v2007
        %2807 = vmatprep.subr.bf16.mxu0 %v2113
        %2808 = vmatpush2.bf16.msra.mxu0 %v2112
        %2809 = vmatprep.subr.bf16.mxu0 %v2106
        %2810 = vmatpush2.bf16.msra.mxu0 %v2105
        %2811 = vmatprep.subr.bf16.mxu0 %v2099
        %2812 = vmatpush2.bf16.msra.mxu0 %v2098
        %2813 = vmatprep.subr.bf16.mxu0 %v2092
        %2814 = vmatpush2.bf16.msra.mxu0 %v2091
        %2815 = vmatprep.subr.bf16.mxu0 %v2085
        %2816 = vmatpush2.bf16.msra.mxu0 %v2084
        %2817 = vmatprep.subr.bf16.mxu0 %v2078
        %2818 = vmatpush2.bf16.msra.mxu0 %v2077
        %2819 = vmatprep.subr.bf16.mxu0 %v2071
        %2820 = vmatpush2.bf16.msra.mxu0 %v2070
        %2821 = vmatprep.subr.bf16.mxu0 %v2064
        %2822 = vmatpush2.bf16.msra.mxu0 %v2063
        %2823 = vmatprep.mubr.bf16.mxu0 %v762
        %2824 = vmatmul.mubr.bf16.gmra.mxu0 %v761
        %v2825 = vpop.f32.mrf.mxu0
        %v2826 = vadd.f32 0.0, %v2825
        %v2827 = vpop.f32.mrf.mxu0
        %v2828 = vadd.f32 0.0, %v2827
        %v2829 = vpop.f32.mrf.mxu0
        %v2830 = vadd.f32 0.0, %v2829
        %v2831 = vpop.f32.mrf.mxu0
        %v2832 = vadd.f32 0.0, %v2831
        %2833 = vdwg.mxu0
        %2834 = vmatprep.subr.bf16.mxu0 %v2169
        %2835 = vmatpush1.bf16.msra.mxu0 %v2168
        %2836 = vmatprep.subr.bf16.mxu0 %v2162
        %2837 = vmatpush1.bf16.msra.mxu0 %v2161
        %2838 = vmatprep.subr.bf16.mxu0 %v2155
        %2839 = vmatpush1.bf16.msra.mxu0 %v2154
        %2840 = vmatprep.subr.bf16.mxu0 %v2148
        %2841 = vmatpush1.bf16.msra.mxu0 %v2147
        %2842 = vmatprep.subr.bf16.mxu0 %v2141
        %2843 = vmatpush1.bf16.msra.mxu0 %v2140
        %2844 = vmatprep.subr.bf16.mxu0 %v2134
        %2845 = vmatpush1.bf16.msra.mxu0 %v2133
        %2846 = vmatprep.subr.bf16.mxu0 %v2127
        %2847 = vmatpush1.bf16.msra.mxu0 %v2126
        %2848 = vmatprep.subr.bf16.mxu0 %v2120
        %2849 = vmatpush1.bf16.msra.mxu0 %v2119
        %2850 = vmatprep.subr.bf16.mxu0 %v2225
        %2851 = vmatpush2.bf16.msra.mxu0 %v2224
        %2852 = vmatprep.subr.bf16.mxu0 %v2218
        %2853 = vmatpush2.bf16.msra.mxu0 %v2217
        %2854 = vmatprep.subr.bf16.mxu0 %v2211
        %2855 = vmatpush2.bf16.msra.mxu0 %v2210
        %2856 = vmatprep.subr.bf16.mxu0 %v2204
        %2857 = vmatpush2.bf16.msra.mxu0 %v2203
        %2858 = vmatprep.subr.bf16.mxu0 %v2197
        %2859 = vmatpush2.bf16.msra.mxu0 %v2196
        %2860 = vmatprep.subr.bf16.mxu0 %v2190
        %2861 = vmatpush2.bf16.msra.mxu0 %v2189
        %2862 = vmatprep.subr.bf16.mxu0 %v2183
        %2863 = vmatpush2.bf16.msra.mxu0 %v2182
        %2864 = vmatprep.subr.bf16.mxu0 %v2176
        %2865 = vmatpush2.bf16.msra.mxu0 %v2175
        %2866 = vmatprep.mubr.bf16.mxu0 %v764
        %2867 = vmatmul.mubr.bf16.gmra.mxu0 %v763
        %v2868 = vpop.f32.mrf.mxu0
        %v2869 = vadd.f32 %v2826, %v2868
        %v2870 = vpop.f32.mrf.mxu0
        %v2871 = vadd.f32 %v2828, %v2870
        %v2872 = vpop.f32.mrf.mxu0
        %v2873 = vadd.f32 %v2830, %v2872
        %v2874 = vpop.f32.mrf.mxu0
        %v2875 = vadd.f32 %v2832, %v2874
        %2876 = vdwg.mxu0
        %2877 = vmatprep.subr.bf16.mxu0 %v2281
        %2878 = vmatpush1.bf16.msra.mxu0 %v2280
        %2879 = vmatprep.subr.bf16.mxu0 %v2274
        %2880 = vmatpush1.bf16.msra.mxu0 %v2273
        %2881 = vmatprep.subr.bf16.mxu0 %v2267
        %2882 = vmatpush1.bf16.msra.mxu0 %v2266
        %2883 = vmatprep.subr.bf16.mxu0 %v2260
        %2884 = vmatpush1.bf16.msra.mxu0 %v2259
        %2885 = vmatprep.subr.bf16.mxu0 %v2253
        %2886 = vmatpush1.bf16.msra.mxu0 %v2252
        %2887 = vmatprep.subr.bf16.mxu0 %v2246
        %2888 = vmatpush1.bf16.msra.mxu0 %v2245
        %2889 = vmatprep.subr.bf16.mxu0 %v2239
        %2890 = vmatpush1.bf16.msra.mxu0 %v2238
        %2891 = vmatprep.subr.bf16.mxu0 %v2232
        %2892 = vmatpush1.bf16.msra.mxu0 %v2231
        %2893 = vmatprep.subr.bf16.mxu0 %v2337
        %2894 = vmatpush2.bf16.msra.mxu0 %v2336
        %2895 = vmatprep.subr.bf16.mxu0 %v2330
        %2896 = vmatpush2.bf16.msra.mxu0 %v2329
        %2897 = vmatprep.subr.bf16.mxu0 %v2323
        %2898 = vmatpush2.bf16.msra.mxu0 %v2322
        %2899 = vmatprep.subr.bf16.mxu0 %v2316
        %2900 = vmatpush2.bf16.msra.mxu0 %v2315
        %2901 = vmatprep.subr.bf16.mxu0 %v2309
        %2902 = vmatpush2.bf16.msra.mxu0 %v2308
        %2903 = vmatprep.subr.bf16.mxu0 %v2302
        %2904 = vmatpush2.bf16.msra.mxu0 %v2301
        %2905 = vmatprep.subr.bf16.mxu0 %v2295
        %2906 = vmatpush2.bf16.msra.mxu0 %v2294
        %2907 = vmatprep.subr.bf16.mxu0 %v2288
        %2908 = vmatpush2.bf16.msra.mxu0 %v2287
        %2909 = vmatprep.mubr.bf16.mxu0 %v766
        %2910 = vmatmul.mubr.bf16.gmra.mxu0 %v765
        %v2911 = vpop.f32.mrf.mxu0
        %v2912 = vadd.f32 %v2869, %v2911
        %v2913 = vpop.f32.mrf.mxu0
        %v2914 = vadd.f32 %v2871, %v2913
        %v2915 = vpop.f32.mrf.mxu0
        %v2916 = vadd.f32 %v2873, %v2915
        %v2917 = vpop.f32.mrf.mxu0
        %v2918 = vadd.f32 %v2875, %v2917
        %2919 = vdwg.mxu0
        %2920 = vmatprep.subr.bf16.mxu0 %v2393
        %2921 = vmatpush1.bf16.msra.mxu0 %v2392
        %2922 = vmatprep.subr.bf16.mxu0 %v2386
        %2923 = vmatpush1.bf16.msra.mxu0 %v2385
        %2924 = vmatprep.subr.bf16.mxu0 %v2379
        %2925 = vmatpush1.bf16.msra.mxu0 %v2378
        %2926 = vmatprep.subr.bf16.mxu0 %v2372
        %2927 = vmatpush1.bf16.msra.mxu0 %v2371
        %2928 = vmatprep.subr.bf16.mxu0 %v2365
        %2929 = vmatpush1.bf16.msra.mxu0 %v2364
        %2930 = vmatprep.subr.bf16.mxu0 %v2358
        %2931 = vmatpush1.bf16.msra.mxu0 %v2357
        %2932 = vmatprep.subr.bf16.mxu0 %v2351
        %2933 = vmatpush1.bf16.msra.mxu0 %v2350
        %2934 = vmatprep.subr.bf16.mxu0 %v2344
        %2935 = vmatpush1.bf16.msra.mxu0 %v2343
        %2936 = vmatprep.subr.bf16.mxu0 0
        %2937 = vmatpush2.bf16.msra.mxu0 0
        %2938 = vmatprep.subr.bf16.mxu0 0
        %2939 = vmatpush2.bf16.msra.mxu0 0
        %2940 = vmatprep.subr.bf16.mxu0 0
        %2941 = vmatpush2.bf16.msra.mxu0 0
        %2942 = vmatprep.subr.bf16.mxu0 0
        %2943 = vmatpush2.bf16.msra.mxu0 0
        %2944 = vmatprep.subr.bf16.mxu0 0
        %2945 = vmatpush2.bf16.msra.mxu0 0
        %2946 = vmatprep.subr.bf16.mxu0 0
        %2947 = vmatpush2.bf16.msra.mxu0 0
        %2948 = vmatprep.subr.bf16.mxu0 0
        %2949 = vmatpush2.bf16.msra.mxu0 0
        %2950 = vmatprep.subr.bf16.mxu0 0
        %2951 = vmatpush2.bf16.msra.mxu0 0
        %2952 = vmatprep.mubr.bf16.mxu0 0
        %2953 = vmatmul.mubr.bf16.gmra.mxu0 %v767
        %v2954 = vpop.f32.mrf.mxu0
        %v2955 = vadd.f32 %v2912, %v2954
        %v2956 = vpop.f32.mrf.mxu0
        %v2957 = vadd.f32 %v2914, %v2956
        %v2958 = vpop.f32.mrf.mxu0
        %v2959 = vadd.f32 %v2916, %v2958
        %v2960 = vpop.f32.mrf.mxu0
        %v2961 = vadd.f32 %v2918, %v2960
        %2962 = vdwg.mxu0
        %2963 = vmatprep.subr.bf16.mxu0 %v2059
        %2964 = vmatpush1.bf16.msra.mxu0 %v2058
        %2965 = vmatprep.subr.bf16.mxu0 %v2052
        %2966 = vmatpush1.bf16.msra.mxu0 %v2051
        %2967 = vmatprep.subr.bf16.mxu0 %v2045
        %2968 = vmatpush1.bf16.msra.mxu0 %v2044
        %2969 = vmatprep.subr.bf16.mxu0 %v2038
        %2970 = vmatpush1.bf16.msra.mxu0 %v2037
        %2971 = vmatprep.subr.bf16.mxu0 %v2031
        %2972 = vmatpush1.bf16.msra.mxu0 %v2030
        %2973 = vmatprep.subr.bf16.mxu0 %v2024
        %2974 = vmatpush1.bf16.msra.mxu0 %v2023
        %2975 = vmatprep.subr.bf16.mxu0 %v2017
        %2976 = vmatpush1.bf16.msra.mxu0 %v2016
        %2977 = vmatprep.subr.bf16.mxu0 %v2010
        %2978 = vmatpush1.bf16.msra.mxu0 %v2009
        %2979 = vmatprep.subr.bf16.mxu0 %v2115
        %2980 = vmatpush2.bf16.msra.mxu0 %v2114
        %2981 = vmatprep.subr.bf16.mxu0 %v2108
        %2982 = vmatpush2.bf16.msra.mxu0 %v2107
        %2983 = vmatprep.subr.bf16.mxu0 %v2101
        %2984 = vmatpush2.bf16.msra.mxu0 %v2100
        %2985 = vmatprep.subr.bf16.mxu0 %v2094
        %2986 = vmatpush2.bf16.msra.mxu0 %v2093
        %2987 = vmatprep.subr.bf16.mxu0 %v2087
        %2988 = vmatpush2.bf16.msra.mxu0 %v2086
        %2989 = vmatprep.subr.bf16.mxu0 %v2080
        %2990 = vmatpush2.bf16.msra.mxu0 %v2079
        %2991 = vmatprep.subr.bf16.mxu0 %v2073
        %2992 = vmatpush2.bf16.msra.mxu0 %v2072
        %2993 = vmatprep.subr.bf16.mxu0 %v2066
        %2994 = vmatpush2.bf16.msra.mxu0 %v2065
        %2995 = vmatprep.mubr.bf16.mxu0 %v762
        %2996 = vmatmul.mubr.bf16.gmra.mxu0 %v761
        %v2997 = vpop.f32.mrf.mxu0
        %v2998 = vadd.f32 0.0, %v2997
        %v2999 = vpop.f32.mrf.mxu0
        %v3000 = vadd.f32 0.0, %v2999
        %v3001 = vpop.f32.mrf.mxu0
        %v3002 = vadd.f32 0.0, %v3001
        %v3003 = vpop.f32.mrf.mxu0
        %v3004 = vadd.f32 0.0, %v3003
        %3005 = vdwg.mxu0
        %3006 = vmatprep.subr.bf16.mxu0 %v2171
        %3007 = vmatpush1.bf16.msra.mxu0 %v2170
        %3008 = vmatprep.subr.bf16.mxu0 %v2164
        %3009 = vmatpush1.bf16.msra.mxu0 %v2163
        %3010 = vmatprep.subr.bf16.mxu0 %v2157
        %3011 = vmatpush1.bf16.msra.mxu0 %v2156
        %3012 = vmatprep.subr.bf16.mxu0 %v2150
        %3013 = vmatpush1.bf16.msra.mxu0 %v2149
        %3014 = vmatprep.subr.bf16.mxu0 %v2143
        %3015 = vmatpush1.bf16.msra.mxu0 %v2142
        %3016 = vmatprep.subr.bf16.mxu0 %v2136
        %3017 = vmatpush1.bf16.msra.mxu0 %v2135
        %3018 = vmatprep.subr.bf16.mxu0 %v2129
        %3019 = vmatpush1.bf16.msra.mxu0 %v2128
        %3020 = vmatprep.subr.bf16.mxu0 %v2122
        %3021 = vmatpush1.bf16.msra.mxu0 %v2121
        %3022 = vmatprep.subr.bf16.mxu0 %v2227
        %3023 = vmatpush2.bf16.msra.mxu0 %v2226
        %3024 = vmatprep.subr.bf16.mxu0 %v2220
        %3025 = vmatpush2.bf16.msra.mxu0 %v2219
        %3026 = vmatprep.subr.bf16.mxu0 %v2213
        %3027 = vmatpush2.bf16.msra.mxu0 %v2212
        %3028 = vmatprep.subr.bf16.mxu0 %v2206
        %3029 = vmatpush2.bf16.msra.mxu0 %v2205
        %3030 = vmatprep.subr.bf16.mxu0 %v2199
        %3031 = vmatpush2.bf16.msra.mxu0 %v2198
        %3032 = vmatprep.subr.bf16.mxu0 %v2192
        %3033 = vmatpush2.bf16.msra.mxu0 %v2191
        %3034 = vmatprep.subr.bf16.mxu0 %v2185
        %3035 = vmatpush2.bf16.msra.mxu0 %v2184
        %3036 = vmatprep.subr.bf16.mxu0 %v2178
        %3037 = vmatpush2.bf16.msra.mxu0 %v2177
        %3038 = vmatprep.mubr.bf16.mxu0 %v764
        %3039 = vmatmul.mubr.bf16.gmra.mxu0 %v763
        %v3040 = vpop.f32.mrf.mxu0
        %v3041 = vadd.f32 %v2998, %v3040
        %v3042 = vpop.f32.mrf.mxu0
        %v3043 = vadd.f32 %v3000, %v3042
        %v3044 = vpop.f32.mrf.mxu0
        %v3045 = vadd.f32 %v3002, %v3044
        %v3046 = vpop.f32.mrf.mxu0
        %v3047 = vadd.f32 %v3004, %v3046
        %3048 = vdwg.mxu0
        %3049 = vmatprep.subr.bf16.mxu0 %v2283
        %3050 = vmatpush1.bf16.msra.mxu0 %v2282
        %3051 = vmatprep.subr.bf16.mxu0 %v2276
        %3052 = vmatpush1.bf16.msra.mxu0 %v2275
        %3053 = vmatprep.subr.bf16.mxu0 %v2269
        %3054 = vmatpush1.bf16.msra.mxu0 %v2268
        %3055 = vmatprep.subr.bf16.mxu0 %v2262
        %3056 = vmatpush1.bf16.msra.mxu0 %v2261
        %3057 = vmatprep.subr.bf16.mxu0 %v2255
        %3058 = vmatpush1.bf16.msra.mxu0 %v2254
        %3059 = vmatprep.subr.bf16.mxu0 %v2248
        %3060 = vmatpush1.bf16.msra.mxu0 %v2247
        %3061 = vmatprep.subr.bf16.mxu0 %v2241
        %3062 = vmatpush1.bf16.msra.mxu0 %v2240
        %3063 = vmatprep.subr.bf16.mxu0 %v2234
        %3064 = vmatpush1.bf16.msra.mxu0 %v2233
        %3065 = vmatprep.subr.bf16.mxu0 %v2339
        %3066 = vmatpush2.bf16.msra.mxu0 %v2338
        %3067 = vmatprep.subr.bf16.mxu0 %v2332
        %3068 = vmatpush2.bf16.msra.mxu0 %v2331
        %3069 = vmatprep.subr.bf16.mxu0 %v2325
        %3070 = vmatpush2.bf16.msra.mxu0 %v2324
        %3071 = vmatprep.subr.bf16.mxu0 %v2318
        %3072 = vmatpush2.bf16.msra.mxu0 %v2317
        %3073 = vmatprep.subr.bf16.mxu0 %v2311
        %3074 = vmatpush2.bf16.msra.mxu0 %v2310
        %3075 = vmatprep.subr.bf16.mxu0 %v2304
        %3076 = vmatpush2.bf16.msra.mxu0 %v2303
        %3077 = vmatprep.subr.bf16.mxu0 %v2297
        %3078 = vmatpush2.bf16.msra.mxu0 %v2296
        %3079 = vmatprep.subr.bf16.mxu0 %v2290
        %3080 = vmatpush2.bf16.msra.mxu0 %v2289
        %3081 = vmatprep.mubr.bf16.mxu0 %v766
        %3082 = vmatmul.mubr.bf16.gmra.mxu0 %v765
        %v3083 = vpop.f32.mrf.mxu0
        %v3084 = vadd.f32 %v3041, %v3083
        %v3085 = vpop.f32.mrf.mxu0
        %v3086 = vadd.f32 %v3043, %v3085
        %v3087 = vpop.f32.mrf.mxu0
        %v3088 = vadd.f32 %v3045, %v3087
        %v3089 = vpop.f32.mrf.mxu0
        %v3090 = vadd.f32 %v3047, %v3089
        %3091 = vdwg.mxu0
        %3092 = vmatprep.subr.bf16.mxu0 %v2395
        %3093 = vmatpush1.bf16.msra.mxu0 %v2394
        %3094 = vmatprep.subr.bf16.mxu0 %v2388
        %3095 = vmatpush1.bf16.msra.mxu0 %v2387
        %3096 = vmatprep.subr.bf16.mxu0 %v2381
        %3097 = vmatpush1.bf16.msra.mxu0 %v2380
        %3098 = vmatprep.subr.bf16.mxu0 %v2374
        %3099 = vmatpush1.bf16.msra.mxu0 %v2373
        %3100 = vmatprep.subr.bf16.mxu0 %v2367
        %3101 = vmatpush1.bf16.msra.mxu0 %v2366
        %3102 = vmatprep.subr.bf16.mxu0 %v2360
        %3103 = vmatpush1.bf16.msra.mxu0 %v2359
        %3104 = vmatprep.subr.bf16.mxu0 %v2353
        %3105 = vmatpush1.bf16.msra.mxu0 %v2352
        %3106 = vmatprep.subr.bf16.mxu0 %v2346
        %3107 = vmatpush1.bf16.msra.mxu0 %v2345
        %3108 = vmatprep.subr.bf16.mxu0 0
        %3109 = vmatpush2.bf16.msra.mxu0 0
        %3110 = vmatprep.subr.bf16.mxu0 0
        %3111 = vmatpush2.bf16.msra.mxu0 0
        %3112 = vmatprep.subr.bf16.mxu0 0
        %3113 = vmatpush2.bf16.msra.mxu0 0
        %3114 = vmatprep.subr.bf16.mxu0 0
        %3115 = vmatpush2.bf16.msra.mxu0 0
        %3116 = vmatprep.subr.bf16.mxu0 0
        %3117 = vmatpush2.bf16.msra.mxu0 0
        %3118 = vmatprep.subr.bf16.mxu0 0
        %3119 = vmatpush2.bf16.msra.mxu0 0
        %3120 = vmatprep.subr.bf16.mxu0 0
        %3121 = vmatpush2.bf16.msra.mxu0 0
        %3122 = vmatprep.subr.bf16.mxu0 0
        %3123 = vmatpush2.bf16.msra.mxu0 0
        %3124 = vmatprep.mubr.bf16.mxu0 0
        %3125 = vmatmul.mubr.bf16.gmra.mxu0 %v767
        %v3126 = vpop.f32.mrf.mxu0
        %v3127 = vadd.f32 %v3084, %v3126
        %v3128 = vpop.f32.mrf.mxu0
        %v3129 = vadd.f32 %v3086, %v3128
        %v3130 = vpop.f32.mrf.mxu0
        %v3131 = vadd.f32 %v3088, %v3130
        %v3132 = vpop.f32.mrf.mxu0
        %v3133 = vadd.f32 %v3090, %v3132
        %3134 = vdwg.mxu0
        %3135 = vmatprep.subr.bf16.mxu0 %v2061
        %3136 = vmatpush1.bf16.msra.mxu0 %v2060
        %3137 = vmatprep.subr.bf16.mxu0 %v2054
        %3138 = vmatpush1.bf16.msra.mxu0 %v2053
        %3139 = vmatprep.subr.bf16.mxu0 %v2047
        %3140 = vmatpush1.bf16.msra.mxu0 %v2046
        %3141 = vmatprep.subr.bf16.mxu0 %v2040
        %3142 = vmatpush1.bf16.msra.mxu0 %v2039
        %3143 = vmatprep.subr.bf16.mxu0 %v2033
        %3144 = vmatpush1.bf16.msra.mxu0 %v2032
        %3145 = vmatprep.subr.bf16.mxu0 %v2026
        %3146 = vmatpush1.bf16.msra.mxu0 %v2025
        %3147 = vmatprep.subr.bf16.mxu0 %v2019
        %3148 = vmatpush1.bf16.msra.mxu0 %v2018
        %3149 = vmatprep.subr.bf16.mxu0 %v2012
        %3150 = vmatpush1.bf16.msra.mxu0 %v2011
        %3151 = vmatprep.subr.bf16.mxu0 %v2117
        %3152 = vmatpush2.bf16.msra.mxu0 %v2116
        %3153 = vmatprep.subr.bf16.mxu0 %v2110
        %3154 = vmatpush2.bf16.msra.mxu0 %v2109
        %3155 = vmatprep.subr.bf16.mxu0 %v2103
        %3156 = vmatpush2.bf16.msra.mxu0 %v2102
        %3157 = vmatprep.subr.bf16.mxu0 %v2096
        %3158 = vmatpush2.bf16.msra.mxu0 %v2095
        %3159 = vmatprep.subr.bf16.mxu0 %v2089
        %3160 = vmatpush2.bf16.msra.mxu0 %v2088
        %3161 = vmatprep.subr.bf16.mxu0 %v2082
        %3162 = vmatpush2.bf16.msra.mxu0 %v2081
        %3163 = vmatprep.subr.bf16.mxu0 %v2075
        %3164 = vmatpush2.bf16.msra.mxu0 %v2074
        %3165 = vmatprep.subr.bf16.mxu0 %v2068
        %3166 = vmatpush2.bf16.msra.mxu0 %v2067
        %3167 = vmatprep.mubr.bf16.mxu0 %v762
        %3168 = vmatmul.mubr.bf16.gmra.mxu0 %v761
        %v3169 = vpop.f32.mrf.mxu0
        %v3170 = vadd.f32 0.0, %v3169
        %v3171 = vpop.f32.mrf.mxu0
        %v3172 = vadd.f32 0.0, %v3171
        %v3173 = vpop.f32.mrf.mxu0
        %v3174 = vadd.f32 0.0, %v3173
        %v3175 = vpop.f32.mrf.mxu0
        %v3176 = vadd.f32 0.0, %v3175
        %3177 = vdwg.mxu0
        %3178 = vmatprep.subr.bf16.mxu0 %v2173
        %3179 = vmatpush1.bf16.msra.mxu0 %v2172
        %3180 = vmatprep.subr.bf16.mxu0 %v2166
        %3181 = vmatpush1.bf16.msra.mxu0 %v2165
        %3182 = vmatprep.subr.bf16.mxu0 %v2159
        %3183 = vmatpush1.bf16.msra.mxu0 %v2158
        %3184 = vmatprep.subr.bf16.mxu0 %v2152
        %3185 = vmatpush1.bf16.msra.mxu0 %v2151
        %3186 = vmatprep.subr.bf16.mxu0 %v2145
        %3187 = vmatpush1.bf16.msra.mxu0 %v2144
        %3188 = vmatprep.subr.bf16.mxu0 %v2138
        %3189 = vmatpush1.bf16.msra.mxu0 %v2137
        %3190 = vmatprep.subr.bf16.mxu0 %v2131
        %3191 = vmatpush1.bf16.msra.mxu0 %v2130
        %3192 = vmatprep.subr.bf16.mxu0 %v2124
        %3193 = vmatpush1.bf16.msra.mxu0 %v2123
        %3194 = vmatprep.subr.bf16.mxu0 %v2229
        %3195 = vmatpush2.bf16.msra.mxu0 %v2228
        %3196 = vmatprep.subr.bf16.mxu0 %v2222
        %3197 = vmatpush2.bf16.msra.mxu0 %v2221
        %3198 = vmatprep.subr.bf16.mxu0 %v2215
        %3199 = vmatpush2.bf16.msra.mxu0 %v2214
        %3200 = vmatprep.subr.bf16.mxu0 %v2208
        %3201 = vmatpush2.bf16.msra.mxu0 %v2207
        %3202 = vmatprep.subr.bf16.mxu0 %v2201
        %3203 = vmatpush2.bf16.msra.mxu0 %v2200
        %3204 = vmatprep.subr.bf16.mxu0 %v2194
        %3205 = vmatpush2.bf16.msra.mxu0 %v2193
        %3206 = vmatprep.subr.bf16.mxu0 %v2187
        %3207 = vmatpush2.bf16.msra.mxu0 %v2186
        %3208 = vmatprep.subr.bf16.mxu0 %v2180
        %3209 = vmatpush2.bf16.msra.mxu0 %v2179
        %3210 = vmatprep.mubr.bf16.mxu0 %v764
        %3211 = vmatmul.mubr.bf16.gmra.mxu0 %v763
        %v3212 = vpop.f32.mrf.mxu0
        %v3213 = vadd.f32 %v3170, %v3212
        %v3214 = vpop.f32.mrf.mxu0
        %v3215 = vadd.f32 %v3172, %v3214
        %v3216 = vpop.f32.mrf.mxu0
        %v3217 = vadd.f32 %v3174, %v3216
        %v3218 = vpop.f32.mrf.mxu0
        %v3219 = vadd.f32 %v3176, %v3218
        %3220 = vdwg.mxu0
        %3221 = vmatprep.subr.bf16.mxu0 %v2285
        %3222 = vmatpush1.bf16.msra.mxu0 %v2284
        %3223 = vmatprep.subr.bf16.mxu0 %v2278
        %3224 = vmatpush1.bf16.msra.mxu0 %v2277
        %3225 = vmatprep.subr.bf16.mxu0 %v2271
        %3226 = vmatpush1.bf16.msra.mxu0 %v2270
        %3227 = vmatprep.subr.bf16.mxu0 %v2264
        %3228 = vmatpush1.bf16.msra.mxu0 %v2263
        %3229 = vmatprep.subr.bf16.mxu0 %v2257
        %3230 = vmatpush1.bf16.msra.mxu0 %v2256
        %3231 = vmatprep.subr.bf16.mxu0 %v2250
        %3232 = vmatpush1.bf16.msra.mxu0 %v2249
        %3233 = vmatprep.subr.bf16.mxu0 %v2243
        %3234 = vmatpush1.bf16.msra.mxu0 %v2242
        %3235 = vmatprep.subr.bf16.mxu0 %v2236
        %3236 = vmatpush1.bf16.msra.mxu0 %v2235
        %3237 = vmatprep.subr.bf16.mxu0 %v2341
        %3238 = vmatpush2.bf16.msra.mxu0 %v2340
        %3239 = vmatprep.subr.bf16.mxu0 %v2334
        %3240 = vmatpush2.bf16.msra.mxu0 %v2333
        %3241 = vmatprep.subr.bf16.mxu0 %v2327
        %3242 = vmatpush2.bf16.msra.mxu0 %v2326
        %3243 = vmatprep.subr.bf16.mxu0 %v2320
        %3244 = vmatpush2.bf16.msra.mxu0 %v2319
        %3245 = vmatprep.subr.bf16.mxu0 %v2313
        %3246 = vmatpush2.bf16.msra.mxu0 %v2312
        %3247 = vmatprep.subr.bf16.mxu0 %v2306
        %3248 = vmatpush2.bf16.msra.mxu0 %v2305
        %3249 = vmatprep.subr.bf16.mxu0 %v2299
        %3250 = vmatpush2.bf16.msra.mxu0 %v2298
        %3251 = vmatprep.subr.bf16.mxu0 %v2292
        %3252 = vmatpush2.bf16.msra.mxu0 %v2291
        %3253 = vmatprep.mubr.bf16.mxu0 %v766
        %3254 = vmatmul.mubr.bf16.gmra.mxu0 %v765
        %v3255 = vpop.f32.mrf.mxu0
        %v3256 = vadd.f32 %v3213, %v3255
        %v3257 = vpop.f32.mrf.mxu0
        %v3258 = vadd.f32 %v3215, %v3257
        %v3259 = vpop.f32.mrf.mxu0
        %v3260 = vadd.f32 %v3217, %v3259
        %v3261 = vpop.f32.mrf.mxu0
        %v3262 = vadd.f32 %v3219, %v3261
        %3263 = vdwg.mxu0
        %3264 = vmatprep.subr.bf16.mxu0 %v2397
        %3265 = vmatpush1.bf16.msra.mxu0 %v2396
        %3266 = vmatprep.subr.bf16.mxu0 %v2390
        %3267 = vmatpush1.bf16.msra.mxu0 %v2389
        %3268 = vmatprep.subr.bf16.mxu0 %v2383
        %3269 = vmatpush1.bf16.msra.mxu0 %v2382
        %3270 = vmatprep.subr.bf16.mxu0 %v2376
        %3271 = vmatpush1.bf16.msra.mxu0 %v2375
        %3272 = vmatprep.subr.bf16.mxu0 %v2369
        %3273 = vmatpush1.bf16.msra.mxu0 %v2368
        %3274 = vmatprep.subr.bf16.mxu0 %v2362
        %3275 = vmatpush1.bf16.msra.mxu0 %v2361
        %3276 = vmatprep.subr.bf16.mxu0 %v2355
        %3277 = vmatpush1.bf16.msra.mxu0 %v2354
        %3278 = vmatprep.subr.bf16.mxu0 %v2348
        %3279 = vmatpush1.bf16.msra.mxu0 %v2347
        %3280 = vmatprep.subr.bf16.mxu0 0
        %3281 = vmatpush2.bf16.msra.mxu0 0
        %3282 = vmatprep.subr.bf16.mxu0 0
        %3283 = vmatpush2.bf16.msra.mxu0 0
        %3284 = vmatprep.subr.bf16.mxu0 0
        %3285 = vmatpush2.bf16.msra.mxu0 0
        %3286 = vmatprep.subr.bf16.mxu0 0
        %3287 = vmatpush2.bf16.msra.mxu0 0
        %3288 = vmatprep.subr.bf16.mxu0 0
        %3289 = vmatpush2.bf16.msra.mxu0 0
        %3290 = vmatprep.subr.bf16.mxu0 0
        %3291 = vmatpush2.bf16.msra.mxu0 0
        %3292 = vmatprep.subr.bf16.mxu0 0
        %3293 = vmatpush2.bf16.msra.mxu0 0
        %3294 = vmatprep.subr.bf16.mxu0 0
        %3295 = vmatpush2.bf16.msra.mxu0 0
        %3296 = vmatprep.mubr.bf16.mxu0 0
        %3297 = vmatmul.mubr.bf16.gmra.mxu0 %v767
        %v3298 = vpop.f32.mrf.mxu0
        %v3299 = vadd.f32 %v3256, %v3298
        %v3300 = vpop.f32.mrf.mxu0
        %v3301 = vadd.f32 %v3258, %v3300
        %v3302 = vpop.f32.mrf.mxu0
        %v3303 = vadd.f32 %v3260, %v3302
        %v3304 = vpop.f32.mrf.mxu0
        %v3305 = vadd.f32 %v3262, %v3304
        %3306 = vdwg.mxu0
        %3307 = vmatprep.subr.bf16.mxu0 0
        %3308 = vmatpush1.bf16.msra.mxu0 %v2062
        %3309 = vmatprep.subr.bf16.mxu0 0
        %3310 = vmatpush1.bf16.msra.mxu0 %v2055
        %3311 = vmatprep.subr.bf16.mxu0 0
        %3312 = vmatpush1.bf16.msra.mxu0 %v2048
        %3313 = vmatprep.subr.bf16.mxu0 0
        %3314 = vmatpush1.bf16.msra.mxu0 %v2041
        %3315 = vmatprep.subr.bf16.mxu0 0
        %3316 = vmatpush1.bf16.msra.mxu0 %v2034
        %3317 = vmatprep.subr.bf16.mxu0 0
        %3318 = vmatpush1.bf16.msra.mxu0 %v2027
        %3319 = vmatprep.subr.bf16.mxu0 0
        %3320 = vmatpush1.bf16.msra.mxu0 %v2020
        %3321 = vmatprep.subr.bf16.mxu0 0
        %3322 = vmatpush1.bf16.msra.mxu0 %v2013
        %3323 = vmatprep.subr.bf16.mxu0 0
        %3324 = vmatpush2.bf16.msra.mxu0 %v2118
        %3325 = vmatprep.subr.bf16.mxu0 0
        %3326 = vmatpush2.bf16.msra.mxu0 %v2111
        %3327 = vmatprep.subr.bf16.mxu0 0
        %3328 = vmatpush2.bf16.msra.mxu0 %v2104
        %3329 = vmatprep.subr.bf16.mxu0 0
        %3330 = vmatpush2.bf16.msra.mxu0 %v2097
        %3331 = vmatprep.subr.bf16.mxu0 0
        %3332 = vmatpush2.bf16.msra.mxu0 %v2090
        %3333 = vmatprep.subr.bf16.mxu0 0
        %3334 = vmatpush2.bf16.msra.mxu0 %v2083
        %3335 = vmatprep.subr.bf16.mxu0 0
        %3336 = vmatpush2.bf16.msra.mxu0 %v2076
        %3337 = vmatprep.subr.bf16.mxu0 0
        %3338 = vmatpush2.bf16.msra.mxu0 %v2069
        %3339 = vmatprep.mubr.bf16.mxu0 %v762
        %3340 = vmatmul.mubr.bf16.gmra.mxu0 %v761
        %v3341 = vpop.f32.mrf.mxu0
        %v3342 = vadd.f32 0.0, %v3341
        %v3343 = vpop.f32.mrf.mxu0
        %v3344 = vpop.f32.mrf.mxu0
        %v3345 = vadd.f32 0.0, %v3344
        %v3346 = vpop.f32.mrf.mxu0
        %3347 = vdwg.mxu0
        %3348 = vmatprep.subr.bf16.mxu0 0
        %3349 = vmatpush1.bf16.msra.mxu0 %v2174
        %3350 = vmatprep.subr.bf16.mxu0 0
        %3351 = vmatpush1.bf16.msra.mxu0 %v2167
        %3352 = vmatprep.subr.bf16.mxu0 0
        %3353 = vmatpush1.bf16.msra.mxu0 %v2160
        %3354 = vmatprep.subr.bf16.mxu0 0
        %3355 = vmatpush1.bf16.msra.mxu0 %v2153
        %3356 = vmatprep.subr.bf16.mxu0 0
        %3357 = vmatpush1.bf16.msra.mxu0 %v2146
        %3358 = vmatprep.subr.bf16.mxu0 0
        %3359 = vmatpush1.bf16.msra.mxu0 %v2139
        %3360 = vmatprep.subr.bf16.mxu0 0
        %3361 = vmatpush1.bf16.msra.mxu0 %v2132
        %3362 = vmatprep.subr.bf16.mxu0 0
        %3363 = vmatpush1.bf16.msra.mxu0 %v2125
        %3364 = vmatprep.subr.bf16.mxu0 0
        %3365 = vmatpush2.bf16.msra.mxu0 %v2230
        %3366 = vmatprep.subr.bf16.mxu0 0
        %3367 = vmatpush2.bf16.msra.mxu0 %v2223
        %3368 = vmatprep.subr.bf16.mxu0 0
        %3369 = vmatpush2.bf16.msra.mxu0 %v2216
        %3370 = vmatprep.subr.bf16.mxu0 0
        %3371 = vmatpush2.bf16.msra.mxu0 %v2209
        %3372 = vmatprep.subr.bf16.mxu0 0
        %3373 = vmatpush2.bf16.msra.mxu0 %v2202
        %3374 = vmatprep.subr.bf16.mxu0 0
        %3375 = vmatpush2.bf16.msra.mxu0 %v2195
        %3376 = vmatprep.subr.bf16.mxu0 0
        %3377 = vmatpush2.bf16.msra.mxu0 %v2188
        %3378 = vmatprep.subr.bf16.mxu0 0
        %3379 = vmatpush2.bf16.msra.mxu0 %v2181
        %3380 = vmatprep.mubr.bf16.mxu0 %v764
        %3381 = vmatmul.mubr.bf16.gmra.mxu0 %v763
        %v3382 = vpop.f32.mrf.mxu0
        %v3383 = vadd.f32 %v3342, %v3382
        %v3384 = vpop.f32.mrf.mxu0
        %v3385 = vpop.f32.mrf.mxu0
        %v3386 = vadd.f32 %v3345, %v3385
        %v3387 = vpop.f32.mrf.mxu0
        %3388 = vdwg.mxu0
        %3389 = vmatprep.subr.bf16.mxu0 0
        %3390 = vmatpush1.bf16.msra.mxu0 %v2286
        %3391 = vmatprep.subr.bf16.mxu0 0
        %3392 = vmatpush1.bf16.msra.mxu0 %v2279
        %3393 = vmatprep.subr.bf16.mxu0 0
        %3394 = vmatpush1.bf16.msra.mxu0 %v2272
        %3395 = vmatprep.subr.bf16.mxu0 0
        %3396 = vmatpush1.bf16.msra.mxu0 %v2265
        %3397 = vmatprep.subr.bf16.mxu0 0
        %3398 = vmatpush1.bf16.msra.mxu0 %v2258
        %3399 = vmatprep.subr.bf16.mxu0 0
        %3400 = vmatpush1.bf16.msra.mxu0 %v2251
        %3401 = vmatprep.subr.bf16.mxu0 0
        %3402 = vmatpush1.bf16.msra.mxu0 %v2244
        %3403 = vmatprep.subr.bf16.mxu0 0
        %3404 = vmatpush1.bf16.msra.mxu0 %v2237
        %3405 = vmatprep.subr.bf16.mxu0 0
        %3406 = vmatpush2.bf16.msra.mxu0 %v2342
        %3407 = vmatprep.subr.bf16.mxu0 0
        %3408 = vmatpush2.bf16.msra.mxu0 %v2335
        %3409 = vmatprep.subr.bf16.mxu0 0
        %3410 = vmatpush2.bf16.msra.mxu0 %v2328
        %3411 = vmatprep.subr.bf16.mxu0 0
        %3412 = vmatpush2.bf16.msra.mxu0 %v2321
        %3413 = vmatprep.subr.bf16.mxu0 0
        %3414 = vmatpush2.bf16.msra.mxu0 %v2314
        %3415 = vmatprep.subr.bf16.mxu0 0
        %3416 = vmatpush2.bf16.msra.mxu0 %v2307
        %3417 = vmatprep.subr.bf16.mxu0 0
        %3418 = vmatpush2.bf16.msra.mxu0 %v2300
        %3419 = vmatprep.subr.bf16.mxu0 0
        %3420 = vmatpush2.bf16.msra.mxu0 %v2293
        %3421 = vmatprep.mubr.bf16.mxu0 %v766
        %3422 = vmatmul.mubr.bf16.gmra.mxu0 %v765
        %v3423 = vpop.f32.mrf.mxu0
        %v3424 = vadd.f32 %v3383, %v3423
        %v3425 = vpop.f32.mrf.mxu0
        %v3426 = vpop.f32.mrf.mxu0
        %v3427 = vadd.f32 %v3386, %v3426
        %v3428 = vpop.f32.mrf.mxu0
        %3429 = vdwg.mxu0
        %3430 = vmatprep.subr.bf16.mxu0 0
        %3431 = vmatpush1.bf16.msra.mxu0 %v2398
        %3432 = vmatprep.subr.bf16.mxu0 0
        %3433 = vmatpush1.bf16.msra.mxu0 %v2391
        %3434 = vmatprep.subr.bf16.mxu0 0
        %3435 = vmatpush1.bf16.msra.mxu0 %v2384
        %3436 = vmatprep.subr.bf16.mxu0 0
        %3437 = vmatpush1.bf16.msra.mxu0 %v2377
        %3438 = vmatprep.subr.bf16.mxu0 0
        %3439 = vmatpush1.bf16.msra.mxu0 %v2370
        %3440 = vmatprep.subr.bf16.mxu0 0
        %3441 = vmatpush1.bf16.msra.mxu0 %v2363
        %3442 = vmatprep.subr.bf16.mxu0 0
        %3443 = vmatpush1.bf16.msra.mxu0 %v2356
        %3444 = vmatprep.subr.bf16.mxu0 0
        %3445 = vmatpush1.bf16.msra.mxu0 %v2349
        %3446 = vmatprep.subr.bf16.mxu0 0
        %3447 = vmatpush2.bf16.msra.mxu0 0
        %3448 = vmatprep.subr.bf16.mxu0 0
        %3449 = vmatpush2.bf16.msra.mxu0 0
        %3450 = vmatprep.subr.bf16.mxu0 0
        %3451 = vmatpush2.bf16.msra.mxu0 0
        %3452 = vmatprep.subr.bf16.mxu0 0
        %3453 = vmatpush2.bf16.msra.mxu0 0
        %3454 = vmatprep.subr.bf16.mxu0 0
        %3455 = vmatpush2.bf16.msra.mxu0 0
        %3456 = vmatprep.subr.bf16.mxu0 0
        %3457 = vmatpush2.bf16.msra.mxu0 0
        %3458 = vmatprep.subr.bf16.mxu0 0
        %3459 = vmatpush2.bf16.msra.mxu0 0
        %3460 = vmatprep.subr.bf16.mxu0 0
        %3461 = vmatpush2.bf16.msra.mxu0 0
        %3462 = vmatprep.mubr.bf16.mxu0 0
        %3463 = vmatmul.mubr.bf16.gmra.mxu0 %v767
        %v3464 = vpop.f32.mrf.mxu0
        %v3465 = vadd.f32 %v3424, %v3464
        %v3466 = vpop.f32.mrf.mxu0
        %v3467 = vpop.f32.mrf.mxu0
        %v3468 = vadd.f32 %v3427, %v3467
        %v3469 = vpop.f32.mrf.mxu0
        %3470 = vdwg.mxu0
        %v3471 = vld [vmem:[%s247] sm:$0xff]
        %v3472 = vld [vmem:[%s247 + $0x8] sm:$0xff]
        %v3473 = vld [vmem:[%s247 + $0x10] sm:$0xff]
        %v3474 = vld [vmem:[%s247 + $0x18] sm:$0xff]
        %v3475 = vld [vmem:[%s247 + $0x20] sm:$0xff]
        %v3476 = vld [vmem:[%s247 + $0x28] sm:$0xff]
        %v3477 = vld [vmem:[%s247 + $0x30] sm:$0xff]
        %v3478 = vld [vmem:[#allocation8] sm:$0xff]
        %v3479 = vld [vmem:[#allocation8 + $0x8] sm:$0xff]
        %3480 = vmatprep.subr.mxu0 0.0
        %3481 = vmatpush1.xpose.msra.mxu0 0.0
        %3482 = vmatprep.subr.mxu0 0.0
        %3483 = vmatpush1.xpose.msra.mxu0 0.0
        %3484 = vmatprep.subr.mxu0 0.0
        %3485 = vmatpush1.xpose.msra.mxu0 0.0
        %3486 = vmatprep.subr.mxu0 0.0
        %3487 = vmatpush1.xpose.msra.mxu0 0.0
        %3488 = vmatprep.subr.mxu0 0.0
        %3489 = vmatpush1.xpose.msra.mxu0 0.0
        %3490 = vmatprep.subr.mxu0 0.0
        %3491 = vmatpush1.xpose.msra.mxu0 0.0
        %3492 = vmatprep.subr.mxu0 0.0
        %3493 = vmatpush1.xpose.msra.mxu0 0.0
        %3494 = vmatprep.subr.mxu0 0.0
        %3495 = vmatpush1.xpose.msra.mxu0 0.0
        %3496 = vmatprep.subr.mxu0 0.0
        %3497 = vmatpush1.xpose.msra.mxu0 0.0
        %3498 = vmatprep.subr.mxu0 0.0
        %3499 = vmatpush1.xpose.msra.mxu0 0.0
        %3500 = vmatprep.subr.mxu0 0.0
        %3501 = vmatpush1.xpose.msra.mxu0 0.0
        %3502 = vmatprep.subr.mxu0 0.0
        %3503 = vmatpush1.xpose.msra.mxu0 0.0
        %3504 = vmatprep.subr.mxu0 0.0
        %3505 = vmatpush1.xpose.msra.mxu0 0.0
        %3506 = vmatprep.subr.mxu0 0.0
        %3507 = vmatpush1.xpose.msra.mxu0 0.0
        %3508 = vmatprep.subr.mxu0 0.0
        %3509 = vmatpush1.xpose.msra.mxu0 0.0
        %3510 = vmatprep.subr.mxu0 %v3472
        %3511 = vmatpush1.xpose.msra.mxu0 %v3471
        %3512 = vmatprep.subr.mxu0 0.0
        %3513 = vmatpush2.xpose.msra.mxu0 0.0
        %3514 = vmatprep.subr.mxu0 0.0
        %3515 = vmatpush2.xpose.msra.mxu0 0.0
        %3516 = vmatprep.subr.mxu0 0.0
        %3517 = vmatpush2.xpose.msra.mxu0 0.0
        %3518 = vmatprep.subr.mxu0 0.0
        %3519 = vmatpush2.xpose.msra.mxu0 0.0
        %3520 = vmatprep.subr.mxu0 0.0
        %3521 = vmatpush2.xpose.msra.mxu0 0.0
        %3522 = vmatprep.subr.mxu0 0.0
        %3523 = vmatpush2.xpose.msra.mxu0 0.0
        %3524 = vmatprep.subr.mxu0 0.0
        %3525 = vmatpush2.xpose.msra.mxu0 0.0
        %3526 = vmatprep.subr.mxu0 0.0
        %3527 = vmatpush2.xpose.msra.mxu0 0.0
        %3528 = vmatprep.subr.mxu0 0.0
        %3529 = vmatpush2.xpose.msra.mxu0 0.0
        %3530 = vmatprep.subr.mxu0 0.0
        %3531 = vmatpush2.xpose.msra.mxu0 0.0
        %3532 = vmatprep.subr.mxu0 0.0
        %3533 = vmatpush2.xpose.msra.mxu0 0.0
        %3534 = vmatprep.subr.mxu0 0.0
        %3535 = vmatpush2.xpose.msra.mxu0 0.0
        %3536 = vmatprep.subr.mxu0 0.0
        %3537 = vmatpush2.xpose.msra.mxu0 0.0
        %3538 = vmatprep.subr.mxu0 0.0
        %3539 = vmatpush2.xpose.msra.mxu0 0.0
        %3540 = vmatprep.subr.mxu0 0.0
        %3541 = vmatpush2.xpose.msra.mxu0 0.0
        %3542 = vmatprep.subr.mxu0 0.0
        %3543 = vmatpush2.xpose.msra.mxu0 0.0
        %3544 = vmatprep.mubr.f32.mxu0 %v2957
        %3545 = vmatmul.mubr.f32.gmra.mxu0 %v2955
        %v3546 = vpop.f32.mrf.mxu0
        %v3547 = vadd.f32 0.0, %v3546
        %v3548 = vpop.f32.mrf.mxu0
        %3549 = vmatprep.mubr.f32.mxu0 %v2961
        %3550 = vmatmul.mubr.f32.gmra.mxu0 %v2959
        %v3551 = vpop.f32.mrf.mxu0
        %v3552 = vadd.f32 0.0, %v3551
        %v3553 = vpop.f32.mrf.mxu0
        %3554 = vdwg.mxu0
        %3555 = vmatprep.subr.mxu0 0.0
        %3556 = vmatpush1.xpose.msra.mxu0 0.0
        %3557 = vmatprep.subr.mxu0 0.0
        %3558 = vmatpush1.xpose.msra.mxu0 0.0
        %3559 = vmatprep.subr.mxu0 0.0
        %3560 = vmatpush1.xpose.msra.mxu0 0.0
        %3561 = vmatprep.subr.mxu0 0.0
        %3562 = vmatpush1.xpose.msra.mxu0 0.0
        %3563 = vmatprep.subr.mxu0 0.0
        %3564 = vmatpush1.xpose.msra.mxu0 0.0
        %3565 = vmatprep.subr.mxu0 0.0
        %3566 = vmatpush1.xpose.msra.mxu0 0.0
        %3567 = vmatprep.subr.mxu0 0.0
        %3568 = vmatpush1.xpose.msra.mxu0 0.0
        %3569 = vmatprep.subr.mxu0 0.0
        %3570 = vmatpush1.xpose.msra.mxu0 0.0
        %3571 = vmatprep.subr.mxu0 0.0
        %3572 = vmatpush1.xpose.msra.mxu0 0.0
        %3573 = vmatprep.subr.mxu0 0.0
        %3574 = vmatpush1.xpose.msra.mxu0 0.0
        %3575 = vmatprep.subr.mxu0 0.0
        %3576 = vmatpush1.xpose.msra.mxu0 0.0
        %3577 = vmatprep.subr.mxu0 0.0
        %3578 = vmatpush1.xpose.msra.mxu0 0.0
        %3579 = vmatprep.subr.mxu0 0.0
        %3580 = vmatpush1.xpose.msra.mxu0 0.0
        %3581 = vmatprep.subr.mxu0 0.0
        %3582 = vmatpush1.xpose.msra.mxu0 0.0
        %3583 = vmatprep.subr.mxu0 0.0
        %3584 = vmatpush1.xpose.msra.mxu0 0.0
        %3585 = vmatprep.subr.mxu0 %v3474
        %3586 = vmatpush1.xpose.msra.mxu0 %v3473
        %3587 = vmatprep.subr.mxu0 0.0
        %3588 = vmatpush2.xpose.msra.mxu0 0.0
        %3589 = vmatprep.subr.mxu0 0.0
        %3590 = vmatpush2.xpose.msra.mxu0 0.0
        %3591 = vmatprep.subr.mxu0 0.0
        %3592 = vmatpush2.xpose.msra.mxu0 0.0
        %3593 = vmatprep.subr.mxu0 0.0
        %3594 = vmatpush2.xpose.msra.mxu0 0.0
        %3595 = vmatprep.subr.mxu0 0.0
        %3596 = vmatpush2.xpose.msra.mxu0 0.0
        %3597 = vmatprep.subr.mxu0 0.0
        %3598 = vmatpush2.xpose.msra.mxu0 0.0
        %3599 = vmatprep.subr.mxu0 0.0
        %3600 = vmatpush2.xpose.msra.mxu0 0.0
        %3601 = vmatprep.subr.mxu0 0.0
        %3602 = vmatpush2.xpose.msra.mxu0 0.0
        %3603 = vmatprep.subr.mxu0 0.0
        %3604 = vmatpush2.xpose.msra.mxu0 0.0
        %3605 = vmatprep.subr.mxu0 0.0
        %3606 = vmatpush2.xpose.msra.mxu0 0.0
        %3607 = vmatprep.subr.mxu0 0.0
        %3608 = vmatpush2.xpose.msra.mxu0 0.0
        %3609 = vmatprep.subr.mxu0 0.0
        %3610 = vmatpush2.xpose.msra.mxu0 0.0
        %3611 = vmatprep.subr.mxu0 0.0
        %3612 = vmatpush2.xpose.msra.mxu0 0.0
        %3613 = vmatprep.subr.mxu0 0.0
        %3614 = vmatpush2.xpose.msra.mxu0 0.0
        %3615 = vmatprep.subr.mxu0 0.0
        %3616 = vmatpush2.xpose.msra.mxu0 0.0
        %3617 = vmatprep.subr.mxu0 0.0
        %3618 = vmatpush2.xpose.msra.mxu0 0.0
        %3619 = vmatprep.mubr.f32.mxu0 %v3129
        %3620 = vmatmul.mubr.f32.gmra.mxu0 %v3127
        %v3621 = vpop.f32.mrf.mxu0
        %v3622 = vadd.f32 %v3547, %v3621
        %v3623 = vpop.f32.mrf.mxu0
        %3624 = vmatprep.mubr.f32.mxu0 %v3133
        %3625 = vmatmul.mubr.f32.gmra.mxu0 %v3131
        %v3626 = vpop.f32.mrf.mxu0
        %v3627 = vadd.f32 %v3552, %v3626
        %v3628 = vpop.f32.mrf.mxu0
        %3629 = vdwg.mxu0
        %3630 = vmatprep.subr.mxu0 0.0
        %3631 = vmatpush1.xpose.msra.mxu0 0.0
        %3632 = vmatprep.subr.mxu0 0.0
        %3633 = vmatpush1.xpose.msra.mxu0 0.0
        %3634 = vmatprep.subr.mxu0 0.0
        %3635 = vmatpush1.xpose.msra.mxu0 0.0
        %3636 = vmatprep.subr.mxu0 0.0
        %3637 = vmatpush1.xpose.msra.mxu0 0.0
        %3638 = vmatprep.subr.mxu0 0.0
        %3639 = vmatpush1.xpose.msra.mxu0 0.0
        %3640 = vmatprep.subr.mxu0 0.0
        %3641 = vmatpush1.xpose.msra.mxu0 0.0
        %3642 = vmatprep.subr.mxu0 0.0
        %3643 = vmatpush1.xpose.msra.mxu0 0.0
        %3644 = vmatprep.subr.mxu0 0.0
        %3645 = vmatpush1.xpose.msra.mxu0 0.0
        %3646 = vmatprep.subr.mxu0 0.0
        %3647 = vmatpush1.xpose.msra.mxu0 0.0
        %3648 = vmatprep.subr.mxu0 0.0
        %3649 = vmatpush1.xpose.msra.mxu0 0.0
        %3650 = vmatprep.subr.mxu0 0.0
        %3651 = vmatpush1.xpose.msra.mxu0 0.0
        %3652 = vmatprep.subr.mxu0 0.0
        %3653 = vmatpush1.xpose.msra.mxu0 0.0
        %3654 = vmatprep.subr.mxu0 0.0
        %3655 = vmatpush1.xpose.msra.mxu0 0.0
        %3656 = vmatprep.subr.mxu0 0.0
        %3657 = vmatpush1.xpose.msra.mxu0 0.0
        %3658 = vmatprep.subr.mxu0 0.0
        %3659 = vmatpush1.xpose.msra.mxu0 0.0
        %3660 = vmatprep.subr.mxu0 %v3476
        %3661 = vmatpush1.xpose.msra.mxu0 %v3475
        %3662 = vmatprep.subr.mxu0 0.0
        %3663 = vmatpush2.xpose.msra.mxu0 0.0
        %3664 = vmatprep.subr.mxu0 0.0
        %3665 = vmatpush2.xpose.msra.mxu0 0.0
        %3666 = vmatprep.subr.mxu0 0.0
        %3667 = vmatpush2.xpose.msra.mxu0 0.0
        %3668 = vmatprep.subr.mxu0 0.0
        %3669 = vmatpush2.xpose.msra.mxu0 0.0
        %3670 = vmatprep.subr.mxu0 0.0
        %3671 = vmatpush2.xpose.msra.mxu0 0.0
        %3672 = vmatprep.subr.mxu0 0.0
        %3673 = vmatpush2.xpose.msra.mxu0 0.0
        %3674 = vmatprep.subr.mxu0 0.0
        %3675 = vmatpush2.xpose.msra.mxu0 0.0
        %3676 = vmatprep.subr.mxu0 0.0
        %3677 = vmatpush2.xpose.msra.mxu0 0.0
        %3678 = vmatprep.subr.mxu0 0.0
        %3679 = vmatpush2.xpose.msra.mxu0 0.0
        %3680 = vmatprep.subr.mxu0 0.0
        %3681 = vmatpush2.xpose.msra.mxu0 0.0
        %3682 = vmatprep.subr.mxu0 0.0
        %3683 = vmatpush2.xpose.msra.mxu0 0.0
        %3684 = vmatprep.subr.mxu0 0.0
        %3685 = vmatpush2.xpose.msra.mxu0 0.0
        %3686 = vmatprep.subr.mxu0 0.0
        %3687 = vmatpush2.xpose.msra.mxu0 0.0
        %3688 = vmatprep.subr.mxu0 0.0
        %3689 = vmatpush2.xpose.msra.mxu0 0.0
        %3690 = vmatprep.subr.mxu0 0.0
        %3691 = vmatpush2.xpose.msra.mxu0 0.0
        %3692 = vmatprep.subr.mxu0 0.0
        %3693 = vmatpush2.xpose.msra.mxu0 0.0
        %3694 = vmatprep.mubr.f32.mxu0 %v3301
        %3695 = vmatmul.mubr.f32.gmra.mxu0 %v3299
        %v3696 = vpop.f32.mrf.mxu0
        %v3697 = vadd.f32 %v3622, %v3696
        %v3698 = vpop.f32.mrf.mxu0
        %3699 = vmatprep.mubr.f32.mxu0 %v3305
        %3700 = vmatmul.mubr.f32.gmra.mxu0 %v3303
        %v3701 = vpop.f32.mrf.mxu0
        %v3702 = vadd.f32 %v3627, %v3701
        %v3703 = vpop.f32.mrf.mxu0
        %3704 = vdwg.mxu0
        %3705 = vmatprep.subr.mxu0 0.0
        %3706 = vmatpush1.xpose.msra.mxu0 0.0
        %3707 = vmatprep.subr.mxu0 0.0
        %3708 = vmatpush1.xpose.msra.mxu0 0.0
        %3709 = vmatprep.subr.mxu0 0.0
        %3710 = vmatpush1.xpose.msra.mxu0 0.0
        %3711 = vmatprep.subr.mxu0 0.0
        %3712 = vmatpush1.xpose.msra.mxu0 0.0
        %3713 = vmatprep.subr.mxu0 0.0
        %3714 = vmatpush1.xpose.msra.mxu0 0.0
        %3715 = vmatprep.subr.mxu0 0.0
        %3716 = vmatpush1.xpose.msra.mxu0 0.0
        %3717 = vmatprep.subr.mxu0 0.0
        %3718 = vmatpush1.xpose.msra.mxu0 0.0
        %3719 = vmatprep.subr.mxu0 0.0
        %3720 = vmatpush1.xpose.msra.mxu0 0.0
        %3721 = vmatprep.subr.mxu0 0.0
        %3722 = vmatpush1.xpose.msra.mxu0 0.0
        %3723 = vmatprep.subr.mxu0 0.0
        %3724 = vmatpush1.xpose.msra.mxu0 0.0
        %3725 = vmatprep.subr.mxu0 0.0
        %3726 = vmatpush1.xpose.msra.mxu0 0.0
        %3727 = vmatprep.subr.mxu0 0.0
        %3728 = vmatpush1.xpose.msra.mxu0 0.0
        %3729 = vmatprep.subr.mxu0 0.0
        %3730 = vmatpush1.xpose.msra.mxu0 0.0
        %3731 = vmatprep.subr.mxu0 0.0
        %3732 = vmatpush1.xpose.msra.mxu0 0.0
        %3733 = vmatprep.subr.mxu0 0.0
        %3734 = vmatpush1.xpose.msra.mxu0 0.0
        %3735 = vmatprep.subr.mxu0 0.0
        %3736 = vmatpush1.xpose.msra.mxu0 %v3477
        %3737 = vmatprep.subr.mxu0 0.0
        %3738 = vmatpush2.xpose.msra.mxu0 0.0
        %3739 = vmatprep.subr.mxu0 0.0
        %3740 = vmatpush2.xpose.msra.mxu0 0.0
        %3741 = vmatprep.subr.mxu0 0.0
        %3742 = vmatpush2.xpose.msra.mxu0 0.0
        %3743 = vmatprep.subr.mxu0 0.0
        %3744 = vmatpush2.xpose.msra.mxu0 0.0
        %3745 = vmatprep.subr.mxu0 0.0
        %3746 = vmatpush2.xpose.msra.mxu0 0.0
        %3747 = vmatprep.subr.mxu0 0.0
        %3748 = vmatpush2.xpose.msra.mxu0 0.0
        %3749 = vmatprep.subr.mxu0 0.0
        %3750 = vmatpush2.xpose.msra.mxu0 0.0
        %3751 = vmatprep.subr.mxu0 0.0
        %3752 = vmatpush2.xpose.msra.mxu0 0.0
        %3753 = vmatprep.subr.mxu0 0.0
        %3754 = vmatpush2.xpose.msra.mxu0 0.0
        %3755 = vmatprep.subr.mxu0 0.0
        %3756 = vmatpush2.xpose.msra.mxu0 0.0
        %3757 = vmatprep.subr.mxu0 0.0
        %3758 = vmatpush2.xpose.msra.mxu0 0.0
        %3759 = vmatprep.subr.mxu0 0.0
        %3760 = vmatpush2.xpose.msra.mxu0 0.0
        %3761 = vmatprep.subr.mxu0 0.0
        %3762 = vmatpush2.xpose.msra.mxu0 0.0
        %3763 = vmatprep.subr.mxu0 0.0
        %3764 = vmatpush2.xpose.msra.mxu0 0.0
        %3765 = vmatprep.subr.mxu0 0.0
        %3766 = vmatpush2.xpose.msra.mxu0 0.0
        %3767 = vmatprep.subr.mxu0 0.0
        %3768 = vmatpush2.xpose.msra.mxu0 0.0
        %3769 = vmatprep.mubr.f32.mxu0 0.0
        %3770 = vmatmul.mubr.f32.gmra.mxu0 %v3465
        %v3771 = vpop.f32.mrf.mxu0
        %v3772 = vadd.f32 %v3697, %v3771
        %v3773 = vpop.f32.mrf.mxu0
        %3774 = vmatprep.mubr.f32.mxu0 0.0
        %3775 = vmatmul.mubr.f32.gmra.mxu0 %v3468
        %v3776 = vpop.f32.mrf.mxu0
        %v3777 = vadd.f32 %v3702, %v3776
        %v3778 = vpop.f32.mrf.mxu0
        %3779 = vdwg.mxu0
        %3782 = vrot.lane.b32.xlu0 %v3772, 127
        %v3783 = vpop.permute.xlu0 %3782
        %3784 = vrot.lane.b32.xlu0 %v3777, 127
        %v3785 = vpop.permute.xlu0 %3784
        %3788 = vxpose.xlu0.b32.start [1/16] %v3783, 128
        %3789 = vxpose.xlu0.b32.cont [2/16] %v3785, 128
        %3790 = vxpose.xlu0.b32.cont [3/16] 0.0, 128
        %3791 = vxpose.xlu0.b32.cont [4/16] 0.0, 128
        %3792 = vxpose.xlu0.b32.cont [5/16] 0.0, 128
        %3793 = vxpose.xlu0.b32.cont [6/16] 0.0, 128
        %3794 = vxpose.xlu0.b32.cont [7/16] 0.0, 128
        %3795 = vxpose.xlu0.b32.cont [8/16] 0.0, 128
        %3796 = vxpose.xlu0.b32.cont [9/16] 0.0, 128
        %3797 = vxpose.xlu0.b32.cont [10/16] 0.0, 128
        %3798 = vxpose.xlu0.b32.cont [11/16] 0.0, 128
        %3799 = vxpose.xlu0.b32.cont [12/16] 0.0, 128
        %3800 = vxpose.xlu0.b32.cont [13/16] 0.0, 128
        %3801 = vxpose.xlu0.b32.cont [14/16] 0.0, 128
        %3802 = vxpose.xlu0.b32.cont [15/16] 0.0, 128
        %3803 = vxpose.xlu0.b32.end [16/16] 0.0, 128
        %v3804 = vpop.trf.xlu0
        %v3805 = vpop.trf.xlu0
        %v3806 = vpop.trf.xlu0
        %v3807 = vpop.trf.xlu0
        %v3808 = vpop.trf.xlu0
        %v3809 = vpop.trf.xlu0
        %v3810 = vpop.trf.xlu0
        %v3811 = vpop.trf.xlu0
        %v3812 = vpop.trf.xlu0
        %v3813 = vpop.trf.xlu0
        %v3814 = vpop.trf.xlu0
        %v3815 = vpop.trf.xlu0
        %v3816 = vpop.trf.xlu0
        %v3817 = vpop.trf.xlu0
        %v3818 = vpop.trf.xlu0
        %v3819 = vpop.trf.xlu0
        %3820 = vset.pattern.permute.xlu0 0
        %3821 = vperm.xlu0 %3820, %v3772
        %v3822 = vpop.permute.xlu0 %3821
        %3824 = vset.pattern.permute.xlu0 0
        %3825 = vperm.xlu0 %3824, %v3777
        %v3826 = vpop.permute.xlu0 %3825
        %v3828 = vlaneseq
        %v3829 = vshrl.u32 %v3828, 7
        %v3830 = vsub.s32 0, %v3829
        %v3831 = vrot.slane %v3804, %v3830
        %v3832 = vadd.f32 %v3822, %v3831
        %v3833 = vadd.f32 %v3826, %v3831
        %vm3834 = vcmp.ge.f32.partialorder %v3832, 0.0
        %vm3835 = vcmp.ge.f32.partialorder %v3833, 0.0
        %v3836 = vmul.f32 %v3832, 0.2
        %v3837 = vmul.f32 %v3833, 0.2
        %v3838 = vsel %vm3834, %v3832, %v3836
        %v3839 = vsel %vm3835, %v3833, %v3837
        %vm3840 = vcmp.gt.f32.partialorder %v3478, 0.0
        %vm3841 = vcmp.gt.f32.partialorder %v3479, 0.0
        %v3842 = vsel %vm3840, %v3838, -1e+30
        %v3843 = vsel %vm3841, %v3839, -1e+30
        %vm3844 = vcmask 130048
        %v3845 = vsel %vm3844, %v3842, -inf
        %3846 = vmax.xlane.f32.xlu0 %v3845
        %v3847 = vpop.xlane.xlu0 %3846
        %v3848 = vsel %vm3844, %v3843, -inf
        %3849 = vmax.xlane.f32.xlu0 %v3848
        %v3850 = vpop.xlane.xlu0 %3849
        %v3851 = vsub.f32 %v3842, %v3847
        %v3852 = vsub.f32 %v3843, %v3850
        %v3853 = vmul.f32 %v3851, 1.442695
        %v3854 = vpow.pop %v3853
        %v3855 = vmul.f32 %v3852, 1.442695
        %v3856 = vpow.pop %v3855
        %v3857 = vsel %vm3844, %v3854, 0.0
        %3858 = vadd.xlane.f32.xlu0 %v3857
        %v3859 = vpop.xlane.xlu0 %3858
        %v3860 = vsel %vm3844, %v3856, 0.0
        %3861 = vadd.xlane.f32.xlu0 %v3860
        %v3862 = vpop.xlane.xlu0 %3861
        %v3863 = vrcp.pop %v3859
        %v3864 = vmul.f32 %v3854, %v3863
        %v3865 = vrcp.pop %v3862
        %v3866 = vmul.f32 %v3856, %v3865
        %v3867 = vlaneseq
        %v3868 = vshrl.u32 %v3867, 7
        %v3869 = vsub.s32 2, %v3868
        %v3870 = vrot.slane %v3471, %v3869
        %v3871 = vlaneseq
        %v3872 = vshrl.u32 %v3871, 7
        %v3873 = vsub.s32 2, %v3872
        %v3874 = vrot.slane %v3472, %v3873
        %v3875 = vlaneseq
        %v3876 = vshrl.u32 %v3875, 7
        %v3877 = vsub.s32 2, %v3876
        %v3878 = vrot.slane %v3473, %v3877
        %v3879 = vlaneseq
        %v3880 = vshrl.u32 %v3879, 7
        %v3881 = vsub.s32 2, %v3880
        %v3882 = vrot.slane %v3474, %v3881
        %v3883 = vlaneseq
        %v3884 = vshrl.u32 %v3883, 7
        %v3885 = vsub.s32 2, %v3884
        %v3886 = vrot.slane %v3475, %v3885
        %v3887 = vlaneseq
        %v3888 = vshrl.u32 %v3887, 7
        %v3889 = vsub.s32 2, %v3888
        %v3890 = vrot.slane %v3476, %v3889
        %v3891 = vlaneseq
        %v3892 = vshrl.u32 %v3891, 7
        %v3893 = vsub.s32 2, %v3892
        %v3894 = vrot.slane %v3477, %v3893
        %v3896 = vsel %vm3844, %v3864, 0
        %v3899 = vsel %vm3844, %v3866, 0
        %3901 = vmatprep.subr.mxu0 0.0
        %3902 = vmatpush1.msra.mxu0 0.0
        %3903 = vmatprep.subr.mxu0 0.0
        %3904 = vmatpush1.msra.mxu0 0.0
        %3905 = vmatprep.subr.mxu0 0.0
        %3906 = vmatpush1.msra.mxu0 0.0
        %3907 = vmatprep.subr.mxu0 0.0
        %3908 = vmatpush1.msra.mxu0 0.0
        %3909 = vmatprep.subr.mxu0 0.0
        %3910 = vmatpush1.msra.mxu0 0.0
        %3911 = vmatprep.subr.mxu0 0.0
        %3912 = vmatpush1.msra.mxu0 0.0
        %3913 = vmatprep.subr.mxu0 0.0
        %3914 = vmatpush1.msra.mxu0 0.0
        %3915 = vmatprep.subr.mxu0 0.0
        %3916 = vmatpush1.msra.mxu0 0.0
        %3917 = vmatprep.subr.mxu0 0.0
        %3918 = vmatpush1.msra.mxu0 0.0
        %3919 = vmatprep.subr.mxu0 0.0
        %3920 = vmatpush1.msra.mxu0 0.0
        %3921 = vmatprep.subr.mxu0 0.0
        %3922 = vmatpush1.msra.mxu0 0.0
        %3923 = vmatprep.subr.mxu0 0.0
        %3924 = vmatpush1.msra.mxu0 0.0
        %3925 = vmatprep.subr.mxu0 0.0
        %3926 = vmatpush1.msra.mxu0 0.0
        %3927 = vmatprep.subr.mxu0 0.0
        %3928 = vmatpush1.msra.mxu0 0.0
        %3929 = vmatprep.subr.mxu0 %v2961
        %3930 = vmatpush1.msra.mxu0 %v2959
        %3931 = vmatprep.subr.mxu0 %v2957
        %3932 = vmatpush1.msra.mxu0 %v2955
        %3933 = vmatprep.subr.mxu0 0.0
        %3934 = vmatpush2.msra.mxu0 0.0
        %3935 = vmatprep.subr.mxu0 0.0
        %3936 = vmatpush2.msra.mxu0 0.0
        %3937 = vmatprep.subr.mxu0 0.0
        %3938 = vmatpush2.msra.mxu0 0.0
        %3939 = vmatprep.subr.mxu0 0.0
        %3940 = vmatpush2.msra.mxu0 0.0
        %3941 = vmatprep.subr.mxu0 0.0
        %3942 = vmatpush2.msra.mxu0 0.0
        %3943 = vmatprep.subr.mxu0 0.0
        %3944 = vmatpush2.msra.mxu0 0.0
        %3945 = vmatprep.subr.mxu0 0.0
        %3946 = vmatpush2.msra.mxu0 0.0
        %3947 = vmatprep.subr.mxu0 0.0
        %3948 = vmatpush2.msra.mxu0 0.0
        %3949 = vmatprep.subr.mxu0 0.0
        %3950 = vmatpush2.msra.mxu0 0.0
        %3951 = vmatprep.subr.mxu0 0.0
        %3952 = vmatpush2.msra.mxu0 0.0
        %3953 = vmatprep.subr.mxu0 0.0
        %3954 = vmatpush2.msra.mxu0 0.0
        %3955 = vmatprep.subr.mxu0 0.0
        %3956 = vmatpush2.msra.mxu0 0.0
        %3957 = vmatprep.subr.mxu0 0.0
        %3958 = vmatpush2.msra.mxu0 0.0
        %3959 = vmatprep.subr.mxu0 0.0
        %3960 = vmatpush2.msra.mxu0 0.0
        %3961 = vmatprep.subr.mxu0 0.0
        %3962 = vmatpush2.msra.mxu0 0.0
        %3963 = vmatprep.subr.mxu0 0.0
        %3964 = vmatpush2.msra.mxu0 0.0
        %3965 = vmatprep.mubr.f32.mxu0 0.0
        %3966 = vmatmul.mubr.f32.gmra.mxu0 %v3896
        %v3967 = vpop.f32.mrf.mxu0
        %v3968 = vadd.f32 %v3870, %v3967
        %v3969 = vpop.f32.mrf.mxu0
        %v3970 = vadd.f32 %v3874, %v3969
        %3971 = vmatprep.mubr.f32.mxu0 0.0
        %3972 = vmatmul.mubr.f32.gmra.mxu0 %v3899
        %v3973 = vpop.f32.mrf.mxu0
        %v3974 = vadd.f32 %v3870, %v3973
        %v3975 = vpop.f32.mrf.mxu0
        %v3976 = vadd.f32 %v3874, %v3975
        %3977 = vdwg.mxu0
        %3978 = vmatprep.subr.mxu0 0.0
        %3979 = vmatpush1.msra.mxu0 0.0
        %3980 = vmatprep.subr.mxu0 0.0
        %3981 = vmatpush1.msra.mxu0 0.0
        %3982 = vmatprep.subr.mxu0 0.0
        %3983 = vmatpush1.msra.mxu0 0.0
        %3984 = vmatprep.subr.mxu0 0.0
        %3985 = vmatpush1.msra.mxu0 0.0
        %3986 = vmatprep.subr.mxu0 0.0
        %3987 = vmatpush1.msra.mxu0 0.0
        %3988 = vmatprep.subr.mxu0 0.0
        %3989 = vmatpush1.msra.mxu0 0.0
        %3990 = vmatprep.subr.mxu0 0.0
        %3991 = vmatpush1.msra.mxu0 0.0
        %3992 = vmatprep.subr.mxu0 0.0
        %3993 = vmatpush1.msra.mxu0 0.0
        %3994 = vmatprep.subr.mxu0 0.0
        %3995 = vmatpush1.msra.mxu0 0.0
        %3996 = vmatprep.subr.mxu0 0.0
        %3997 = vmatpush1.msra.mxu0 0.0
        %3998 = vmatprep.subr.mxu0 0.0
        %3999 = vmatpush1.msra.mxu0 0.0
        %4000 = vmatprep.subr.mxu0 0.0
        %4001 = vmatpush1.msra.mxu0 0.0
        %4002 = vmatprep.subr.mxu0 0.0
        %4003 = vmatpush1.msra.mxu0 0.0
        %4004 = vmatprep.subr.mxu0 0.0
        %4005 = vmatpush1.msra.mxu0 0.0
        %4006 = vmatprep.subr.mxu0 %v3133
        %4007 = vmatpush1.msra.mxu0 %v3131
        %4008 = vmatprep.subr.mxu0 %v3129
        %4009 = vmatpush1.msra.mxu0 %v3127
        %4010 = vmatprep.subr.mxu0 0.0
        %4011 = vmatpush2.msra.mxu0 0.0
        %4012 = vmatprep.subr.mxu0 0.0
        %4013 = vmatpush2.msra.mxu0 0.0
        %4014 = vmatprep.subr.mxu0 0.0
        %4015 = vmatpush2.msra.mxu0 0.0
        %4016 = vmatprep.subr.mxu0 0.0
        %4017 = vmatpush2.msra.mxu0 0.0
        %4018 = vmatprep.subr.mxu0 0.0
        %4019 = vmatpush2.msra.mxu0 0.0
        %4020 = vmatprep.subr.mxu0 0.0
        %4021 = vmatpush2.msra.mxu0 0.0
        %4022 = vmatprep.subr.mxu0 0.0
        %4023 = vmatpush2.msra.mxu0 0.0
        %4024 = vmatprep.subr.mxu0 0.0
        %4025 = vmatpush2.msra.mxu0 0.0
        %4026 = vmatprep.subr.mxu0 0.0
        %4027 = vmatpush2.msra.mxu0 0.0
        %4028 = vmatprep.subr.mxu0 0.0
        %4029 = vmatpush2.msra.mxu0 0.0
        %4030 = vmatprep.subr.mxu0 0.0
        %4031 = vmatpush2.msra.mxu0 0.0
        %4032 = vmatprep.subr.mxu0 0.0
        %4033 = vmatpush2.msra.mxu0 0.0
        %4034 = vmatprep.subr.mxu0 0.0
        %4035 = vmatpush2.msra.mxu0 0.0
        %4036 = vmatprep.subr.mxu0 0.0
        %4037 = vmatpush2.msra.mxu0 0.0
        %4038 = vmatprep.subr.mxu0 0.0
        %4039 = vmatpush2.msra.mxu0 0.0
        %4040 = vmatprep.subr.mxu0 0.0
        %4041 = vmatpush2.msra.mxu0 0.0
        %4042 = vmatprep.mubr.f32.mxu0 0.0
        %4043 = vmatmul.mubr.f32.gmra.mxu0 %v3896
        %v4044 = vpop.f32.mrf.mxu0
        %v4045 = vadd.f32 %v3878, %v4044
        %v4046 = vpop.f32.mrf.mxu0
        %v4047 = vadd.f32 %v3882, %v4046
        %4048 = vmatprep.mubr.f32.mxu0 0.0
        %4049 = vmatmul.mubr.f32.gmra.mxu0 %v3899
        %v4050 = vpop.f32.mrf.mxu0
        %v4051 = vadd.f32 %v3878, %v4050
        %v4052 = vpop.f32.mrf.mxu0
        %v4053 = vadd.f32 %v3882, %v4052
        %4054 = vdwg.mxu0
        %4055 = vmatprep.subr.mxu0 0.0
        %4056 = vmatpush1.msra.mxu0 0.0
        %4057 = vmatprep.subr.mxu0 0.0
        %4058 = vmatpush1.msra.mxu0 0.0
        %4059 = vmatprep.subr.mxu0 0.0
        %4060 = vmatpush1.msra.mxu0 0.0
        %4061 = vmatprep.subr.mxu0 0.0
        %4062 = vmatpush1.msra.mxu0 0.0
        %4063 = vmatprep.subr.mxu0 0.0
        %4064 = vmatpush1.msra.mxu0 0.0
        %4065 = vmatprep.subr.mxu0 0.0
        %4066 = vmatpush1.msra.mxu0 0.0
        %4067 = vmatprep.subr.mxu0 0.0
        %4068 = vmatpush1.msra.mxu0 0.0
        %4069 = vmatprep.subr.mxu0 0.0
        %4070 = vmatpush1.msra.mxu0 0.0
        %4071 = vmatprep.subr.mxu0 0.0
        %4072 = vmatpush1.msra.mxu0 0.0
        %4073 = vmatprep.subr.mxu0 0.0
        %4074 = vmatpush1.msra.mxu0 0.0
        %4075 = vmatprep.subr.mxu0 0.0
        %4076 = vmatpush1.msra.mxu0 0.0
        %4077 = vmatprep.subr.mxu0 0.0
        %4078 = vmatpush1.msra.mxu0 0.0
        %4079 = vmatprep.subr.mxu0 0.0
        %4080 = vmatpush1.msra.mxu0 0.0
        %4081 = vmatprep.subr.mxu0 0.0
        %4082 = vmatpush1.msra.mxu0 0.0
        %4083 = vmatprep.subr.mxu0 %v3305
        %4084 = vmatpush1.msra.mxu0 %v3303
        %4085 = vmatprep.subr.mxu0 %v3301
        %4086 = vmatpush1.msra.mxu0 %v3299
        %4087 = vmatprep.subr.mxu0 0.0
        %4088 = vmatpush2.msra.mxu0 0.0
        %4089 = vmatprep.subr.mxu0 0.0
        %4090 = vmatpush2.msra.mxu0 0.0
        %4091 = vmatprep.subr.mxu0 0.0
        %4092 = vmatpush2.msra.mxu0 0.0
        %4093 = vmatprep.subr.mxu0 0.0
        %4094 = vmatpush2.msra.mxu0 0.0
        %4095 = vmatprep.subr.mxu0 0.0
        %4096 = vmatpush2.msra.mxu0 0.0
        %4097 = vmatprep.subr.mxu0 0.0
        %4098 = vmatpush2.msra.mxu0 0.0
        %4099 = vmatprep.subr.mxu0 0.0
        %4100 = vmatpush2.msra.mxu0 0.0
        %4101 = vmatprep.subr.mxu0 0.0
        %4102 = vmatpush2.msra.mxu0 0.0
        %4103 = vmatprep.subr.mxu0 0.0
        %4104 = vmatpush2.msra.mxu0 0.0
        %4105 = vmatprep.subr.mxu0 0.0
        %4106 = vmatpush2.msra.mxu0 0.0
        %4107 = vmatprep.subr.mxu0 0.0
        %4108 = vmatpush2.msra.mxu0 0.0
        %4109 = vmatprep.subr.mxu0 0.0
        %4110 = vmatpush2.msra.mxu0 0.0
        %4111 = vmatprep.subr.mxu0 0.0
        %4112 = vmatpush2.msra.mxu0 0.0
        %4113 = vmatprep.subr.mxu0 0.0
        %4114 = vmatpush2.msra.mxu0 0.0
        %4115 = vmatprep.subr.mxu0 0.0
        %4116 = vmatpush2.msra.mxu0 0.0
        %4117 = vmatprep.subr.mxu0 0.0
        %4118 = vmatpush2.msra.mxu0 0.0
        %4119 = vmatprep.mubr.f32.mxu0 0.0
        %4120 = vmatmul.mubr.f32.gmra.mxu0 %v3896
        %v4121 = vpop.f32.mrf.mxu0
        %v4122 = vadd.f32 %v3886, %v4121
        %v4123 = vpop.f32.mrf.mxu0
        %v4124 = vadd.f32 %v3890, %v4123
        %4125 = vmatprep.mubr.f32.mxu0 0.0
        %4126 = vmatmul.mubr.f32.gmra.mxu0 %v3899
        %v4127 = vpop.f32.mrf.mxu0
        %v4128 = vadd.f32 %v3886, %v4127
        %v4129 = vpop.f32.mrf.mxu0
        %v4130 = vadd.f32 %v3890, %v4129
        %4131 = vdwg.mxu0
        %4132 = vmatprep.subr.mxu0 0.0
        %4133 = vmatpush1.msra.mxu0 0.0
        %4134 = vmatprep.subr.mxu0 0.0
        %4135 = vmatpush1.msra.mxu0 0.0
        %4136 = vmatprep.subr.mxu0 0.0
        %4137 = vmatpush1.msra.mxu0 0.0
        %4138 = vmatprep.subr.mxu0 0.0
        %4139 = vmatpush1.msra.mxu0 0.0
        %4140 = vmatprep.subr.mxu0 0.0
        %4141 = vmatpush1.msra.mxu0 0.0
        %4142 = vmatprep.subr.mxu0 0.0
        %4143 = vmatpush1.msra.mxu0 0.0
        %4144 = vmatprep.subr.mxu0 0.0
        %4145 = vmatpush1.msra.mxu0 0.0
        %4146 = vmatprep.subr.mxu0 0.0
        %4147 = vmatpush1.msra.mxu0 0.0
        %4148 = vmatprep.subr.mxu0 0.0
        %4149 = vmatpush1.msra.mxu0 0.0
        %4150 = vmatprep.subr.mxu0 0.0
        %4151 = vmatpush1.msra.mxu0 0.0
        %4152 = vmatprep.subr.mxu0 0.0
        %4153 = vmatpush1.msra.mxu0 0.0
        %4154 = vmatprep.subr.mxu0 0.0
        %4155 = vmatpush1.msra.mxu0 0.0
        %4156 = vmatprep.subr.mxu0 0.0
        %4157 = vmatpush1.msra.mxu0 0.0
        %4158 = vmatprep.subr.mxu0 0.0
        %4159 = vmatpush1.msra.mxu0 0.0
        %4160 = vmatprep.subr.mxu0 0.0
        %4161 = vmatpush1.msra.mxu0 %v3468
        %4162 = vmatprep.subr.mxu0 0.0
        %4163 = vmatpush1.msra.mxu0 %v3465
        %4164 = vmatprep.subr.mxu0 0.0
        %4165 = vmatpush2.msra.mxu0 0.0
        %4166 = vmatprep.subr.mxu0 0.0
        %4167 = vmatpush2.msra.mxu0 0.0
        %4168 = vmatprep.subr.mxu0 0.0
        %4169 = vmatpush2.msra.mxu0 0.0
        %4170 = vmatprep.subr.mxu0 0.0
        %4171 = vmatpush2.msra.mxu0 0.0
        %4172 = vmatprep.subr.mxu0 0.0
        %4173 = vmatpush2.msra.mxu0 0.0
        %4174 = vmatprep.subr.mxu0 0.0
        %4175 = vmatpush2.msra.mxu0 0.0
        %4176 = vmatprep.subr.mxu0 0.0
        %4177 = vmatpush2.msra.mxu0 0.0
        %4178 = vmatprep.subr.mxu0 0.0
        %4179 = vmatpush2.msra.mxu0 0.0
        %4180 = vmatprep.subr.mxu0 0.0
        %4181 = vmatpush2.msra.mxu0 0.0
        %4182 = vmatprep.subr.mxu0 0.0
        %4183 = vmatpush2.msra.mxu0 0.0
        %4184 = vmatprep.subr.mxu0 0.0
        %4185 = vmatpush2.msra.mxu0 0.0
        %4186 = vmatprep.subr.mxu0 0.0
        %4187 = vmatpush2.msra.mxu0 0.0
        %4188 = vmatprep.subr.mxu0 0.0
        %4189 = vmatpush2.msra.mxu0 0.0
        %4190 = vmatprep.subr.mxu0 0.0
        %4191 = vmatpush2.msra.mxu0 0.0
        %4192 = vmatprep.subr.mxu0 0.0
        %4193 = vmatpush2.msra.mxu0 0.0
        %4194 = vmatprep.subr.mxu0 0.0
        %4195 = vmatpush2.msra.mxu0 0.0
        %4196 = vmatprep.mubr.f32.mxu0 0.0
        %4197 = vmatmul.mubr.f32.gmra.mxu0 %v3896
        %v4198 = vpop.f32.mrf.mxu0
        %v4199 = vadd.f32 %v3894, %v4198
        %v4200 = vpop.f32.mrf.mxu0
        %4201 = vmatprep.mubr.f32.mxu0 0.0
        %4202 = vmatmul.mubr.f32.gmra.mxu0 %v3899
        %v4203 = vpop.f32.mrf.mxu0
        %v4204 = vadd.f32 %v3894, %v4203
        %v4205 = vpop.f32.mrf.mxu0
        %4206 = vdwg.mxu0
        %v4207 = vtanh.pop %v3968
        %v4208 = vtanh.pop %v3970
        %v4209 = vtanh.pop %v4045
        %v4210 = vtanh.pop %v4047
        %v4211 = vtanh.pop %v4122
        %v4212 = vtanh.pop %v4124
        %v4213 = vtanh.pop %v4199
        %v4214 = vtanh.pop %v3974
        %v4215 = vtanh.pop %v3976
        %v4216 = vtanh.pop %v4051
        %v4217 = vtanh.pop %v4053
        %v4218 = vtanh.pop %v4128
        %v4219 = vtanh.pop %v4130
        %v4220 = vtanh.pop %v4204
        %v4221 = vadd.f32 %v4207, %v4214
        %v4222 = vrot.slane %v4221, 4
        %v4223 = vadd.f32 %v4221, %v4222
        %v4224 = vrot.slane %v4223, 2
        %v4225 = vadd.f32 %v4223, %v4224
        %v4226 = vrot.slane %v4225, 1
        %v4227 = vadd.f32 %v4225, %v4226
        %v4228 = vadd.f32 %v4208, %v4215
        %v4229 = vrot.slane %v4228, 4
        %v4230 = vadd.f32 %v4228, %v4229
        %v4231 = vrot.slane %v4230, 2
        %v4232 = vadd.f32 %v4230, %v4231
        %v4233 = vrot.slane %v4232, 1
        %v4234 = vadd.f32 %v4232, %v4233
        %v4235 = vadd.f32 %v4209, %v4216
        %v4236 = vrot.slane %v4235, 4
        %v4237 = vadd.f32 %v4235, %v4236
        %v4238 = vrot.slane %v4237, 2
        %v4239 = vadd.f32 %v4237, %v4238
        %v4240 = vrot.slane %v4239, 1
        %v4241 = vadd.f32 %v4239, %v4240
        %v4242 = vadd.f32 %v4210, %v4217
        %v4243 = vrot.slane %v4242, 4
        %v4244 = vadd.f32 %v4242, %v4243
        %v4245 = vrot.slane %v4244, 2
        %v4246 = vadd.f32 %v4244, %v4245
        %v4247 = vrot.slane %v4246, 1
        %v4248 = vadd.f32 %v4246, %v4247
        %v4249 = vadd.f32 %v4211, %v4218
        %v4250 = vrot.slane %v4249, 4
        %v4251 = vadd.f32 %v4249, %v4250
        %v4252 = vrot.slane %v4251, 2
        %v4253 = vadd.f32 %v4251, %v4252
        %v4254 = vrot.slane %v4253, 1
        %v4255 = vadd.f32 %v4253, %v4254
        %v4256 = vadd.f32 %v4212, %v4219
        %v4257 = vrot.slane %v4256, 4
        %v4258 = vadd.f32 %v4256, %v4257
        %v4259 = vrot.slane %v4258, 2
        %v4260 = vadd.f32 %v4258, %v4259
        %v4261 = vrot.slane %v4260, 1
        %v4262 = vadd.f32 %v4260, %v4261
        %v4263 = vadd.f32 %v4213, %v4220
        %v4264 = vrot.slane %v4263, 4
        %v4265 = vadd.f32 %v4263, %v4264
        %v4266 = vrot.slane %v4265, 2
        %v4267 = vadd.f32 %v4265, %v4266
        %v4268 = vrot.slane %v4267, 1
        %v4269 = vadd.f32 %v4267, %v4268
        %v4270 = vrcp.pop 16.0
        %v4271 = vmul.f32 %v4227, %v4270
        %v4272 = vmul.f32 %v4234, %v4270
        %v4273 = vmul.f32 %v4241, %v4270
        %v4274 = vmul.f32 %v4248, %v4270
        %v4275 = vmul.f32 %v4255, %v4270
        %v4276 = vmul.f32 %v4262, %v4270
        %v4277 = vmul.f32 %v4269, %v4270
        %v4278 = vsub.f32 %v4207, %v4271
        %v4279 = vsub.f32 %v4208, %v4272
        %v4280 = vsub.f32 %v4209, %v4273
        %v4281 = vsub.f32 %v4210, %v4274
        %v4282 = vsub.f32 %v4211, %v4275
        %v4283 = vsub.f32 %v4212, %v4276
        %v4284 = vsub.f32 %v4213, %v4277
        %v4285 = vsub.f32 %v4214, %v4271
        %v4286 = vsub.f32 %v4215, %v4272
        %v4287 = vsub.f32 %v4216, %v4273
        %v4288 = vsub.f32 %v4217, %v4274
        %v4289 = vsub.f32 %v4218, %v4275
        %v4290 = vsub.f32 %v4219, %v4276
        %v4291 = vsub.f32 %v4220, %v4277
        %v4292 = vmul.f32 %v4278, %v4278
        %v4293 = vmul.f32 %v4279, %v4279
        %v4294 = vmul.f32 %v4280, %v4280
        %v4295 = vmul.f32 %v4281, %v4281
        %v4296 = vmul.f32 %v4282, %v4282
        %v4297 = vmul.f32 %v4283, %v4283
        %v4298 = vmul.f32 %v4284, %v4284
        %v4299 = vmul.f32 %v4285, %v4285
        %v4300 = vmul.f32 %v4286, %v4286
        %v4301 = vmul.f32 %v4287, %v4287
        %v4302 = vmul.f32 %v4288, %v4288
        %v4303 = vmul.f32 %v4289, %v4289
        %v4304 = vmul.f32 %v4290, %v4290
        %v4305 = vmul.f32 %v4291, %v4291
        %v4306 = vadd.f32 %v4292, %v4299
        %v4307 = vrot.slane %v4306, 4
        %v4308 = vadd.f32 %v4306, %v4307
        %v4309 = vrot.slane %v4308, 2
        %v4310 = vadd.f32 %v4308, %v4309
        %v4311 = vrot.slane %v4310, 1
        %v4312 = vadd.f32 %v4310, %v4311
        %v4313 = vadd.f32 %v4293, %v4300
        %v4314 = vrot.slane %v4313, 4
        %v4315 = vadd.f32 %v4313, %v4314
        %v4316 = vrot.slane %v4315, 2
        %v4317 = vadd.f32 %v4315, %v4316
        %v4318 = vrot.slane %v4317, 1
        %v4319 = vadd.f32 %v4317, %v4318
        %v4320 = vadd.f32 %v4294, %v4301
        %v4321 = vrot.slane %v4320, 4
        %v4322 = vadd.f32 %v4320, %v4321
        %v4323 = vrot.slane %v4322, 2
        %v4324 = vadd.f32 %v4322, %v4323
        %v4325 = vrot.slane %v4324, 1
        %v4326 = vadd.f32 %v4324, %v4325
        %v4327 = vadd.f32 %v4295, %v4302
        %v4328 = vrot.slane %v4327, 4
        %v4329 = vadd.f32 %v4327, %v4328
        %v4330 = vrot.slane %v4329, 2
        %v4331 = vadd.f32 %v4329, %v4330
        %v4332 = vrot.slane %v4331, 1
        %v4333 = vadd.f32 %v4331, %v4332
        %v4334 = vadd.f32 %v4296, %v4303
        %v4335 = vrot.slane %v4334, 4
        %v4336 = vadd.f32 %v4334, %v4335
        %v4337 = vrot.slane %v4336, 2
        %v4338 = vadd.f32 %v4336, %v4337
        %v4339 = vrot.slane %v4338, 1
        %v4340 = vadd.f32 %v4338, %v4339
        %v4341 = vadd.f32 %v4297, %v4304
        %v4342 = vrot.slane %v4341, 4
        %v4343 = vadd.f32 %v4341, %v4342
        %v4344 = vrot.slane %v4343, 2
        %v4345 = vadd.f32 %v4343, %v4344
        %v4346 = vrot.slane %v4345, 1
        %v4347 = vadd.f32 %v4345, %v4346
        %v4348 = vadd.f32 %v4298, %v4305
        %v4349 = vrot.slane %v4348, 4
        %v4350 = vadd.f32 %v4348, %v4349
        %v4351 = vrot.slane %v4350, 2
        %v4352 = vadd.f32 %v4350, %v4351
        %v4353 = vrot.slane %v4352, 1
        %v4354 = vadd.f32 %v4352, %v4353
        %v4355 = vmul.f32 %v4312, %v4270
        %v4356 = vmul.f32 %v4319, %v4270
        %v4357 = vmul.f32 %v4326, %v4270
        %v4358 = vmul.f32 %v4333, %v4270
        %v4359 = vmul.f32 %v4340, %v4270
        %v4360 = vmul.f32 %v4347, %v4270
        %v4361 = vmul.f32 %v4354, %v4270
        %v4362 = vadd.f32 %v4355, 1e-05
        %v4363 = vadd.f32 %v4356, 1e-05
        %v4364 = vadd.f32 %v4357, 1e-05
        %v4365 = vadd.f32 %v4358, 1e-05
        %v4366 = vadd.f32 %v4359, 1e-05
        %v4367 = vadd.f32 %v4360, 1e-05
        %v4368 = vadd.f32 %v4361, 1e-05
        %v4369 = vrsqrt.pop %v4362
        %v4370 = vrsqrt.pop %v4363
        %v4371 = vrsqrt.pop %v4364
        %v4372 = vrsqrt.pop %v4365
        %v4373 = vrsqrt.pop %v4366
        %v4374 = vrsqrt.pop %v4367
        %v4375 = vrsqrt.pop %v4368
        %v4376 = vmul.f32 %v4278, %v4369
        %v4377 = vmul.f32 %v4279, %v4370
        %v4378 = vmul.f32 %v4280, %v4371
        %v4379 = vmul.f32 %v4281, %v4372
        %v4380 = vmul.f32 %v4282, %v4373
        %v4381 = vmul.f32 %v4283, %v4374
        %v4382 = vmul.f32 %v4284, %v4375
        %v4383 = vmul.f32 %v4285, %v4369
        %v4384 = vmul.f32 %v4286, %v4370
        %v4385 = vmul.f32 %v4287, %v4371
        %v4386 = vmul.f32 %v4288, %v4372
        %v4387 = vmul.f32 %v4289, %v4373
        %v4388 = vmul.f32 %v4290, %v4374
        %v4389 = vmul.f32 %v4291, %v4375
        %v4390 = vlaneseq
        %v4391 = vshrl.u32 %v4390, 7
        %v4392 = vsub.s32 3, %v4391
        %v4393 = vrot.slane %v3471, %v4392
        %v4394 = vlaneseq
        %v4395 = vshrl.u32 %v4394, 7
        %v4396 = vsub.s32 3, %v4395
        %v4397 = vrot.slane %v3472, %v4396
        %v4398 = vlaneseq
        %v4399 = vshrl.u32 %v4398, 7
        %v4400 = vsub.s32 3, %v4399
        %v4401 = vrot.slane %v3473, %v4400
        %v4402 = vlaneseq
        %v4403 = vshrl.u32 %v4402, 7
        %v4404 = vsub.s32 3, %v4403
        %v4405 = vrot.slane %v3474, %v4404
        %v4406 = vlaneseq
        %v4407 = vshrl.u32 %v4406, 7
        %v4408 = vsub.s32 3, %v4407
        %v4409 = vrot.slane %v3475, %v4408
        %v4410 = vlaneseq
        %v4411 = vshrl.u32 %v4410, 7
        %v4412 = vsub.s32 3, %v4411
        %v4413 = vrot.slane %v3476, %v4412
        %v4414 = vlaneseq
        %v4415 = vshrl.u32 %v4414, 7
        %v4416 = vsub.s32 3, %v4415
        %v4417 = vrot.slane %v3477, %v4416
        %v4418 = vmul.f32 %v4376, %v4393
        %v4419 = vmul.f32 %v4377, %v4397
        %v4420 = vmul.f32 %v4378, %v4401
        %v4421 = vmul.f32 %v4379, %v4405
        %v4422 = vmul.f32 %v4380, %v4409
        %v4423 = vmul.f32 %v4381, %v4413
        %v4424 = vmul.f32 %v4382, %v4417
        %v4425 = vmul.f32 %v4383, %v4393
        %v4426 = vmul.f32 %v4384, %v4397
        %v4427 = vmul.f32 %v4385, %v4401
        %v4428 = vmul.f32 %v4386, %v4405
        %v4429 = vmul.f32 %v4387, %v4409
        %v4430 = vmul.f32 %v4388, %v4413
        %v4431 = vmul.f32 %v4389, %v4417
        %v4432 = vlaneseq
        %v4433 = vshrl.u32 %v4432, 7
        %v4434 = vsub.s32 4, %v4433
        %v4435 = vrot.slane %v3471, %v4434
        %v4436 = vlaneseq
        %v4437 = vshrl.u32 %v4436, 7
        %v4438 = vsub.s32 4, %v4437
        %v4439 = vrot.slane %v3472, %v4438
        %v4440 = vlaneseq
        %v4441 = vshrl.u32 %v4440, 7
        %v4442 = vsub.s32 4, %v4441
        %v4443 = vrot.slane %v3473, %v4442
        %v4444 = vlaneseq
        %v4445 = vshrl.u32 %v4444, 7
        %v4446 = vsub.s32 4, %v4445
        %v4447 = vrot.slane %v3474, %v4446
        %v4448 = vlaneseq
        %v4449 = vshrl.u32 %v4448, 7
        %v4450 = vsub.s32 4, %v4449
        %v4451 = vrot.slane %v3475, %v4450
        %v4452 = vlaneseq
        %v4453 = vshrl.u32 %v4452, 7
        %v4454 = vsub.s32 4, %v4453
        %v4455 = vrot.slane %v3476, %v4454
        %v4456 = vlaneseq
        %v4457 = vshrl.u32 %v4456, 7
        %v4458 = vsub.s32 4, %v4457
        %v4459 = vrot.slane %v3477, %v4458
        %v4460 = vadd.f32 %v4418, %v4435
        %v4461 = vadd.f32 %v4419, %v4439
        %v4462 = vadd.f32 %v4420, %v4443
        %v4463 = vadd.f32 %v4421, %v4447
        %v4464 = vadd.f32 %v4422, %v4451
        %v4465 = vadd.f32 %v4423, %v4455
        %v4466 = vadd.f32 %v4424, %v4459
        %v4467 = vadd.f32 %v4425, %v4435
        %v4468 = vadd.f32 %v4426, %v4439
        %v4469 = vadd.f32 %v4427, %v4443
        %v4470 = vadd.f32 %v4428, %v4447
        %v4471 = vadd.f32 %v4429, %v4451
        %v4472 = vadd.f32 %v4430, %v4455
        %v4473 = vadd.f32 %v4431, %v4459
        %v4474 = vpack.c.bf16 %v4467, %v4460
        %v4475 = vpack.c.bf16 %v4468, %v4461
        %v4476 = vpack.c.bf16 %v4469, %v4462
        %v4477 = vpack.c.bf16 %v4470, %v4463
        %v4478 = vpack.c.bf16 %v4471, %v4464
        %v4479 = vpack.c.bf16 %v4472, %v4465
        %v4480 = vpack.c.bf16 %v4473, %v4466
        %v4488 = vunpack.c.l.b16 %v4474
        %v4489 = vunpack.c.l.b16 %v4475
        %v4490 = vunpack.c.l.b16 %v4476
        %v4491 = vunpack.c.l.b16 %v4477
        %v4492 = vunpack.c.l.b16 %v4478
        %v4493 = vunpack.c.l.b16 %v4479
        %v4494 = vunpack.c.l.b16 %v4480
        %v4495 = vunpack.c.h.b16 %v4474
        %v4496 = vunpack.c.h.b16 %v4475
        %v4497 = vunpack.c.h.b16 %v4476
        %v4498 = vunpack.c.h.b16 %v4477
        %v4499 = vunpack.c.h.b16 %v4478
        %v4500 = vunpack.c.h.b16 %v4479
        %v4501 = vunpack.c.h.b16 %v4480
        %v4502 = vpack.c.b16 %v4489, %v4488
        %v4503 = vpack.c.b16 %v4491, %v4490
        %v4504 = vpack.c.b16 %v4493, %v4492
        %v4505 = vpack.c.b16 %v4494, %v4494
        %v4506 = vpack.c.b16 %v4496, %v4495
        %v4507 = vpack.c.b16 %v4498, %v4497
        %v4508 = vpack.c.b16 %v4500, %v4499
        %v4509 = vpack.c.b16 %v4501, %v4501
        %4518 = vst [vmem:[%s280] sm:$0xff] %v4502
        %4519 = vst [vmem:[%s280 + $0x8] sm:$0xff] %v4503
        %4520 = vst [vmem:[%s280 + $0x10] sm:$0xff] %v4504
        %4521 = vst [vmem:[%s280 + $0x18] sm:$0xf] %v4505
        %4522 = vst [vmem:[%s280 + $0x1c] sm:$0xff] %v4506
        %4523 = vst [vmem:[%s280 + $0x24] sm:$0xff] %v4507
        %4524 = vst [vmem:[%s280 + $0x2c] sm:$0xff] %v4508
        %4525 = vst [vmem:[%s280 + $0x34] sm:$0xf] %v4509
        %s4526 = sand.u32 %s125, 1
        %s4527 = scalar_lea.sflag [#allocation4], %s4526
        %s4528 = sand.u32 %s125, 1
        %s4529 = smul.addr %s4528, 56
        %s4530 = scalar_lea.vmem [#allocation10], %s4529
        // Predicated region
        $region53: #{tpu_custom_call.1} parent=35 // pred_check
          %p4531 = pneg %p135
        $region54: #{tpu_custom_call.1} parent=35 // pred_check_branch
          %4533 = sbr.rel (%p4531) target = $region56
        $region55: #{tpu_custom_call.1} parent=35 // pred_region
          %s4534 = smul.u32 7, %s23
          %s4536 = ssub.s32 896, 896
          %4537 = vsyncadd %s4527, %s4536
          %s4538 = smul.addr %s4534, 64
          %s4539 = scalar_lea.hbm %s4, %s4538
          %s4540 = sshll.u32 %s4530, 4
          %s4541 = int_to_ptr.vmem [resolvable:$true] %s4540
          %4546 = dma.vmem_to_hbm [thread:$0]  %s4541, 896, %s4539, %s4527, 448, 1344, 28
        $region56: #{tpu_custom_call.1} parent=35 // pred_fallthru
          _
      $region36: #{tpu_custom_call.1} parent=5 // pred_fallthru
        _
      %p4547 = scmp.le.s32.totalorder 2, %s18
      // Predicated region
      $region57: #{tpu_custom_call.1} parent=5 // pred_check
        %p4548 = pneg %p4547
      $region58: #{tpu_custom_call.1} parent=5 // pred_check_branch
        %4550 = sbr.rel (%p4548) target = $region60
      $region59: #{tpu_custom_call.1} parent=5 // pred_region
        %s4551 = ssub.s32 %s18, 2
        // Predicated region
        $region61: #{tpu_custom_call.1} parent=59 // pred_check
          %p4552 = pneg %p141
        $region62: #{tpu_custom_call.1} parent=59 // pred_check_branch
          %4554 = sbr.rel (%p4552) target = $region64
        $region63: #{tpu_custom_call.1} parent=59 // pred_region
          %s4555 = sand.u32 %s126, 1
          %s4556 = scalar_lea.sflag [#allocation4], %s4555
          %s4557 = sand.u32 %s126, 1
          %s4558 = smul.addr %s4557, 56
          %s4559 = scalar_lea.vmem [#allocation10], %s4558
          %4560 = dma.done %s4556, 896
        $region64: #{tpu_custom_call.1} parent=59 // pred_fallthru
          _
      $region60: #{tpu_custom_call.1} parent=5 // pred_fallthru
        _
    $region6: #{tpu_custom_call.1} parent=1 // loop_footer
      %s22 = sadd.s32 1, %s18
    $region7: #{tpu_custom_call.1} parent=1 // loop_footer_branch
      %17 = sbr.rel target = $region3
    $region8: #{tpu_custom_call.1} parent=1 // loop_exit
      _
    %4561 = vsyncpa [#allocation3], 1
    %s4562 = scalar_lea.sflag [#allocation3], 1
    %4563 = vsyncpa %s4562, 1
    %4564 = vsyncpa [#allocation6], 1
    %s4565 = scalar_lea.sflag [#allocation6], 1
    %4566 = vsyncpa %s4565, 1
    %4567 = vsyncpa [#allocation9], 1
    %4568 = vsyncpa [#allocation4], 1
    %s4569 = scalar_lea.sflag [#allocation4], 1
    %4570 = vsyncpa %s4569, 1

</llo_original>
